<compile_context>
chip_gen: v5e
topology: v5e:2x2
jax: 0.10.0
libtpu: 0.0.40
codegen_flags: <defaults>
</compile_context>

<pallas_src>
import functools
import math

import jax
import jax.numpy as jnp
from jax import lax
from jax.experimental import pallas as pl
from jax.experimental.pallas import tpu as pltpu

_VMEM_LIMIT = 8 * 1024 * 1024   # ample for this working set; leaves headroom on v7x


# ----------------------------- in-kernel helpers -----------------------------
def _mm(a, b):
    """MXU matmul: bf16 operands, f32 accumulation."""
    return jnp.dot(a.astype(jnp.bfloat16), b.astype(jnp.bfloat16),
                   preferred_element_type=jnp.float32)


def _qkt(q, k):
    """q @ k.T without materializing the transpose (contract last dims)."""
    return lax.dot_general(q.astype(jnp.bfloat16), k.astype(jnp.bfloat16),
                           (((1,), (1,)), ((), ())),
                           preferred_element_type=jnp.float32)


def _softmax(x):
    m = jnp.max(x, axis=-1, keepdims=True)
    e = jnp.exp(x - m)
    s = jnp.sum(e, axis=-1, keepdims=True)
    return e * pl.reciprocal(s, approx=True)


def _layer_norm(x, gamma, beta, eps=1e-5):
    mu = jnp.mean(x, axis=-1, keepdims=True)
    var = jnp.mean((x - mu) ** 2, axis=-1, keepdims=True)
    return (x - mu) * lax.rsqrt(var + eps) * gamma + beta


def _class_tail(out, nc):
    """Block.process_feature: replace the last `nc` channels by their softmax.

    Lane-masked in place (no concatenate, no narrow-lane slices); used only to
    feed the frame path inside the kernel.
    """
    D = out.shape[-1]
    col = lax.broadcasted_iota(jnp.int32, out.shape, 1)
    is_cls = col >= (D - nc)
    m = jnp.max(jnp.where(is_cls, out, -jnp.inf), axis=-1, keepdims=True)
    e = jnp.exp(jnp.where(is_cls, out - m, 0.0))
    s = jnp.sum(jnp.where(is_cls, e, 0.0), axis=-1, keepdims=True)
    return jnp.where(is_cls, e * pl.reciprocal(s, approx=True), out)


def _xattn(y, ypos, x, xpos, w_ref, scale):
    """Single-head X2Y_map cross-attention (X -> Y). Returns (out, attn_logit).

    TODO(synk): basic.X2Y_map source not provided; standard single-head
    cross-attention (q = Y+pos, k = X+pos, v = X), dropout = eval identity.
    """
    q = _mm(y + ypos, w_ref[0]) * scale
    k = _mm(x + xpos, w_ref[1])
    v = _mm(x, w_ref[2])
    logit = _qkt(q, k)
    out = _mm(_mm(_softmax(logit), v), w_ref[3])
    return out, logit


# ------------------------------ fused kernel ---------------------------------
def _update_block_kernel(nclass, n_f_layers,
                         frame_ref, fpos_ref, phase_ref, ppos_ref,
                         f2p_w_ref, sa_w_ref, w1_ref, w2_ref, b1_ref,
                         p2f_w_ref, w_in_ref, w_out_ref, wd_ref, we_ref,
                         vec_d_ref, vec_h_ref,
                         phase_out_ref, frame_out_ref,
                         f2p_logit_ref, p2f_logit_ref):
    fr_in = frame_ref[0].astype(jnp.float32)       # [T, D]
    fpos = fpos_ref[0].astype(jnp.float32)
    ph_in = phase_ref[0].astype(jnp.float32)       # [NQ, D]
    ppos = ppos_ref[0].astype(jnp.float32)
    T, D = fr_in.shape
    scale = 1.0 / math.sqrt(D)

    vd = vec_d_ref[...]                            # (8, D) f32 packed vectors
    ln1_g, ln1_b = vd[0:1], vd[1:2]
    ln2_g, ln2_b = vd[2:3], vd[3:4]
    b2, bout_p, bout_f = vd[4:5], vd[5:6], vd[6:7]
    vh = vec_h_ref[...]                            # (1+2nL, H) f32 packed vectors
    b_in = vh[0:1]

    # ------------------------------ phase path ------------------------------
    # f2p cross-attention (frame -> phase)
    ph, f2p_logit = _xattn(ph_in, ppos, fr_in, fpos, f2p_w_ref, scale)
    f2p_logit_ref[0] = f2p_logit

    # phase_branch: one post-norm self-attention layer + FFN + out map.
    # TODO(synk): basic.SALayer / SADecoder sources not provided; standard
    # single-head post-norm encoder layer + output linear, dropout = identity.
    q2 = _mm(ph + ppos, sa_w_ref[0]) * scale
    k2 = _mm(ph + ppos, sa_w_ref[1])
    v2 = _mm(ph, sa_w_ref[2])
    sa = _mm(_mm(_softmax(_qkt(q2, k2)), v2), sa_w_ref[3])
    h = _layer_norm(ph + sa, ln1_g, ln1_b)
    ffn = _mm(jax.nn.relu(_mm(h, w1_ref[...]) + b1_ref[...]), w2_ref[...]) + b2
    h = _layer_norm(h + ffn, ln2_g, ln2_b)
    out_p = _mm(h, sa_w_ref[4]) + bout_p           # [NQ, D] pre-class-softmax
    phase_out_ref[0] = out_p                       # lane-dense; tail done in wrapper

    # process_feature(nclass + 1) — needed in-kernel to feed the frame path
    ph_feat = _class_tail(out_p, nclass + 1)

    # ------------------------------ frame path ------------------------------
    # p2f cross-attention (phase -> frame)
    fr, p2f_logit = _xattn(fr_in, fpos, ph_feat, ppos, p2f_w_ref, scale)
    p2f_logit_ref[0] = p2f_logit

    # frame_branch: single-stage MSTCN.
    # TODO(synk): basic.MSTCN source not provided; standard MS-TCN stage
    # (1x1 in-map, k=3 dilated residual layers, 1x1 out-map), dropout/LN = identity.
    h = _mm(fr, w_in_ref[...]) + b_in              # [T, H]
    H = h.shape[-1]
    row = lax.broadcasted_iota(jnp.int32, (T, H), 0)
    for l in range(n_f_layers):                    # static unroll (nL small)
        d = min(2 ** l, T)
        # Shifted taps via XLU roll + iota mask (no sublane/lane concats).
        h_prev = jnp.where(row >= d, pltpu.roll(h, shift=d, axis=0), 0.0)             # h[t-d]
        h_next = jnp.where(row < T - d, pltpu.roll(h, shift=(T - d) % T, axis=0), 0.0)  # h[t+d]
        conv = jax.nn.relu(_mm(h_prev, wd_ref[l, 0]) + _mm(h, wd_ref[l, 1])
                           + _mm(h_next, wd_ref[l, 2]) + vh[1 + l:2 + l])
        conv = _mm(conv, we_ref[l]) + vh[1 + n_f_layers + l:2 + n_f_layers + l]
        h = h + conv                               # dropout = identity (eval)
    out_f = _mm(h, w_out_ref[...]) + bout_f        # [T, D] pre-class-softmax
    frame_out_ref[0] = out_f


def update_block_pallas(params, frame_feature, phase_feature, frame_pos,
                        phase_pos, nclass):
    B, T, D = frame_feature.shape
    NQ = phase_feature.shape[1]
    F = params["w1"].shape[1]
    H = params["w_in"].shape[1]
    nL = params["wd"].shape[0]

    seq = lambda s, d: pl.BlockSpec((1, s, d), lambda b: (b, 0, 0))
    wfull = lambda shp: pl.BlockSpec(shp, lambda b: (0,) * len(shp))

    kernel = functools.partial(_update_block_kernel, nclass, nL)

    return pl.pallas_call(
        kernel,
        grid=(B,),
        in_specs=[
            seq(T, D), seq(T, D), seq(NQ, D), seq(NQ, D),
            wfull((4, D, D)),                 # f2p wq|wk|wv|wo (stacked, bf16)
            wfull((5, D, D)),                 # SA  wq|wk|wv|wo|wout (stacked, bf16)
            wfull((D, F)), wfull((F, D)), wfull((1, F)),
            wfull((4, D, D)),                 # p2f wq|wk|wv|wo (stacked, bf16)
            wfull((D, H)), wfull((H, D)),
            wfull((nL, 3, H, H)),             # dilated-conv taps (prev|center|next)
            wfull((nL, H, H)),
            wfull((8, D)),                    # packed D-length vectors (LN/bias)
            wfull((1 + 2 * nL, H)),           # packed H-length vectors (b_in/bd/be)
        ],
        out_specs=(seq(NQ, D), seq(T, D), seq(NQ, T), seq(T, NQ)),
        out_shape=(
            jax.ShapeDtypeStruct((B, NQ, D), jnp.float32),   # phase pre-softmax out
            jax.ShapeDtypeStruct((B, T, D), jnp.float32),    # frame pre-softmax out
            jax.ShapeDtypeStruct((B, NQ, T), jnp.float32),   # f2p attn logits
            jax.ShapeDtypeStruct((B, T, NQ), jnp.float32),   # p2f attn logits
        ),
        compiler_params=pltpu.CompilerParams(
            dimension_semantics=("parallel",),
            vmem_limit_bytes=_VMEM_LIMIT),
    )(frame_feature, frame_pos, phase_feature, phase_pos,
      params["f2p_w"], params["sa_w"], params["w1"], params["w2"], params["b1"],
      params["p2f_w"], params["w_in"], params["w_out"], params["wd"], params["we"],
      params["vec_d"], params["vec_h"])


# -------------------------- UpdateBlock.forward ------------------------------
def update_block_forward(params, frame_feature, phase_feature, frame_pos,
                         phase_pos, nclass):
    phase_raw, frame_raw, f2p_logit, p2f_logit = update_block_pallas(
        params, frame_feature, phase_feature, frame_pos, phase_pos, nclass)

    # Block.process_feature — class-column softmax + narrow slices done here
    # (kernel stores only lane-dense slabs / logits).
    ncp = nclass + 1
    phase_clogit = phase_raw[..., -ncp:]
    phase_feature = jnp.concatenate(
        [phase_raw[..., :-ncp], jax.nn.softmax(phase_clogit, axis=-1)], axis=-1)
    frame_clogit = frame_raw[..., -nclass:]
    frame_feature = jnp.concatenate(
        [frame_raw[..., :-nclass], jax.nn.softmax(frame_clogit, axis=-1)], axis=-1)

    # Attributes the PyTorch module stashes on `self` (attn derived from the
    # stored logits; the [0]/unsqueeze bookkeeping is dropped — full batch kept).
    aux = dict(frame_clogit=frame_clogit, phase_clogit=phase_clogit,
               f2p_attn=jax.nn.softmax(f2p_logit, axis=-1),
               p2f_attn=jax.nn.softmax(p2f_logit, axis=-1),
               f2p_attn_logit=f2p_logit, p2f_attn_logit=p2f_logit)
    return frame_feature, phase_feature, aux


# ---------------- Parameter init (deterministic, synthetic) ------------------
def init_params(key, D, H, F, n_f_layers):
    ks = iter(jax.random.split(key, 32))
    nxt = lambda: next(ks)

    def dense(fi, fo):
        return (jax.random.normal(nxt(), (fi, fo), jnp.float32)
                * (1.0 / math.sqrt(fi))).astype(jnp.bfloat16)

    stack = lambda n, fi, fo: jnp.stack([dense(fi, fo) for _ in range(n)])

    # packed D-length vectors: [ln1_g, ln1_b, ln2_g, ln2_b, b2, bout_phase, bout_frame, pad]
    vec_d = jnp.zeros((8, D), jnp.float32).at[0].set(1.0).at[2].set(1.0)
    # packed H-length vectors: [b_in, bd_0..bd_{nL-1}, be_0..be_{nL-1}]
    vec_h = jnp.zeros((1 + 2 * n_f_layers, H), jnp.float32)

    return dict(
        f2p_w=stack(4, D, D),                       # wq, wk, wv, wo
        p2f_w=stack(4, D, D),
        sa_w=stack(5, D, D),                        # wq, wk, wv, wo, wout
        w1=dense(D, F), w2=dense(F, D),
        b1=jnp.zeros((1, F), jnp.float32),
        w_in=dense(D, H), w_out=dense(H, D),
        wd=(jax.random.normal(nxt(), (n_f_layers, 3, H, H), jnp.float32)
            * (1.0 / math.sqrt(3 * H))).astype(jnp.bfloat16),
        we=(jax.random.normal(nxt(), (n_f_layers, H, H), jnp.float32)
            * (1.0 / math.sqrt(H))).astype(jnp.bfloat16),
        vec_d=vec_d, vec_h=vec_h,
    )


if __name__ == "__main__":
    B, T, NQ = 2, 16, 8            # batch, frame length, #phase query tokens
    D, H, FFD = 32, 32, 64         # f_dim = a_dim = hid_dim, MSTCN hidden, FFN dim
    NCLASS, N_F_LAYERS = 5, 3

    key = jax.random.PRNGKey(0)
    kf, kp, kfp, kpp, kw = jax.random.split(key, 5)
    frame_feature = jax.random.normal(kf, (B, T, D), jnp.float32)
    phase_feature = jax.random.normal(kp, (B, NQ, D), jnp.float32)
    frame_pos = jax.random.normal(kfp, (B, T, D), jnp.float32)
    phase_pos = jax.random.normal(kpp, (B, NQ, D), jnp.float32)

    params = init_params(kw, D, H, FFD, N_F_LAYERS)

    fwd = jax.jit(functools.partial(update_block_forward, nclass=NCLASS))
    frame_out, phase_out, aux = fwd(params, frame_feature, phase_feature,
                                    frame_pos, phase_pos)
    jax.block_until_ready((frame_out, phase_out, aux))

    assert frame_out.shape == (B, T, D)
    assert phase_out.shape == (B, NQ, D)
    assert aux["frame_clogit"].shape == (B, T, NCLASS)
    assert aux["phase_clogit"].shape == (B, NQ, NCLASS + 1)
    assert aux["p2f_attn"].shape == (B, T, NQ)
    assert aux["f2p_attn"].shape == (B, NQ, T)
    assert aux["p2f_attn_logit"].shape == (B, T, NQ)
    assert aux["f2p_attn_logit"].shape == (B, NQ, T)
    assert bool(jnp.all(jnp.isfinite(frame_out))) and bool(jnp.all(jnp.isfinite(phase_out)))
    assert bool(jnp.all(jnp.isfinite(aux["p2f_attn"]))) and bool(jnp.all(jnp.isfinite(aux["f2p_attn"])))
    print("KERNEL_OK")
</pallas_src>

<mosaic_0001>
module attributes {stable_mosaic.version = 11 : i64} {
  func.func @_update_block_kernel(%arg0: i32, %arg1: memref<1x16x32xf32, #tpu.memory_space<vmem>>, %arg2: memref<1x16x32xf32, #tpu.memory_space<vmem>>, %arg3: memref<1x8x32xf32, #tpu.memory_space<vmem>>, %arg4: memref<1x8x32xf32, #tpu.memory_space<vmem>>, %arg5: memref<4x32x32xbf16, #tpu.memory_space<vmem>>, %arg6: memref<5x32x32xbf16, #tpu.memory_space<vmem>>, %arg7: memref<32x64xbf16, #tpu.memory_space<vmem>>, %arg8: memref<64x32xbf16, #tpu.memory_space<vmem>>, %arg9: memref<1x64xf32, #tpu.memory_space<vmem>>, %arg10: memref<4x32x32xbf16, #tpu.memory_space<vmem>>, %arg11: memref<32x32xbf16, #tpu.memory_space<vmem>>, %arg12: memref<32x32xbf16, #tpu.memory_space<vmem>>, %arg13: memref<3x3x32x32xbf16, #tpu.memory_space<vmem>>, %arg14: memref<3x32x32xbf16, #tpu.memory_space<vmem>>, %arg15: memref<8x32xf32, #tpu.memory_space<vmem>>, %arg16: memref<7x32xf32, #tpu.memory_space<vmem>>, %arg17: memref<1x8x32xf32, #tpu.memory_space<vmem>>, %arg18: memref<1x16x32xf32, #tpu.memory_space<vmem>>, %arg19: memref<1x8x16xf32, #tpu.memory_space<vmem>>, %arg20: memref<1x16x8xf32, #tpu.memory_space<vmem>>) attributes {dimension_semantics = [#tpu.dimension_semantics<parallel>], iteration_bounds = array<i64: 2>, scalar_prefetch = 0 : i64, scratch_operands = 0 : i64, tpu.core_type = #tpu.core_type<tc>, window_params = [{transform_indices = @transform_0, window_bounds = array<i64: 1, 16, 32>}, {transform_indices = @transform_1, window_bounds = array<i64: 1, 16, 32>}, {transform_indices = @transform_2, window_bounds = array<i64: 1, 8, 32>}, {transform_indices = @transform_3, window_bounds = array<i64: 1, 8, 32>}, {pipeline_mode = #tpu.pipeline_mode<synchronous>, transform_indices = @transform_4, window_bounds = array<i64: 4, 32, 32>}, {pipeline_mode = #tpu.pipeline_mode<synchronous>, transform_indices = @transform_5, window_bounds = array<i64: 5, 32, 32>}, {pipeline_mode = #tpu.pipeline_mode<synchronous>, transform_indices = @transform_6, window_bounds = array<i64: 32, 64>}, {pipeline_mode = #tpu.pipeline_mode<synchronous>, transform_indices = @transform_7, window_bounds = array<i64: 64, 32>}, {pipeline_mode = #tpu.pipeline_mode<synchronous>, transform_indices = @transform_8, window_bounds = array<i64: 1, 64>}, {pipeline_mode = #tpu.pipeline_mode<synchronous>, transform_indices = @transform_9, window_bounds = array<i64: 4, 32, 32>}, {pipeline_mode = #tpu.pipeline_mode<synchronous>, transform_indices = @transform_10, window_bounds = array<i64: 32, 32>}, {pipeline_mode = #tpu.pipeline_mode<synchronous>, transform_indices = @transform_11, window_bounds = array<i64: 32, 32>}, {pipeline_mode = #tpu.pipeline_mode<synchronous>, transform_indices = @transform_12, window_bounds = array<i64: 3, 3, 32, 32>}, {pipeline_mode = #tpu.pipeline_mode<synchronous>, transform_indices = @transform_13, window_bounds = array<i64: 3, 32, 32>}, {pipeline_mode = #tpu.pipeline_mode<synchronous>, transform_indices = @transform_14, window_bounds = array<i64: 8, 32>}, {pipeline_mode = #tpu.pipeline_mode<synchronous>, transform_indices = @transform_15, window_bounds = array<i64: 7, 32>}, {transform_indices = @transform_16, window_bounds = array<i64: 1, 8, 32>}, {transform_indices = @transform_17, window_bounds = array<i64: 1, 16, 32>}, {transform_indices = @transform_18, window_bounds = array<i64: 1, 8, 16>}, {transform_indices = @transform_19, window_bounds = array<i64: 1, 16, 8>}]} {
    %c0 = arith.constant 0 : index
    %c0_0 = arith.constant 0 : index
    %c0_1 = arith.constant 0 : index
    %0 = vector.load %arg1[%c0, %c0_0, %c0_1] : memref<1x16x32xf32, #tpu.memory_space<vmem>>, vector<1x16x32xf32>
    %1 = vector.shape_cast %0 : vector<1x16x32xf32> to vector<16x32xf32>
    %c0_2 = arith.constant 0 : index
    %c0_3 = arith.constant 0 : index
    %c0_4 = arith.constant 0 : index
    %2 = vector.load %arg2[%c0_2, %c0_3, %c0_4] : memref<1x16x32xf32, #tpu.memory_space<vmem>>, vector<1x16x32xf32>
    %3 = vector.shape_cast %2 : vector<1x16x32xf32> to vector<16x32xf32>
    %c0_5 = arith.constant 0 : index
    %c0_6 = arith.constant 0 : index
    %c0_7 = arith.constant 0 : index
    %4 = vector.load %arg3[%c0_5, %c0_6, %c0_7] : memref<1x8x32xf32, #tpu.memory_space<vmem>>, vector<1x8x32xf32>
    %5 = vector.shape_cast %4 : vector<1x8x32xf32> to vector<8x32xf32>
    %c0_8 = arith.constant 0 : index
    %c0_9 = arith.constant 0 : index
    %c0_10 = arith.constant 0 : index
    %6 = vector.load %arg4[%c0_8, %c0_9, %c0_10] : memref<1x8x32xf32, #tpu.memory_space<vmem>>, vector<1x8x32xf32>
    %7 = vector.shape_cast %6 : vector<1x8x32xf32> to vector<8x32xf32>
    %c0_11 = arith.constant 0 : index
    %c0_12 = arith.constant 0 : index
    %8 = vector.load %arg15[%c0_11, %c0_12] : memref<8x32xf32, #tpu.memory_space<vmem>>, vector<8x32xf32>
    %9 = vector.extract_strided_slice %8 {offsets = [0, 0], sizes = [1, 32], strides = [1, 1]} : vector<8x32xf32> to vector<1x32xf32>
    %10 = vector.extract_strided_slice %8 {offsets = [1, 0], sizes = [1, 32], strides = [1, 1]} : vector<8x32xf32> to vector<1x32xf32>
    %11 = vector.extract_strided_slice %8 {offsets = [2, 0], sizes = [1, 32], strides = [1, 1]} : vector<8x32xf32> to vector<1x32xf32>
    %12 = vector.extract_strided_slice %8 {offsets = [3, 0], sizes = [1, 32], strides = [1, 1]} : vector<8x32xf32> to vector<1x32xf32>
    %13 = vector.extract_strided_slice %8 {offsets = [4, 0], sizes = [1, 32], strides = [1, 1]} : vector<8x32xf32> to vector<1x32xf32>
    %14 = vector.extract_strided_slice %8 {offsets = [5, 0], sizes = [1, 32], strides = [1, 1]} : vector<8x32xf32> to vector<1x32xf32>
    %15 = vector.extract_strided_slice %8 {offsets = [6, 0], sizes = [1, 32], strides = [1, 1]} : vector<8x32xf32> to vector<1x32xf32>
    %c0_13 = arith.constant 0 : index
    %c0_14 = arith.constant 0 : index
    %16 = vector.load %arg16[%c0_13, %c0_14] : memref<7x32xf32, #tpu.memory_space<vmem>>, vector<7x32xf32>
    %17 = vector.extract_strided_slice %16 {offsets = [0, 0], sizes = [1, 32], strides = [1, 1]} : vector<7x32xf32> to vector<1x32xf32>
    %18 = arith.addf %5, %7 : vector<8x32xf32>
    %c0_15 = arith.constant 0 : index
    %c0_16 = arith.constant 0 : index
    %c0_17 = arith.constant 0 : index
    %19 = vector.load %arg5[%c0_15, %c0_16, %c0_17] : memref<4x32x32xbf16, #tpu.memory_space<vmem>>, vector<1x32x32xbf16>
    %20 = vector.shape_cast %19 : vector<1x32x32xbf16> to vector<32x32xbf16>
    %21 = arith.truncf %18 : vector<8x32xf32> to vector<8x32xbf16>
    %cst = arith.constant dense<0.000000e+00> : vector<8x32xf32>
    %22 = tpu.matmul %21, %20, %cst {dimension_numbers = #tpu.dot_dimension_numbers<[1], [0], [0], [1], [0, 0, 1, 1], [], []>} : vector<8x32xbf16>, vector<32x32xbf16>, vector<8x32xf32> -> vector<8x32xf32>
    %cst_18 = arith.constant 0.176776692 : f32
    %23 = vector.broadcast %cst_18 : f32 to vector<8x32xf32>
    %24 = arith.mulf %22, %23 : vector<8x32xf32>
    %25 = arith.addf %1, %3 : vector<16x32xf32>
    %c1 = arith.constant 1 : index
    %c0_19 = arith.constant 0 : index
    %c0_20 = arith.constant 0 : index
    %26 = vector.load %arg5[%c1, %c0_19, %c0_20] : memref<4x32x32xbf16, #tpu.memory_space<vmem>>, vector<1x32x32xbf16>
    %27 = vector.shape_cast %26 : vector<1x32x32xbf16> to vector<32x32xbf16>
    %28 = arith.truncf %25 : vector<16x32xf32> to vector<16x32xbf16>
    %cst_21 = arith.constant dense<0.000000e+00> : vector<16x32xf32>
    %29 = tpu.matmul %28, %27, %cst_21 {dimension_numbers = #tpu.dot_dimension_numbers<[1], [0], [0], [1], [0, 0, 1, 1], [], []>} : vector<16x32xbf16>, vector<32x32xbf16>, vector<16x32xf32> -> vector<16x32xf32>
    %c2 = arith.constant 2 : index
    %c0_22 = arith.constant 0 : index
    %c0_23 = arith.constant 0 : index
    %30 = vector.load %arg5[%c2, %c0_22, %c0_23] : memref<4x32x32xbf16, #tpu.memory_space<vmem>>, vector<1x32x32xbf16>
    %31 = vector.shape_cast %30 : vector<1x32x32xbf16> to vector<32x32xbf16>
    %32 = arith.truncf %1 : vector<16x32xf32> to vector<16x32xbf16>
    %cst_24 = arith.constant dense<0.000000e+00> : vector<16x32xf32>
    %33 = tpu.matmul %32, %31, %cst_24 {dimension_numbers = #tpu.dot_dimension_numbers<[1], [0], [0], [1], [0, 0, 1, 1], [], []>} : vector<16x32xbf16>, vector<32x32xbf16>, vector<16x32xf32> -> vector<16x32xf32>
    %34 = arith.truncf %24 : vector<8x32xf32> to vector<8x32xbf16>
    %35 = arith.truncf %29 : vector<16x32xf32> to vector<16x32xbf16>
    %cst_25 = arith.constant dense<0.000000e+00> : vector<8x16xf32>
    %36 = tpu.matmul %34, %35, %cst_25 {dimension_numbers = #tpu.dot_dimension_numbers<[1], [1], [0], [0], [0, 0, 1, 0], [], []>} : vector<8x32xbf16>, vector<16x32xbf16>, vector<8x16xf32> -> vector<8x16xf32>
    %cst_26 = arith.constant dense<0xFF800000> : vector<8xf32>
    %37 = vector.multi_reduction <maximumf>, %36, %cst_26 [1] : vector<8x16xf32> to vector<8xf32>
    %38 = vector.shape_cast %37 : vector<8xf32> to vector<8x1xf32>
    %39 = vector.broadcast %38 : vector<8x1xf32> to vector<8x16xf32>
    %40 = arith.subf %36, %39 : vector<8x16xf32>
    %41 = math.exp %40 : vector<8x16xf32>
    %cst_27 = arith.constant dense<0.000000e+00> : vector<8xf32>
    %42 = vector.multi_reduction <add>, %41, %cst_27 [1] : vector<8x16xf32> to vector<8xf32>
    %43 = vector.shape_cast %42 : vector<8xf32> to vector<8x1xf32>
    %44 = tpu.reciprocal %43 {approx = true} : vector<8x1xf32> -> vector<8x1xf32>
    %45 = vector.broadcast %44 : vector<8x1xf32> to vector<8x16xf32>
    %46 = arith.mulf %41, %45 : vector<8x16xf32>
    %47 = arith.truncf %46 : vector<8x16xf32> to vector<8x16xbf16>
    %48 = arith.truncf %33 : vector<16x32xf32> to vector<16x32xbf16>
    %cst_28 = arith.constant dense<0.000000e+00> : vector<8x32xf32>
    %49 = tpu.matmul %47, %48, %cst_28 {dimension_numbers = #tpu.dot_dimension_numbers<[1], [0], [0], [1], [0, 0, 1, 1], [], []>} : vector<8x16xbf16>, vector<16x32xbf16>, vector<8x32xf32> -> vector<8x32xf32>
    %c3 = arith.constant 3 : index
    %c0_29 = arith.constant 0 : index
    %c0_30 = arith.constant 0 : index
    %50 = vector.load %arg5[%c3, %c0_29, %c0_30] : memref<4x32x32xbf16, #tpu.memory_space<vmem>>, vector<1x32x32xbf16>
    %51 = vector.shape_cast %50 : vector<1x32x32xbf16> to vector<32x32xbf16>
    %52 = arith.truncf %49 : vector<8x32xf32> to vector<8x32xbf16>
    %cst_31 = arith.constant dense<0.000000e+00> : vector<8x32xf32>
    %53 = tpu.matmul %52, %51, %cst_31 {dimension_numbers = #tpu.dot_dimension_numbers<[1], [0], [0], [1], [0, 0, 1, 1], [], []>} : vector<8x32xbf16>, vector<32x32xbf16>, vector<8x32xf32> -> vector<8x32xf32>
    %c0_32 = arith.constant 0 : index
    %c0_33 = arith.constant 0 : index
    %c0_34 = arith.constant 0 : index
    %54 = vector.load %arg19[%c0_32, %c0_33, %c0_34] : memref<1x8x16xf32, #tpu.memory_space<vmem>>, vector<1x8x16xf32>
    %55 = vector.shape_cast %54 : vector<1x8x16xf32> to vector<8x16xf32>
    %56 = vector.shape_cast %36 : vector<8x16xf32> to vector<1x8x16xf32>
    tpu.vector_store %arg19[%c0_32, %c0_33, %c0_34], %56 {strides = array<i32>} : memref<1x8x16xf32, #tpu.memory_space<vmem>>, vector<1x8x16xf32>,
    %57 = arith.addf %53, %7 : vector<8x32xf32>
    %c0_35 = arith.constant 0 : index
    %c0_36 = arith.constant 0 : index
    %c0_37 = arith.constant 0 : index
    %58 = vector.load %arg6[%c0_35, %c0_36, %c0_37] : memref<5x32x32xbf16, #tpu.memory_space<vmem>>, vector<1x32x32xbf16>
    %59 = vector.shape_cast %58 : vector<1x32x32xbf16> to vector<32x32xbf16>
    %60 = arith.truncf %57 : vector<8x32xf32> to vector<8x32xbf16>
    %cst_38 = arith.constant dense<0.000000e+00> : vector<8x32xf32>
    %61 = tpu.matmul %60, %59, %cst_38 {dimension_numbers = #tpu.dot_dimension_numbers<[1], [0], [0], [1], [0, 0, 1, 1], [], []>} : vector<8x32xbf16>, vector<32x32xbf16>, vector<8x32xf32> -> vector<8x32xf32>
    %cst_39 = arith.constant 0.176776692 : f32
    %62 = vector.broadcast %cst_39 : f32 to vector<8x32xf32>
    %63 = arith.mulf %61, %62 : vector<8x32xf32>
    %64 = arith.addf %53, %7 : vector<8x32xf32>
    %c1_40 = arith.constant 1 : index
    %c0_41 = arith.constant 0 : index
    %c0_42 = arith.constant 0 : index
    %65 = vector.load %arg6[%c1_40, %c0_41, %c0_42] : memref<5x32x32xbf16, #tpu.memory_space<vmem>>, vector<1x32x32xbf16>
    %66 = vector.shape_cast %65 : vector<1x32x32xbf16> to vector<32x32xbf16>
    %67 = arith.truncf %64 : vector<8x32xf32> to vector<8x32xbf16>
    %cst_43 = arith.constant dense<0.000000e+00> : vector<8x32xf32>
    %68 = tpu.matmul %67, %66, %cst_43 {dimension_numbers = #tpu.dot_dimension_numbers<[1], [0], [0], [1], [0, 0, 1, 1], [], []>} : vector<8x32xbf16>, vector<32x32xbf16>, vector<8x32xf32> -> vector<8x32xf32>
    %c2_44 = arith.constant 2 : index
    %c0_45 = arith.constant 0 : index
    %c0_46 = arith.constant 0 : index
    %69 = vector.load %arg6[%c2_44, %c0_45, %c0_46] : memref<5x32x32xbf16, #tpu.memory_space<vmem>>, vector<1x32x32xbf16>
    %70 = vector.shape_cast %69 : vector<1x32x32xbf16> to vector<32x32xbf16>
    %71 = arith.truncf %53 : vector<8x32xf32> to vector<8x32xbf16>
    %cst_47 = arith.constant dense<0.000000e+00> : vector<8x32xf32>
    %72 = tpu.matmul %71, %70, %cst_47 {dimension_numbers = #tpu.dot_dimension_numbers<[1], [0], [0], [1], [0, 0, 1, 1], [], []>} : vector<8x32xbf16>, vector<32x32xbf16>, vector<8x32xf32> -> vector<8x32xf32>
    %73 = arith.truncf %63 : vector<8x32xf32> to vector<8x32xbf16>
    %74 = arith.truncf %68 : vector<8x32xf32> to vector<8x32xbf16>
    %cst_48 = arith.constant dense<0.000000e+00> : vector<8x8xf32>
    %75 = tpu.matmul %73, %74, %cst_48 {dimension_numbers = #tpu.dot_dimension_numbers<[1], [1], [0], [0], [0, 0, 1, 0], [], []>} : vector<8x32xbf16>, vector<8x32xbf16>, vector<8x8xf32> -> vector<8x8xf32>
    %cst_49 = arith.constant dense<0xFF800000> : vector<8xf32>
    %76 = vector.multi_reduction <maximumf>, %75, %cst_49 [1] : vector<8x8xf32> to vector<8xf32>
    %77 = vector.shape_cast %76 : vector<8xf32> to vector<8x1xf32>
    %78 = vector.broadcast %77 : vector<8x1xf32> to vector<8x8xf32>
    %79 = arith.subf %75, %78 : vector<8x8xf32>
    %80 = math.exp %79 : vector<8x8xf32>
    %cst_50 = arith.constant dense<0.000000e+00> : vector<8xf32>
    %81 = vector.multi_reduction <add>, %80, %cst_50 [1] : vector<8x8xf32> to vector<8xf32>
    %82 = vector.shape_cast %81 : vector<8xf32> to vector<8x1xf32>
    %83 = tpu.reciprocal %82 {approx = true} : vector<8x1xf32> -> vector<8x1xf32>
    %84 = vector.broadcast %83 : vector<8x1xf32> to vector<8x8xf32>
    %85 = arith.mulf %80, %84 : vector<8x8xf32>
    %86 = arith.truncf %85 : vector<8x8xf32> to vector<8x8xbf16>
    %87 = arith.truncf %72 : vector<8x32xf32> to vector<8x32xbf16>
    %cst_51 = arith.constant dense<0.000000e+00> : vector<8x32xf32>
    %88 = tpu.matmul %86, %87, %cst_51 {dimension_numbers = #tpu.dot_dimension_numbers<[1], [0], [0], [1], [0, 0, 1, 1], [], []>} : vector<8x8xbf16>, vector<8x32xbf16>, vector<8x32xf32> -> vector<8x32xf32>
    %c3_52 = arith.constant 3 : index
    %c0_53 = arith.constant 0 : index
    %c0_54 = arith.constant 0 : index
    %89 = vector.load %arg6[%c3_52, %c0_53, %c0_54] : memref<5x32x32xbf16, #tpu.memory_space<vmem>>, vector<1x32x32xbf16>
    %90 = vector.shape_cast %89 : vector<1x32x32xbf16> to vector<32x32xbf16>
    %91 = arith.truncf %88 : vector<8x32xf32> to vector<8x32xbf16>
    %cst_55 = arith.constant dense<0.000000e+00> : vector<8x32xf32>
    %92 = tpu.matmul %91, %90, %cst_55 {dimension_numbers = #tpu.dot_dimension_numbers<[1], [0], [0], [1], [0, 0, 1, 1], [], []>} : vector<8x32xbf16>, vector<32x32xbf16>, vector<8x32xf32> -> vector<8x32xf32>
    %93 = arith.addf %53, %92 : vector<8x32xf32>
    %cst_56 = arith.constant dense<0.000000e+00> : vector<8xf32>
    %94 = vector.multi_reduction <add>, %93, %cst_56 [1] : vector<8x32xf32> to vector<8xf32>
    %95 = vector.shape_cast %94 : vector<8xf32> to vector<8x1xf32>
    %cst_57 = arith.constant 3.200000e+01 : f32
    %96 = vector.broadcast %cst_57 : f32 to vector<8x1xf32>
    %97 = arith.divf %95, %96 : vector<8x1xf32>
    %98 = vector.broadcast %97 : vector<8x1xf32> to vector<8x32xf32>
    %99 = arith.subf %93, %98 : vector<8x32xf32>
    %100 = arith.mulf %99, %99 : vector<8x32xf32>
    %cst_58 = arith.constant dense<0.000000e+00> : vector<8xf32>
    %101 = vector.multi_reduction <add>, %100, %cst_58 [1] : vector<8x32xf32> to vector<8xf32>
    %102 = vector.shape_cast %101 : vector<8xf32> to vector<8x1xf32>
    %cst_59 = arith.constant 3.200000e+01 : f32
    %103 = vector.broadcast %cst_59 : f32 to vector<8x1xf32>
    %104 = arith.divf %102, %103 : vector<8x1xf32>
    %105 = vector.broadcast %97 : vector<8x1xf32> to vector<8x32xf32>
    %106 = arith.subf %93, %105 : vector<8x32xf32>
    %cst_60 = arith.constant 9.99999974E-6 : f32
    %107 = vector.broadcast %cst_60 : f32 to vector<8x1xf32>
    %108 = arith.addf %104, %107 : vector<8x1xf32>
    %109 = math.rsqrt %108 : vector<8x1xf32>
    %110 = vector.broadcast %109 : vector<8x1xf32> to vector<8x32xf32>
    %111 = arith.mulf %106, %110 : vector<8x32xf32>
    %112 = vector.broadcast %9 : vector<1x32xf32> to vector<8x32xf32>
    %113 = arith.mulf %111, %112 : vector<8x32xf32>
    %114 = vector.broadcast %10 : vector<1x32xf32> to vector<8x32xf32>
    %115 = arith.addf %113, %114 : vector<8x32xf32>
    %c0_61 = arith.constant 0 : index
    %c0_62 = arith.constant 0 : index
    %116 = vector.load %arg7[%c0_61, %c0_62] : memref<32x64xbf16, #tpu.memory_space<vmem>>, vector<32x64xbf16>
    %117 = arith.truncf %115 : vector<8x32xf32> to vector<8x32xbf16>
    %cst_63 = arith.constant dense<0.000000e+00> : vector<8x64xf32>
    %118 = tpu.matmul %117, %116, %cst_63 {dimension_numbers = #tpu.dot_dimension_numbers<[1], [0], [0], [1], [0, 0, 1, 1], [], []>} : vector<8x32xbf16>, vector<32x64xbf16>, vector<8x64xf32> -> vector<8x64xf32>
    %c0_64 = arith.constant 0 : index
    %c0_65 = arith.constant 0 : index
    %119 = vector.load %arg9[%c0_64, %c0_65] : memref<1x64xf32, #tpu.memory_space<vmem>>, vector<1x64xf32>
    %120 = vector.broadcast %119 : vector<1x64xf32> to vector<8x64xf32>
    %121 = arith.addf %118, %120 : vector<8x64xf32>
    %cst_66 = arith.constant 0.000000e+00 : f32
    %122 = vector.broadcast %cst_66 : f32 to vector<8x64xf32>
    %123 = arith.maximumf %121, %122 : vector<8x64xf32>
    %c0_67 = arith.constant 0 : index
    %c0_68 = arith.constant 0 : index
    %124 = vector.load %arg8[%c0_67, %c0_68] : memref<64x32xbf16, #tpu.memory_space<vmem>>, vector<64x32xbf16>
    %125 = arith.truncf %123 : vector<8x64xf32> to vector<8x64xbf16>
    %cst_69 = arith.constant dense<0.000000e+00> : vector<8x32xf32>
    %126 = tpu.matmul %125, %124, %cst_69 {dimension_numbers = #tpu.dot_dimension_numbers<[1], [0], [0], [1], [0, 0, 1, 1], [], []>} : vector<8x64xbf16>, vector<64x32xbf16>, vector<8x32xf32> -> vector<8x32xf32>
    %127 = vector.broadcast %13 : vector<1x32xf32> to vector<8x32xf32>
    %128 = arith.addf %126, %127 : vector<8x32xf32>
    %129 = arith.addf %115, %128 : vector<8x32xf32>
    %cst_70 = arith.constant dense<0.000000e+00> : vector<8xf32>
    %130 = vector.multi_reduction <add>, %129, %cst_70 [1] : vector<8x32xf32> to vector<8xf32>
    %131 = vector.shape_cast %130 : vector<8xf32> to vector<8x1xf32>
    %cst_71 = arith.constant 3.200000e+01 : f32
    %132 = vector.broadcast %cst_71 : f32 to vector<8x1xf32>
    %133 = arith.divf %131, %132 : vector<8x1xf32>
    %134 = vector.broadcast %133 : vector<8x1xf32> to vector<8x32xf32>
    %135 = arith.subf %129, %134 : vector<8x32xf32>
    %136 = arith.mulf %135, %135 : vector<8x32xf32>
    %cst_72 = arith.constant dense<0.000000e+00> : vector<8xf32>
    %137 = vector.multi_reduction <add>, %136, %cst_72 [1] : vector<8x32xf32> to vector<8xf32>
    %138 = vector.shape_cast %137 : vector<8xf32> to vector<8x1xf32>
    %cst_73 = arith.constant 3.200000e+01 : f32
    %139 = vector.broadcast %cst_73 : f32 to vector<8x1xf32>
    %140 = arith.divf %138, %139 : vector<8x1xf32>
    %141 = vector.broadcast %133 : vector<8x1xf32> to vector<8x32xf32>
    %142 = arith.subf %129, %141 : vector<8x32xf32>
    %cst_74 = arith.constant 9.99999974E-6 : f32
    %143 = vector.broadcast %cst_74 : f32 to vector<8x1xf32>
    %144 = arith.addf %140, %143 : vector<8x1xf32>
    %145 = math.rsqrt %144 : vector<8x1xf32>
    %146 = vector.broadcast %145 : vector<8x1xf32> to vector<8x32xf32>
    %147 = arith.mulf %142, %146 : vector<8x32xf32>
    %148 = vector.broadcast %11 : vector<1x32xf32> to vector<8x32xf32>
    %149 = arith.mulf %147, %148 : vector<8x32xf32>
    %150 = vector.broadcast %12 : vector<1x32xf32> to vector<8x32xf32>
    %151 = arith.addf %149, %150 : vector<8x32xf32>
    %c4 = arith.constant 4 : index
    %c0_75 = arith.constant 0 : index
    %c0_76 = arith.constant 0 : index
    %152 = vector.load %arg6[%c4, %c0_75, %c0_76] : memref<5x32x32xbf16, #tpu.memory_space<vmem>>, vector<1x32x32xbf16>
    %153 = vector.shape_cast %152 : vector<1x32x32xbf16> to vector<32x32xbf16>
    %154 = arith.truncf %151 : vector<8x32xf32> to vector<8x32xbf16>
    %cst_77 = arith.constant dense<0.000000e+00> : vector<8x32xf32>
    %155 = tpu.matmul %154, %153, %cst_77 {dimension_numbers = #tpu.dot_dimension_numbers<[1], [0], [0], [1], [0, 0, 1, 1], [], []>} : vector<8x32xbf16>, vector<32x32xbf16>, vector<8x32xf32> -> vector<8x32xf32>
    %156 = vector.broadcast %14 : vector<1x32xf32> to vector<8x32xf32>
    %157 = arith.addf %155, %156 : vector<8x32xf32>
    %c0_78 = arith.constant 0 : index
    %c0_79 = arith.constant 0 : index
    %c0_80 = arith.constant 0 : index
    %158 = vector.load %arg17[%c0_78, %c0_79, %c0_80] : memref<1x8x32xf32, #tpu.memory_space<vmem>>, vector<1x8x32xf32>
    %159 = vector.shape_cast %158 : vector<1x8x32xf32> to vector<8x32xf32>
    %160 = vector.shape_cast %157 : vector<8x32xf32> to vector<1x8x32xf32>
    tpu.vector_store %arg17[%c0_78, %c0_79, %c0_80], %160 {strides = array<i32>} : memref<1x8x32xf32, #tpu.memory_space<vmem>>, vector<1x8x32xf32>,
    %161 = tpu.iota {dimensions = array<i32: 1>} : vector<8x32xi32>
    %c26_i32 = arith.constant 26 : i32
    %162 = vector.broadcast %c26_i32 : i32 to vector<8x32xi32>
    %163 = arith.cmpi sge, %161, %162 : vector<8x32xi32>
    %cst_81 = arith.constant 0xFF800000 : f32
    %164 = vector.broadcast %cst_81 : f32 to vector<8x32xf32>
    %165 = arith.select %163, %157, %164 : vector<8x32xi1>, vector<8x32xf32>
    %cst_82 = arith.constant dense<0xFF800000> : vector<8xf32>
    %166 = vector.multi_reduction <maximumf>, %165, %cst_82 [1] : vector<8x32xf32> to vector<8xf32>
    %167 = vector.shape_cast %166 : vector<8xf32> to vector<8x1xf32>
    %168 = vector.broadcast %167 : vector<8x1xf32> to vector<8x32xf32>
    %169 = arith.subf %157, %168 : vector<8x32xf32>
    %cst_83 = arith.constant 0.000000e+00 : f32
    %170 = vector.broadcast %cst_83 : f32 to vector<8x32xf32>
    %171 = arith.select %163, %169, %170 : vector<8x32xi1>, vector<8x32xf32>
    %172 = math.exp %171 : vector<8x32xf32>
    %cst_84 = arith.constant 0.000000e+00 : f32
    %173 = vector.broadcast %cst_84 : f32 to vector<8x32xf32>
    %174 = arith.select %163, %172, %173 : vector<8x32xi1>, vector<8x32xf32>
    %cst_85 = arith.constant dense<0.000000e+00> : vector<8xf32>
    %175 = vector.multi_reduction <add>, %174, %cst_85 [1] : vector<8x32xf32> to vector<8xf32>
    %176 = vector.shape_cast %175 : vector<8xf32> to vector<8x1xf32>
    %177 = tpu.reciprocal %176 {approx = true} : vector<8x1xf32> -> vector<8x1xf32>
    %178 = vector.broadcast %177 : vector<8x1xf32> to vector<8x32xf32>
    %179 = arith.mulf %172, %178 : vector<8x32xf32>
    %180 = arith.select %163, %179, %157 : vector<8x32xi1>, vector<8x32xf32>
    %181 = arith.addf %1, %3 : vector<16x32xf32>
    %c0_86 = arith.constant 0 : index
    %c0_87 = arith.constant 0 : index
    %c0_88 = arith.constant 0 : index
    %182 = vector.load %arg10[%c0_86, %c0_87, %c0_88] : memref<4x32x32xbf16, #tpu.memory_space<vmem>>, vector<1x32x32xbf16>
    %183 = vector.shape_cast %182 : vector<1x32x32xbf16> to vector<32x32xbf16>
    %184 = arith.truncf %181 : vector<16x32xf32> to vector<16x32xbf16>
    %cst_89 = arith.constant dense<0.000000e+00> : vector<16x32xf32>
    %185 = tpu.matmul %184, %183, %cst_89 {dimension_numbers = #tpu.dot_dimension_numbers<[1], [0], [0], [1], [0, 0, 1, 1], [], []>} : vector<16x32xbf16>, vector<32x32xbf16>, vector<16x32xf32> -> vector<16x32xf32>
    %cst_90 = arith.constant 0.176776692 : f32
    %186 = vector.broadcast %cst_90 : f32 to vector<16x32xf32>
    %187 = arith.mulf %185, %186 : vector<16x32xf32>
    %188 = arith.addf %180, %7 : vector<8x32xf32>
    %c1_91 = arith.constant 1 : index
    %c0_92 = arith.constant 0 : index
    %c0_93 = arith.constant 0 : index
    %189 = vector.load %arg10[%c1_91, %c0_92, %c0_93] : memref<4x32x32xbf16, #tpu.memory_space<vmem>>, vector<1x32x32xbf16>
    %190 = vector.shape_cast %189 : vector<1x32x32xbf16> to vector<32x32xbf16>
    %191 = arith.truncf %188 : vector<8x32xf32> to vector<8x32xbf16>
    %cst_94 = arith.constant dense<0.000000e+00> : vector<8x32xf32>
    %192 = tpu.matmul %191, %190, %cst_94 {dimension_numbers = #tpu.dot_dimension_numbers<[1], [0], [0], [1], [0, 0, 1, 1], [], []>} : vector<8x32xbf16>, vector<32x32xbf16>, vector<8x32xf32> -> vector<8x32xf32>
    %c2_95 = arith.constant 2 : index
    %c0_96 = arith.constant 0 : index
    %c0_97 = arith.constant 0 : index
    %193 = vector.load %arg10[%c2_95, %c0_96, %c0_97] : memref<4x32x32xbf16, #tpu.memory_space<vmem>>, vector<1x32x32xbf16>
    %194 = vector.shape_cast %193 : vector<1x32x32xbf16> to vector<32x32xbf16>
    %195 = arith.truncf %180 : vector<8x32xf32> to vector<8x32xbf16>
    %cst_98 = arith.constant dense<0.000000e+00> : vector<8x32xf32>
    %196 = tpu.matmul %195, %194, %cst_98 {dimension_numbers = #tpu.dot_dimension_numbers<[1], [0], [0], [1], [0, 0, 1, 1], [], []>} : vector<8x32xbf16>, vector<32x32xbf16>, vector<8x32xf32> -> vector<8x32xf32>
    %197 = arith.truncf %187 : vector<16x32xf32> to vector<16x32xbf16>
    %198 = arith.truncf %192 : vector<8x32xf32> to vector<8x32xbf16>
    %cst_99 = arith.constant dense<0.000000e+00> : vector<16x8xf32>
    %199 = tpu.matmul %197, %198, %cst_99 {dimension_numbers = #tpu.dot_dimension_numbers<[1], [1], [0], [0], [0, 0, 1, 0], [], []>} : vector<16x32xbf16>, vector<8x32xbf16>, vector<16x8xf32> -> vector<16x8xf32>
    %cst_100 = arith.constant dense<0xFF800000> : vector<16xf32>
    %200 = vector.multi_reduction <maximumf>, %199, %cst_100 [1] : vector<16x8xf32> to vector<16xf32>
    %201 = vector.shape_cast %200 : vector<16xf32> to vector<16x1xf32>
    %202 = vector.broadcast %201 : vector<16x1xf32> to vector<16x8xf32>
    %203 = arith.subf %199, %202 : vector<16x8xf32>
    %204 = math.exp %203 : vector<16x8xf32>
    %cst_101 = arith.constant dense<0.000000e+00> : vector<16xf32>
    %205 = vector.multi_reduction <add>, %204, %cst_101 [1] : vector<16x8xf32> to vector<16xf32>
    %206 = vector.shape_cast %205 : vector<16xf32> to vector<16x1xf32>
    %207 = tpu.reciprocal %206 {approx = true} : vector<16x1xf32> -> vector<16x1xf32>
    %208 = vector.broadcast %207 : vector<16x1xf32> to vector<16x8xf32>
    %209 = arith.mulf %204, %208 : vector<16x8xf32>
    %210 = arith.truncf %209 : vector<16x8xf32> to vector<16x8xbf16>
    %211 = arith.truncf %196 : vector<8x32xf32> to vector<8x32xbf16>
    %cst_102 = arith.constant dense<0.000000e+00> : vector<16x32xf32>
    %212 = tpu.matmul %210, %211, %cst_102 {dimension_numbers = #tpu.dot_dimension_numbers<[1], [0], [0], [1], [0, 0, 1, 1], [], []>} : vector<16x8xbf16>, vector<8x32xbf16>, vector<16x32xf32> -> vector<16x32xf32>
    %c3_103 = arith.constant 3 : index
    %c0_104 = arith.constant 0 : index
    %c0_105 = arith.constant 0 : index
    %213 = vector.load %arg10[%c3_103, %c0_104, %c0_105] : memref<4x32x32xbf16, #tpu.memory_space<vmem>>, vector<1x32x32xbf16>
    %214 = vector.shape_cast %213 : vector<1x32x32xbf16> to vector<32x32xbf16>
    %215 = arith.truncf %212 : vector<16x32xf32> to vector<16x32xbf16>
    %cst_106 = arith.constant dense<0.000000e+00> : vector<16x32xf32>
    %216 = tpu.matmul %215, %214, %cst_106 {dimension_numbers = #tpu.dot_dimension_numbers<[1], [0], [0], [1], [0, 0, 1, 1], [], []>} : vector<16x32xbf16>, vector<32x32xbf16>, vector<16x32xf32> -> vector<16x32xf32>
    %c0_107 = arith.constant 0 : index
    %c0_108 = arith.constant 0 : index
    %c0_109 = arith.constant 0 : index
    %217 = vector.load %arg20[%c0_107, %c0_108, %c0_109] : memref<1x16x8xf32, #tpu.memory_space<vmem>>, vector<1x16x8xf32>
    %218 = vector.shape_cast %217 : vector<1x16x8xf32> to vector<16x8xf32>
    %219 = vector.shape_cast %199 : vector<16x8xf32> to vector<1x16x8xf32>
    tpu.vector_store %arg20[%c0_107, %c0_108, %c0_109], %219 {strides = array<i32>} : memref<1x16x8xf32, #tpu.memory_space<vmem>>, vector<1x16x8xf32>,
    %c0_110 = arith.constant 0 : index
    %c0_111 = arith.constant 0 : index
    %220 = vector.load %arg11[%c0_110, %c0_111] : memref<32x32xbf16, #tpu.memory_space<vmem>>, vector<32x32xbf16>
    %221 = arith.truncf %216 : vector<16x32xf32> to vector<16x32xbf16>
    %cst_112 = arith.constant dense<0.000000e+00> : vector<16x32xf32>
    %222 = tpu.matmul %221, %220, %cst_112 {dimension_numbers = #tpu.dot_dimension_numbers<[1], [0], [0], [1], [0, 0, 1, 1], [], []>} : vector<16x32xbf16>, vector<32x32xbf16>, vector<16x32xf32> -> vector<16x32xf32>
    %223 = vector.broadcast %17 : vector<1x32xf32> to vector<16x32xf32>
    %224 = arith.addf %222, %223 : vector<16x32xf32>
    %225 = tpu.iota {dimensions = array<i32: 0>} : vector<16x32xi32>
    %c1_i32 = arith.constant 1 : i32
    %226 = vector.broadcast %c1_i32 : i32 to vector<16x32xi32>
    %227 = arith.cmpi sge, %225, %226 : vector<16x32xi32>
    %c1_i32_113 = arith.constant 1 : i32
    %228 = tpu.dynamic_rotate %224 by %c1_i32_113 dim 0 : vector<16x32xf32>, i32 -> vector<16x32xf32>
    %cst_114 = arith.constant 0.000000e+00 : f32
    %229 = vector.broadcast %cst_114 : f32 to vector<16x32xf32>
    %230 = arith.select %227, %228, %229 : vector<16x32xi1>, vector<16x32xf32>
    %c15_i32 = arith.constant 15 : i32
    %231 = vector.broadcast %c15_i32 : i32 to vector<16x32xi32>
    %232 = arith.cmpi slt, %225, %231 : vector<16x32xi32>
    %c15_i32_115 = arith.constant 15 : i32
    %233 = tpu.dynamic_rotate %224 by %c15_i32_115 dim 0 : vector<16x32xf32>, i32 -> vector<16x32xf32>
    %cst_116 = arith.constant 0.000000e+00 : f32
    %234 = vector.broadcast %cst_116 : f32 to vector<16x32xf32>
    %235 = arith.select %232, %233, %234 : vector<16x32xi1>, vector<16x32xf32>
    %c0_117 = arith.constant 0 : index
    %c0_118 = arith.constant 0 : index
    %c0_119 = arith.constant 0 : index
    %c0_120 = arith.constant 0 : index
    %236 = vector.load %arg13[%c0_117, %c0_118, %c0_119, %c0_120] : memref<3x3x32x32xbf16, #tpu.memory_space<vmem>>, vector<1x1x32x32xbf16>
    %237 = vector.shape_cast %236 : vector<1x1x32x32xbf16> to vector<32x32xbf16>
    %238 = arith.truncf %230 : vector<16x32xf32> to vector<16x32xbf16>
    %cst_121 = arith.constant dense<0.000000e+00> : vector<16x32xf32>
    %239 = tpu.matmul %238, %237, %cst_121 {dimension_numbers = #tpu.dot_dimension_numbers<[1], [0], [0], [1], [0, 0, 1, 1], [], []>} : vector<16x32xbf16>, vector<32x32xbf16>, vector<16x32xf32> -> vector<16x32xf32>
    %c0_122 = arith.constant 0 : index
    %c1_123 = arith.constant 1 : index
    %c0_124 = arith.constant 0 : index
    %c0_125 = arith.constant 0 : index
    %240 = vector.load %arg13[%c0_122, %c1_123, %c0_124, %c0_125] : memref<3x3x32x32xbf16, #tpu.memory_space<vmem>>, vector<1x1x32x32xbf16>
    %241 = vector.shape_cast %240 : vector<1x1x32x32xbf16> to vector<32x32xbf16>
    %242 = arith.truncf %224 : vector<16x32xf32> to vector<16x32xbf16>
    %cst_126 = arith.constant dense<0.000000e+00> : vector<16x32xf32>
    %243 = tpu.matmul %242, %241, %cst_126 {dimension_numbers = #tpu.dot_dimension_numbers<[1], [0], [0], [1], [0, 0, 1, 1], [], []>} : vector<16x32xbf16>, vector<32x32xbf16>, vector<16x32xf32> -> vector<16x32xf32>
    %244 = arith.addf %239, %243 : vector<16x32xf32>
    %c0_127 = arith.constant 0 : index
    %c2_128 = arith.constant 2 : index
    %c0_129 = arith.constant 0 : index
    %c0_130 = arith.constant 0 : index
    %245 = vector.load %arg13[%c0_127, %c2_128, %c0_129, %c0_130] : memref<3x3x32x32xbf16, #tpu.memory_space<vmem>>, vector<1x1x32x32xbf16>
    %246 = vector.shape_cast %245 : vector<1x1x32x32xbf16> to vector<32x32xbf16>
    %247 = arith.truncf %235 : vector<16x32xf32> to vector<16x32xbf16>
    %cst_131 = arith.constant dense<0.000000e+00> : vector<16x32xf32>
    %248 = tpu.matmul %247, %246, %cst_131 {dimension_numbers = #tpu.dot_dimension_numbers<[1], [0], [0], [1], [0, 0, 1, 1], [], []>} : vector<16x32xbf16>, vector<32x32xbf16>, vector<16x32xf32> -> vector<16x32xf32>
    %249 = arith.addf %244, %248 : vector<16x32xf32>
    %250 = vector.extract_strided_slice %16 {offsets = [1, 0], sizes = [1, 32], strides = [1, 1]} : vector<7x32xf32> to vector<1x32xf32>
    %251 = vector.broadcast %250 : vector<1x32xf32> to vector<16x32xf32>
    %252 = arith.addf %249, %251 : vector<16x32xf32>
    %cst_132 = arith.constant 0.000000e+00 : f32
    %253 = vector.broadcast %cst_132 : f32 to vector<16x32xf32>
    %254 = arith.maximumf %252, %253 : vector<16x32xf32>
    %c0_133 = arith.constant 0 : index
    %c0_134 = arith.constant 0 : index
    %c0_135 = arith.constant 0 : index
    %255 = vector.load %arg14[%c0_133, %c0_134, %c0_135] : memref<3x32x32xbf16, #tpu.memory_space<vmem>>, vector<1x32x32xbf16>
    %256 = vector.shape_cast %255 : vector<1x32x32xbf16> to vector<32x32xbf16>
    %257 = arith.truncf %254 : vector<16x32xf32> to vector<16x32xbf16>
    %cst_136 = arith.constant dense<0.000000e+00> : vector<16x32xf32>
    %258 = tpu.matmul %257, %256, %cst_136 {dimension_numbers = #tpu.dot_dimension_numbers<[1], [0], [0], [1], [0, 0, 1, 1], [], []>} : vector<16x32xbf16>, vector<32x32xbf16>, vector<16x32xf32> -> vector<16x32xf32>
    %259 = vector.extract_strided_slice %16 {offsets = [4, 0], sizes = [1, 32], strides = [1, 1]} : vector<7x32xf32> to vector<1x32xf32>
    %260 = vector.broadcast %259 : vector<1x32xf32> to vector<16x32xf32>
    %261 = arith.addf %258, %260 : vector<16x32xf32>
    %262 = arith.addf %224, %261 : vector<16x32xf32>
    %c2_i32 = arith.constant 2 : i32
    %263 = vector.broadcast %c2_i32 : i32 to vector<16x32xi32>
    %264 = arith.cmpi sge, %225, %263 : vector<16x32xi32>
    %c2_i32_137 = arith.constant 2 : i32
    %265 = tpu.dynamic_rotate %262 by %c2_i32_137 dim 0 : vector<16x32xf32>, i32 -> vector<16x32xf32>
    %cst_138 = arith.constant 0.000000e+00 : f32
    %266 = vector.broadcast %cst_138 : f32 to vector<16x32xf32>
    %267 = arith.select %264, %265, %266 : vector<16x32xi1>, vector<16x32xf32>
    %c14_i32 = arith.constant 14 : i32
    %268 = vector.broadcast %c14_i32 : i32 to vector<16x32xi32>
    %269 = arith.cmpi slt, %225, %268 : vector<16x32xi32>
    %c14_i32_139 = arith.constant 14 : i32
    %270 = tpu.dynamic_rotate %262 by %c14_i32_139 dim 0 : vector<16x32xf32>, i32 -> vector<16x32xf32>
    %cst_140 = arith.constant 0.000000e+00 : f32
    %271 = vector.broadcast %cst_140 : f32 to vector<16x32xf32>
    %272 = arith.select %269, %270, %271 : vector<16x32xi1>, vector<16x32xf32>
    %c1_141 = arith.constant 1 : index
    %c0_142 = arith.constant 0 : index
    %c0_143 = arith.constant 0 : index
    %c0_144 = arith.constant 0 : index
    %273 = vector.load %arg13[%c1_141, %c0_142, %c0_143, %c0_144] : memref<3x3x32x32xbf16, #tpu.memory_space<vmem>>, vector<1x1x32x32xbf16>
    %274 = vector.shape_cast %273 : vector<1x1x32x32xbf16> to vector<32x32xbf16>
    %275 = arith.truncf %267 : vector<16x32xf32> to vector<16x32xbf16>
    %cst_145 = arith.constant dense<0.000000e+00> : vector<16x32xf32>
    %276 = tpu.matmul %275, %274, %cst_145 {dimension_numbers = #tpu.dot_dimension_numbers<[1], [0], [0], [1], [0, 0, 1, 1], [], []>} : vector<16x32xbf16>, vector<32x32xbf16>, vector<16x32xf32> -> vector<16x32xf32>
    %c1_146 = arith.constant 1 : index
    %c1_147 = arith.constant 1 : index
    %c0_148 = arith.constant 0 : index
    %c0_149 = arith.constant 0 : index
    %277 = vector.load %arg13[%c1_146, %c1_147, %c0_148, %c0_149] : memref<3x3x32x32xbf16, #tpu.memory_space<vmem>>, vector<1x1x32x32xbf16>
    %278 = vector.shape_cast %277 : vector<1x1x32x32xbf16> to vector<32x32xbf16>
    %279 = arith.truncf %262 : vector<16x32xf32> to vector<16x32xbf16>
    %cst_150 = arith.constant dense<0.000000e+00> : vector<16x32xf32>
    %280 = tpu.matmul %279, %278, %cst_150 {dimension_numbers = #tpu.dot_dimension_numbers<[1], [0], [0], [1], [0, 0, 1, 1], [], []>} : vector<16x32xbf16>, vector<32x32xbf16>, vector<16x32xf32> -> vector<16x32xf32>
    %281 = arith.addf %276, %280 : vector<16x32xf32>
    %c1_151 = arith.constant 1 : index
    %c2_152 = arith.constant 2 : index
    %c0_153 = arith.constant 0 : index
    %c0_154 = arith.constant 0 : index
    %282 = vector.load %arg13[%c1_151, %c2_152, %c0_153, %c0_154] : memref<3x3x32x32xbf16, #tpu.memory_space<vmem>>, vector<1x1x32x32xbf16>
    %283 = vector.shape_cast %282 : vector<1x1x32x32xbf16> to vector<32x32xbf16>
    %284 = arith.truncf %272 : vector<16x32xf32> to vector<16x32xbf16>
    %cst_155 = arith.constant dense<0.000000e+00> : vector<16x32xf32>
    %285 = tpu.matmul %284, %283, %cst_155 {dimension_numbers = #tpu.dot_dimension_numbers<[1], [0], [0], [1], [0, 0, 1, 1], [], []>} : vector<16x32xbf16>, vector<32x32xbf16>, vector<16x32xf32> -> vector<16x32xf32>
    %286 = arith.addf %281, %285 : vector<16x32xf32>
    %287 = vector.extract_strided_slice %16 {offsets = [2, 0], sizes = [1, 32], strides = [1, 1]} : vector<7x32xf32> to vector<1x32xf32>
    %288 = vector.broadcast %287 : vector<1x32xf32> to vector<16x32xf32>
    %289 = arith.addf %286, %288 : vector<16x32xf32>
    %cst_156 = arith.constant 0.000000e+00 : f32
    %290 = vector.broadcast %cst_156 : f32 to vector<16x32xf32>
    %291 = arith.maximumf %289, %290 : vector<16x32xf32>
    %c1_157 = arith.constant 1 : index
    %c0_158 = arith.constant 0 : index
    %c0_159 = arith.constant 0 : index
    %292 = vector.load %arg14[%c1_157, %c0_158, %c0_159] : memref<3x32x32xbf16, #tpu.memory_space<vmem>>, vector<1x32x32xbf16>
    %293 = vector.shape_cast %292 : vector<1x32x32xbf16> to vector<32x32xbf16>
    %294 = arith.truncf %291 : vector<16x32xf32> to vector<16x32xbf16>
    %cst_160 = arith.constant dense<0.000000e+00> : vector<16x32xf32>
    %295 = tpu.matmul %294, %293, %cst_160 {dimension_numbers = #tpu.dot_dimension_numbers<[1], [0], [0], [1], [0, 0, 1, 1], [], []>} : vector<16x32xbf16>, vector<32x32xbf16>, vector<16x32xf32> -> vector<16x32xf32>
    %296 = vector.extract_strided_slice %16 {offsets = [5, 0], sizes = [1, 32], strides = [1, 1]} : vector<7x32xf32> to vector<1x32xf32>
    %297 = vector.broadcast %296 : vector<1x32xf32> to vector<16x32xf32>
    %298 = arith.addf %295, %297 : vector<16x32xf32>
    %299 = arith.addf %262, %298 : vector<16x32xf32>
    %c4_i32 = arith.constant 4 : i32
    %300 = vector.broadcast %c4_i32 : i32 to vector<16x32xi32>
    %301 = arith.cmpi sge, %225, %300 : vector<16x32xi32>
    %c4_i32_161 = arith.constant 4 : i32
    %302 = tpu.dynamic_rotate %299 by %c4_i32_161 dim 0 : vector<16x32xf32>, i32 -> vector<16x32xf32>
    %cst_162 = arith.constant 0.000000e+00 : f32
    %303 = vector.broadcast %cst_162 : f32 to vector<16x32xf32>
    %304 = arith.select %301, %302, %303 : vector<16x32xi1>, vector<16x32xf32>
    %c12_i32 = arith.constant 12 : i32
    %305 = vector.broadcast %c12_i32 : i32 to vector<16x32xi32>
    %306 = arith.cmpi slt, %225, %305 : vector<16x32xi32>
    %c12_i32_163 = arith.constant 12 : i32
    %307 = tpu.dynamic_rotate %299 by %c12_i32_163 dim 0 : vector<16x32xf32>, i32 -> vector<16x32xf32>
    %cst_164 = arith.constant 0.000000e+00 : f32
    %308 = vector.broadcast %cst_164 : f32 to vector<16x32xf32>
    %309 = arith.select %306, %307, %308 : vector<16x32xi1>, vector<16x32xf32>
    %c2_165 = arith.constant 2 : index
    %c0_166 = arith.constant 0 : index
    %c0_167 = arith.constant 0 : index
    %c0_168 = arith.constant 0 : index
    %310 = vector.load %arg13[%c2_165, %c0_166, %c0_167, %c0_168] : memref<3x3x32x32xbf16, #tpu.memory_space<vmem>>, vector<1x1x32x32xbf16>
    %311 = vector.shape_cast %310 : vector<1x1x32x32xbf16> to vector<32x32xbf16>
    %312 = arith.truncf %304 : vector<16x32xf32> to vector<16x32xbf16>
    %cst_169 = arith.constant dense<0.000000e+00> : vector<16x32xf32>
    %313 = tpu.matmul %312, %311, %cst_169 {dimension_numbers = #tpu.dot_dimension_numbers<[1], [0], [0], [1], [0, 0, 1, 1], [], []>} : vector<16x32xbf16>, vector<32x32xbf16>, vector<16x32xf32> -> vector<16x32xf32>
    %c2_170 = arith.constant 2 : index
    %c1_171 = arith.constant 1 : index
    %c0_172 = arith.constant 0 : index
    %c0_173 = arith.constant 0 : index
    %314 = vector.load %arg13[%c2_170, %c1_171, %c0_172, %c0_173] : memref<3x3x32x32xbf16, #tpu.memory_space<vmem>>, vector<1x1x32x32xbf16>
    %315 = vector.shape_cast %314 : vector<1x1x32x32xbf16> to vector<32x32xbf16>
    %316 = arith.truncf %299 : vector<16x32xf32> to vector<16x32xbf16>
    %cst_174 = arith.constant dense<0.000000e+00> : vector<16x32xf32>
    %317 = tpu.matmul %316, %315, %cst_174 {dimension_numbers = #tpu.dot_dimension_numbers<[1], [0], [0], [1], [0, 0, 1, 1], [], []>} : vector<16x32xbf16>, vector<32x32xbf16>, vector<16x32xf32> -> vector<16x32xf32>
    %318 = arith.addf %313, %317 : vector<16x32xf32>
    %c2_175 = arith.constant 2 : index
    %c2_176 = arith.constant 2 : index
    %c0_177 = arith.constant 0 : index
    %c0_178 = arith.constant 0 : index
    %319 = vector.load %arg13[%c2_175, %c2_176, %c0_177, %c0_178] : memref<3x3x32x32xbf16, #tpu.memory_space<vmem>>, vector<1x1x32x32xbf16>
    %320 = vector.shape_cast %319 : vector<1x1x32x32xbf16> to vector<32x32xbf16>
    %321 = arith.truncf %309 : vector<16x32xf32> to vector<16x32xbf16>
    %cst_179 = arith.constant dense<0.000000e+00> : vector<16x32xf32>
    %322 = tpu.matmul %321, %320, %cst_179 {dimension_numbers = #tpu.dot_dimension_numbers<[1], [0], [0], [1], [0, 0, 1, 1], [], []>} : vector<16x32xbf16>, vector<32x32xbf16>, vector<16x32xf32> -> vector<16x32xf32>
    %323 = arith.addf %318, %322 : vector<16x32xf32>
    %324 = vector.extract_strided_slice %16 {offsets = [3, 0], sizes = [1, 32], strides = [1, 1]} : vector<7x32xf32> to vector<1x32xf32>
    %325 = vector.broadcast %324 : vector<1x32xf32> to vector<16x32xf32>
    %326 = arith.addf %323, %325 : vector<16x32xf32>
    %cst_180 = arith.constant 0.000000e+00 : f32
    %327 = vector.broadcast %cst_180 : f32 to vector<16x32xf32>
    %328 = arith.maximumf %326, %327 : vector<16x32xf32>
    %c2_181 = arith.constant 2 : index
    %c0_182 = arith.constant 0 : index
    %c0_183 = arith.constant 0 : index
    %329 = vector.load %arg14[%c2_181, %c0_182, %c0_183] : memref<3x32x32xbf16, #tpu.memory_space<vmem>>, vector<1x32x32xbf16>
    %330 = vector.shape_cast %329 : vector<1x32x32xbf16> to vector<32x32xbf16>
    %331 = arith.truncf %328 : vector<16x32xf32> to vector<16x32xbf16>
    %cst_184 = arith.constant dense<0.000000e+00> : vector<16x32xf32>
    %332 = tpu.matmul %331, %330, %cst_184 {dimension_numbers = #tpu.dot_dimension_numbers<[1], [0], [0], [1], [0, 0, 1, 1], [], []>} : vector<16x32xbf16>, vector<32x32xbf16>, vector<16x32xf32> -> vector<16x32xf32>
    %333 = vector.extract_strided_slice %16 {offsets = [6, 0], sizes = [1, 32], strides = [1, 1]} : vector<7x32xf32> to vector<1x32xf32>
    %334 = vector.broadcast %333 : vector<1x32xf32> to vector<16x32xf32>
    %335 = arith.addf %332, %334 : vector<16x32xf32>
    %336 = arith.addf %299, %335 : vector<16x32xf32>
    %c0_185 = arith.constant 0 : index
    %c0_186 = arith.constant 0 : index
    %337 = vector.load %arg12[%c0_185, %c0_186] : memref<32x32xbf16, #tpu.memory_space<vmem>>, vector<32x32xbf16>
    %338 = arith.truncf %336 : vector<16x32xf32> to vector<16x32xbf16>
    %cst_187 = arith.constant dense<0.000000e+00> : vector<16x32xf32>
    %339 = tpu.matmul %338, %337, %cst_187 {dimension_numbers = #tpu.dot_dimension_numbers<[1], [0], [0], [1], [0, 0, 1, 1], [], []>} : vector<16x32xbf16>, vector<32x32xbf16>, vector<16x32xf32> -> vector<16x32xf32>
    %340 = vector.broadcast %15 : vector<1x32xf32> to vector<16x32xf32>
    %341 = arith.addf %339, %340 : vector<16x32xf32>
    %c0_188 = arith.constant 0 : index
    %c0_189 = arith.constant 0 : index
    %c0_190 = arith.constant 0 : index
    %342 = vector.load %arg18[%c0_188, %c0_189, %c0_190] : memref<1x16x32xf32, #tpu.memory_space<vmem>>, vector<1x16x32xf32>
    %343 = vector.shape_cast %342 : vector<1x16x32xf32> to vector<16x32xf32>
    %344 = vector.shape_cast %341 : vector<16x32xf32> to vector<1x16x32xf32>
    tpu.vector_store %arg18[%c0_188, %c0_189, %c0_190], %344 {strides = array<i32>} : memref<1x16x32xf32, #tpu.memory_space<vmem>>, vector<1x16x32xf32>,
    return
  }
  func.func @transform_0(%arg0: i32) -> (i32, i32, i32) {
    %c0_i32 = arith.constant 0 : i32
    %c0_i32_0 = arith.constant 0 : i32
    %c0_i32_1 = arith.constant 0 : i32
    return %arg0, %c0_i32, %c0_i32_0 : i32, i32, i32
  }
  func.func @transform_1(%arg0: i32) -> (i32, i32, i32) {
    %c0_i32 = arith.constant 0 : i32
    %c0_i32_0 = arith.constant 0 : i32
    %c0_i32_1 = arith.constant 0 : i32
    return %arg0, %c0_i32, %c0_i32_0 : i32, i32, i32
  }
  func.func @transform_2(%arg0: i32) -> (i32, i32, i32) {
    %c0_i32 = arith.constant 0 : i32
    %c0_i32_0 = arith.constant 0 : i32
    %c0_i32_1 = arith.constant 0 : i32
    return %arg0, %c0_i32, %c0_i32_0 : i32, i32, i32
  }
  func.func @transform_3(%arg0: i32) -> (i32, i32, i32) {
    %c0_i32 = arith.constant 0 : i32
    %c0_i32_0 = arith.constant 0 : i32
    %c0_i32_1 = arith.constant 0 : i32
    return %arg0, %c0_i32, %c0_i32_0 : i32, i32, i32
  }
  func.func @transform_4(%arg0: i32) -> (i32, i32, i32) {
    %c0_i32 = arith.constant 0 : i32
    %c0_i32_0 = arith.constant 0 : i32
    %c0_i32_1 = arith.constant 0 : i32
    %c0_i32_2 = arith.constant 0 : i32
    return %c0_i32, %c0_i32_0, %c0_i32_1 : i32, i32, i32
  }
  func.func @transform_5(%arg0: i32) -> (i32, i32, i32) {
    %c0_i32 = arith.constant 0 : i32
    %c0_i32_0 = arith.constant 0 : i32
    %c0_i32_1 = arith.constant 0 : i32
    %c0_i32_2 = arith.constant 0 : i32
    return %c0_i32, %c0_i32_0, %c0_i32_1 : i32, i32, i32
  }
  func.func @transform_6(%arg0: i32) -> (i32, i32) {
    %c0_i32 = arith.constant 0 : i32
    %c0_i32_0 = arith.constant 0 : i32
    %c0_i32_1 = arith.constant 0 : i32
    return %c0_i32, %c0_i32_0 : i32, i32
  }
  func.func @transform_7(%arg0: i32) -> (i32, i32) {
    %c0_i32 = arith.constant 0 : i32
    %c0_i32_0 = arith.constant 0 : i32
    %c0_i32_1 = arith.constant 0 : i32
    return %c0_i32, %c0_i32_0 : i32, i32
  }
  func.func @transform_8(%arg0: i32) -> (i32, i32) {
    %c0_i32 = arith.constant 0 : i32
    %c0_i32_0 = arith.constant 0 : i32
    %c0_i32_1 = arith.constant 0 : i32
    return %c0_i32, %c0_i32_0 : i32, i32
  }
  func.func @transform_9(%arg0: i32) -> (i32, i32, i32) {
    %c0_i32 = arith.constant 0 : i32
    %c0_i32_0 = arith.constant 0 : i32
    %c0_i32_1 = arith.constant 0 : i32
    %c0_i32_2 = arith.constant 0 : i32
    return %c0_i32, %c0_i32_0, %c0_i32_1 : i32, i32, i32
  }
  func.func @transform_10(%arg0: i32) -> (i32, i32) {
    %c0_i32 = arith.constant 0 : i32
    %c0_i32_0 = arith.constant 0 : i32
    %c0_i32_1 = arith.constant 0 : i32
    return %c0_i32, %c0_i32_0 : i32, i32
  }
  func.func @transform_11(%arg0: i32) -> (i32, i32) {
    %c0_i32 = arith.constant 0 : i32
    %c0_i32_0 = arith.constant 0 : i32
    %c0_i32_1 = arith.constant 0 : i32
    return %c0_i32, %c0_i32_0 : i32, i32
  }
  func.func @transform_12(%arg0: i32) -> (i32, i32, i32, i32) {
    %c0_i32 = arith.constant 0 : i32
    %c0_i32_0 = arith.constant 0 : i32
    %c0_i32_1 = arith.constant 0 : i32
    %c0_i32_2 = arith.constant 0 : i32
    %c0_i32_3 = arith.constant 0 : i32
    return %c0_i32, %c0_i32_0, %c0_i32_1, %c0_i32_2 : i32, i32, i32, i32
  }
  func.func @transform_13(%arg0: i32) -> (i32, i32, i32) {
    %c0_i32 = arith.constant 0 : i32
    %c0_i32_0 = arith.constant 0 : i32
    %c0_i32_1 = arith.constant 0 : i32
    %c0_i32_2 = arith.constant 0 : i32
    return %c0_i32, %c0_i32_0, %c0_i32_1 : i32, i32, i32
  }
  func.func @transform_14(%arg0: i32) -> (i32, i32) {
    %c0_i32 = arith.constant 0 : i32
    %c0_i32_0 = arith.constant 0 : i32
    %c0_i32_1 = arith.constant 0 : i32
    return %c0_i32, %c0_i32_0 : i32, i32
  }
  func.func @transform_15(%arg0: i32) -> (i32, i32) {
    %c0_i32 = arith.constant 0 : i32
    %c0_i32_0 = arith.constant 0 : i32
    %c0_i32_1 = arith.constant 0 : i32
    return %c0_i32, %c0_i32_0 : i32, i32
  }
  func.func @transform_16(%arg0: i32) -> (i32, i32, i32) {
    %c0_i32 = arith.constant 0 : i32
    %c0_i32_0 = arith.constant 0 : i32
    %c0_i32_1 = arith.constant 0 : i32
    return %arg0, %c0_i32, %c0_i32_0 : i32, i32, i32
  }
  func.func @transform_17(%arg0: i32) -> (i32, i32, i32) {
    %c0_i32 = arith.constant 0 : i32
    %c0_i32_0 = arith.constant 0 : i32
    %c0_i32_1 = arith.constant 0 : i32
    return %arg0, %c0_i32, %c0_i32_0 : i32, i32, i32
  }
  func.func @transform_18(%arg0: i32) -> (i32, i32, i32) {
    %c0_i32 = arith.constant 0 : i32
    %c0_i32_0 = arith.constant 0 : i32
    %c0_i32_1 = arith.constant 0 : i32
    return %arg0, %c0_i32, %c0_i32_0 : i32, i32, i32
  }
  func.func @transform_19(%arg0: i32) -> (i32, i32, i32) {
    %c0_i32 = arith.constant 0 : i32
    %c0_i32_0 = arith.constant 0 : i32
    %c0_i32_1 = arith.constant 0 : i32
    return %arg0, %c0_i32, %c0_i32_0 : i32, i32, i32
  }
}

</mosaic_0001>

<llo_original>
// kernel: update_block_forward.1
$region0: #{update_block_forward.1}
  #allocation0 [shape = 'u32[]', space=smem, size = 0x4, offset = 0x4, fixed_abs, tag = 'smem constant byte address 0x4 - core index']
  #allocation1 [shape = 'u32[72,128]{1,0:T(1,128)}', space=vmem, size = 0x9000, scoped, tag = 'internal scratch']
  %s0 = inlined_call_operand.hbm [shape: f32[2,16,32], index: 0, kind: input, shape index: {}]
  %s1 = inlined_call_operand.hbm [shape: f32[2,16,32], index: 1, kind: input, shape index: {}]
  %s2 = inlined_call_operand.hbm [shape: f32[2,8,32], index: 2, kind: input, shape index: {}]
  %s3 = inlined_call_operand.hbm [shape: f32[2,8,32], index: 3, kind: input, shape index: {}]
  %s4 = inlined_call_operand.hbm [shape: bf16[4,32,32], index: 4, kind: input, shape index: {}]
  %s5 = inlined_call_operand.hbm [shape: bf16[5,32,32], index: 5, kind: input, shape index: {}]
  %s6 = inlined_call_operand.hbm [shape: bf16[32,64], index: 6, kind: input, shape index: {}]
  %s7 = inlined_call_operand.vmem [shape: bf16[64,32], index: 7, kind: input, shape index: {}]
  %s8 = inlined_call_operand.vmem [shape: f32[1,64], index: 8, kind: input, shape index: {}]
  %s9 = inlined_call_operand.hbm [shape: bf16[4,32,32], index: 9, kind: input, shape index: {}]
  %s10 = inlined_call_operand.hbm [shape: bf16[32,32], index: 10, kind: input, shape index: {}]
  %s11 = inlined_call_operand.hbm [shape: bf16[32,32], index: 11, kind: input, shape index: {}]
  %s12 = inlined_call_operand.hbm [shape: bf16[3,3,32,32], index: 12, kind: input, shape index: {}]
  %s13 = inlined_call_operand.vmem [shape: bf16[3,32,32], index: 13, kind: input, shape index: {}]
  %s14 = inlined_call_operand.vmem [shape: f32[8,32], index: 14, kind: input, shape index: {}]
  %s15 = inlined_call_operand.hbm [shape: f32[7,32], index: 15, kind: input, shape index: {}]
  %s16 = inlined_call_operand.vmem [shape: f32[2,8,32], index: 16, kind: output, shape index: {0}]
  %s17 = inlined_call_operand.vmem [shape: f32[2,16,32], index: 17, kind: output, shape index: {1}]
  %s18 = inlined_call_operand.vmem [shape: f32[2,8,16], index: 18, kind: output, shape index: {2}]
  %s19 = inlined_call_operand.vmem [shape: f32[2,16,8], index: 19, kind: output, shape index: {3}]
  %20 = xla_tuple %s16, %s17, %s18, %s19
  %s21 = sld [smem:[#allocation0]]
  $region169: #{update_block_forward.1} parent=0
    _
  %s23 = ssub.s32 1, %s21
  %s24 = scalar_select 0, %s23, %s21
  $region1: #{update_block_forward.1} parent=0
    #allocation2 [shape = 'u8[16384]{0}', space=vmem, size = 0x4000, scoped, tag = 'input window, operand 0']
    #allocation3 [shape = 's32[2]{0}', space=sflag, size = 0x8, scoped, tag = 'scoped memory for update_block_forward.1']
    #allocation4 [shape = 'u8[16384]{0}', space=vmem, size = 0x4000, scoped, tag = 'input window, operand 1']
    #allocation5 [shape = 's32[2]{0}', space=sflag, size = 0x8, scoped, tag = 'scoped memory for update_block_forward.1']
    #allocation6 [shape = 'u8[8192]{0}', space=vmem, size = 0x2000, scoped, tag = 'input window, operand 2']
    #allocation7 [shape = 'u8[8192]{0}', space=vmem, size = 0x2000, scoped, tag = 'input window, operand 3']
    #allocation8 [shape = 's32[2]{0}', space=sflag, size = 0x8, scoped, tag = 'scoped memory for update_block_forward.1']
    #allocation9 [shape = 'u8[32768]{0}', space=vmem, size = 0x8000, scoped, tag = 'input window, operand 4, single buffered']
    #allocation10 [shape = 'u8[40960]{0}', space=vmem, size = 0xa000, scoped, tag = 'input window, operand 5, single buffered']
    #allocation11 [shape = 's32[1]{0}', space=sflag, size = 0x4, scoped, tag = 'scoped memory for update_block_forward.1']
    #allocation12 [shape = 'u8[8192]{0}', space=vmem, size = 0x2000, scoped, tag = 'input window, operand 6, single buffered']
    #allocation13 [shape = 'u8[32768]{0}', space=vmem, size = 0x8000, scoped, tag = 'input window, operand 9, single buffered']
    #allocation14 [shape = 's32[1]{0}', space=sflag, size = 0x4, scoped, tag = 'scoped memory for update_block_forward.1']
    #allocation15 [shape = 'u8[8192]{0}', space=vmem, size = 0x2000, scoped, tag = 'input window, operand 10, single buffered']
    #allocation16 [shape = 'u8[8192]{0}', space=vmem, size = 0x2000, scoped, tag = 'input window, operand 11, single buffered']
    #allocation17 [shape = 's32[1]{0}', space=sflag, size = 0x4, scoped, tag = 'scoped memory for update_block_forward.1']
    #allocation18 [shape = 'u8[73728]{0}', space=vmem, size = 0x12000, scoped, tag = 'input window, operand 12, single buffered']
    #allocation19 [shape = 'u8[4096]{0}', space=vmem, size = 0x1000, scoped, tag = 'input window, operand 15, single buffered']
    #allocation20 [shape = 's32[1]{0}', space=sflag, size = 0x4, scoped, tag = 'scoped memory for update_block_forward.1']
    %25 = vsyncpa [#allocation3], 0
    %s26 = scalar_lea.sflag [#allocation3], 1
    %27 = vsyncpa %s26, 0
    %28 = vsyncpa [#allocation5], 0
    %s29 = scalar_lea.sflag [#allocation5], 1
    %30 = vsyncpa %s29, 0
    %31 = vsyncpa [#allocation8], 0
    %s32 = scalar_lea.sflag [#allocation8], 1
    %33 = vsyncpa %s32, 0
    %34 = vsyncpa [#allocation11], 0
    %35 = vsyncpa [#allocation14], 0
    %36 = vsyncpa [#allocation17], 0
    %37 = vsyncpa [#allocation20], 0
    loop: start=0, step=1, limit=4
    $region2: #{update_block_forward.1} parent=1 // loop_pre_header
      _
    $region3: #{update_block_forward.1} parent=1 // loop_header
      %s39 = sphi 0, %s43
      %p40 = scmp.ge.s32.totalorder %s39, 4
      %s49 = sphi 0, %s51
      %s52 = sphi 0, %s49
      %s53 = sphi 0, %s52
      %s69 = sphi 0, %s53
      %s75 = sphi 0, %s77
      %s78 = sphi 0, %s75
      %s79 = sphi 0, %s78
      %s95 = sphi 0, %s79
      %s101 = sphi 0, %s103
      %s104 = sphi 0, %s101
      %s105 = sphi 0, %s104
      %s121 = sphi 0, %s105
      %s127 = sphi 0, %s129
      %s130 = sphi 0, %s127
      %s131 = sphi 0, %s130
      %s147 = sphi 0, %s131
      %s151 = sphi 0, %s151
      %s153 = sphi 0, %s151
      %s154 = sphi 0, %s153
      %s168 = sphi 0, %s154
      %s172 = sphi 0, %s172
      %s174 = sphi 0, %s172
      %s175 = sphi 0, %s174
      %s189 = sphi 0, %s175
      %s193 = sphi 0, %s193
      %s195 = sphi 0, %s193
      %s196 = sphi 0, %s195
      %s210 = sphi 0, %s196
      %s214 = sphi 0, %s214
      %s216 = sphi 0, %s214
      %s217 = sphi 0, %s216
      %s231 = sphi 0, %s217
      %s235 = sphi 0, %s235
      %s237 = sphi 0, %s235
      %s238 = sphi 0, %s237
      %s252 = sphi 0, %s238
      %s256 = sphi 0, %s256
      %s258 = sphi 0, %s256
      %s259 = sphi 0, %s258
      %s273 = sphi 0, %s259
      %s277 = sphi 0, %s277
      %s279 = sphi 0, %s277
      %s280 = sphi 0, %s279
      %s294 = sphi 0, %s280
      %s298 = sphi 0, %s298
      %s300 = sphi 0, %s298
      %s301 = sphi 0, %s300
      %s315 = sphi 0, %s301
      %s319 = sphi 0, %s319
      %s321 = sphi 0, %s319
      %s322 = sphi 0, %s321
      %s336 = sphi 0, %s322
      %s340 = sphi 0, %s340
      %s342 = sphi 0, %s340
      %s343 = sphi 0, %s342
      %s357 = sphi 0, %s343
      %s361 = sphi 0, %s361
      %s363 = sphi 0, %s361
      %s364 = sphi 0, %s363
      %s378 = sphi 0, %s364
      %s382 = sphi 0, %s382
      %s384 = sphi 0, %s382
      %s385 = sphi 0, %s384
      %s399 = sphi 0, %s385
      %s405 = sphi 0, %s407
      %s408 = sphi 0, %s405
      %s409 = sphi 0, %s408
      %s425 = sphi 0, %s409
      %s431 = sphi 0, %s433
      %s434 = sphi 0, %s431
      %s435 = sphi 0, %s434
      %s451 = sphi 0, %s435
      %s457 = sphi 0, %s459
      %s460 = sphi 0, %s457
      %s461 = sphi 0, %s460
      %s477 = sphi 0, %s461
      %s483 = sphi 0, %s485
      %s486 = sphi 0, %s483
      %s487 = sphi 0, %s486
      %s503 = sphi 0, %s487
    $region4: #{update_block_forward.1} parent=1 // loop_header_branch
      %42 = sbr.rel (%p40) target = $region8
    $region5: #{update_block_forward.1} parent=1 // loop_body
      %s44 = ssub.s32 %s39, 1
      %s45 = ssub.s32 %s39, 2
      %s46 = sadd.s32 %s39, 1
      %s47 = ssub.s32 %s39, %s46
      %p48 = scmp.eq.s32.totalorder %s47, 0
      %s50 = sadd.s32 %s49, 1
      %s51 = scalar_select %p48, %s49, %s50
      %p54 = pneg %p48
      %p55 = scmp.eq.s32.totalorder %s39, 1
      %p56 = por %p54, %p55
      %p57 = scmp.ne.s32.totalorder %s49, %s52
      %p58 = scmp.eq.s32.totalorder %s39, 0
      %p59 = por %p57, %p58
      %p60 = scmp.ne.s32.totalorder %s49, %s52
      %p61 = scmp.eq.s32.totalorder %s44, 1
      %p62 = por %p60, %p61
      %p63 = scmp.ne.s32.totalorder %s52, %s53
      %p64 = scmp.eq.s32.totalorder %s44, 0
      %p65 = por %p63, %p64
      %p66 = scmp.ne.s32.totalorder %s52, %s53
      %p67 = scmp.eq.s32.totalorder %s45, 1
      %p68 = por %p66, %p67
      %p70 = scmp.ne.s32.totalorder %s53, %s69
      %p71 = scmp.eq.s32.totalorder %s45, 0
      %p72 = por %p70, %p71
      %s73 = ssub.s32 %s39, %s46
      %p74 = scmp.eq.s32.totalorder %s73, 0
      %s76 = sadd.s32 %s75, 1
      %s77 = scalar_select %p74, %s75, %s76
      %p80 = pneg %p74
      %p81 = scmp.eq.s32.totalorder %s39, 1
      %p82 = por %p80, %p81
      %p83 = scmp.ne.s32.totalorder %s75, %s78
      %p84 = scmp.eq.s32.totalorder %s39, 0
      %p85 = por %p83, %p84
      %p86 = scmp.ne.s32.totalorder %s75, %s78
      %p87 = scmp.eq.s32.totalorder %s44, 1
      %p88 = por %p86, %p87
      %p89 = scmp.ne.s32.totalorder %s78, %s79
      %p90 = scmp.eq.s32.totalorder %s44, 0
      %p91 = por %p89, %p90
      %p92 = scmp.ne.s32.totalorder %s78, %s79
      %p93 = scmp.eq.s32.totalorder %s45, 1
      %p94 = por %p92, %p93
      %p96 = scmp.ne.s32.totalorder %s79, %s95
      %p97 = scmp.eq.s32.totalorder %s45, 0
      %p98 = por %p96, %p97
      %s99 = ssub.s32 %s39, %s46
      %p100 = scmp.eq.s32.totalorder %s99, 0
      %s102 = sadd.s32 %s101, 1
      %s103 = scalar_select %p100, %s101, %s102
      %p106 = pneg %p100
      %p107 = scmp.eq.s32.totalorder %s39, 1
      %p108 = por %p106, %p107
      %p109 = scmp.ne.s32.totalorder %s101, %s104
      %p110 = scmp.eq.s32.totalorder %s39, 0
      %p111 = por %p109, %p110
      %p112 = scmp.ne.s32.totalorder %s101, %s104
      %p113 = scmp.eq.s32.totalorder %s44, 1
      %p114 = por %p112, %p113
      %p115 = scmp.ne.s32.totalorder %s104, %s105
      %p116 = scmp.eq.s32.totalorder %s44, 0
      %p117 = por %p115, %p116
      %p118 = scmp.ne.s32.totalorder %s104, %s105
      %p119 = scmp.eq.s32.totalorder %s45, 1
      %p120 = por %p118, %p119
      %p122 = scmp.ne.s32.totalorder %s105, %s121
      %p123 = scmp.eq.s32.totalorder %s45, 0
      %p124 = por %p122, %p123
      %s125 = ssub.s32 %s39, %s46
      %p126 = scmp.eq.s32.totalorder %s125, 0
      %s128 = sadd.s32 %s127, 1
      %s129 = scalar_select %p126, %s127, %s128
      %p132 = pneg %p126
      %p133 = scmp.eq.s32.totalorder %s39, 1
      %p134 = por %p132, %p133
      %p135 = scmp.ne.s32.totalorder %s127, %s130
      %p136 = scmp.eq.s32.totalorder %s39, 0
      %p137 = por %p135, %p136
      %p138 = scmp.ne.s32.totalorder %s127, %s130
      %p139 = scmp.eq.s32.totalorder %s44, 1
      %p140 = por %p138, %p139
      %p141 = scmp.ne.s32.totalorder %s130, %s131
      %p142 = scmp.eq.s32.totalorder %s44, 0
      %p143 = por %p141, %p142
      %p144 = scmp.ne.s32.totalorder %s130, %s131
      %p145 = scmp.eq.s32.totalorder %s45, 1
      %p146 = por %p144, %p145
      %p148 = scmp.ne.s32.totalorder %s131, %s147
      %p149 = scmp.eq.s32.totalorder %s45, 0
      %p150 = por %p148, %p149
      %s152 = sadd.s32 %s151, 1
      %p155 = scmp.eq.s32.totalorder %s39, 1
      %p156 = scmp.ne.s32.totalorder %s151, %s153
      %p157 = scmp.eq.s32.totalorder %s39, 0
      %p158 = por %p156, %p157
      %p159 = scmp.ne.s32.totalorder %s151, %s153
      %p160 = scmp.eq.s32.totalorder %s44, 1
      %p161 = por %p159, %p160
      %p162 = scmp.ne.s32.totalorder %s153, %s154
      %p163 = scmp.eq.s32.totalorder %s44, 0
      %p164 = por %p162, %p163
      %p165 = scmp.ne.s32.totalorder %s153, %s154
      %p166 = scmp.eq.s32.totalorder %s45, 1
      %p167 = por %p165, %p166
      %p169 = scmp.ne.s32.totalorder %s154, %s168
      %p170 = scmp.eq.s32.totalorder %s45, 0
      %p171 = por %p169, %p170
      %s173 = sadd.s32 %s172, 1
      %p176 = scmp.eq.s32.totalorder %s39, 1
      %p177 = scmp.ne.s32.totalorder %s172, %s174
      %p178 = scmp.eq.s32.totalorder %s39, 0
      %p179 = por %p177, %p178
      %p180 = scmp.ne.s32.totalorder %s172, %s174
      %p181 = scmp.eq.s32.totalorder %s44, 1
      %p182 = por %p180, %p181
      %p183 = scmp.ne.s32.totalorder %s174, %s175
      %p184 = scmp.eq.s32.totalorder %s44, 0
      %p185 = por %p183, %p184
      %p186 = scmp.ne.s32.totalorder %s174, %s175
      %p187 = scmp.eq.s32.totalorder %s45, 1
      %p188 = por %p186, %p187
      %p190 = scmp.ne.s32.totalorder %s175, %s189
      %p191 = scmp.eq.s32.totalorder %s45, 0
      %p192 = por %p190, %p191
      %s194 = sadd.s32 %s193, 1
      %p197 = scmp.eq.s32.totalorder %s39, 1
      %p198 = scmp.ne.s32.totalorder %s193, %s195
      %p199 = scmp.eq.s32.totalorder %s39, 0
      %p200 = por %p198, %p199
      %p201 = scmp.ne.s32.totalorder %s193, %s195
      %p202 = scmp.eq.s32.totalorder %s44, 1
      %p203 = por %p201, %p202
      %p204 = scmp.ne.s32.totalorder %s195, %s196
      %p205 = scmp.eq.s32.totalorder %s44, 0
      %p206 = por %p204, %p205
      %p207 = scmp.ne.s32.totalorder %s195, %s196
      %p208 = scmp.eq.s32.totalorder %s45, 1
      %p209 = por %p207, %p208
      %p211 = scmp.ne.s32.totalorder %s196, %s210
      %p212 = scmp.eq.s32.totalorder %s45, 0
      %p213 = por %p211, %p212
      %s215 = sadd.s32 %s214, 1
      %p218 = scmp.eq.s32.totalorder %s39, 1
      %p219 = scmp.ne.s32.totalorder %s214, %s216
      %p220 = scmp.eq.s32.totalorder %s39, 0
      %p221 = por %p219, %p220
      %p222 = scmp.ne.s32.totalorder %s214, %s216
      %p223 = scmp.eq.s32.totalorder %s44, 1
      %p224 = por %p222, %p223
      %p225 = scmp.ne.s32.totalorder %s216, %s217
      %p226 = scmp.eq.s32.totalorder %s44, 0
      %p227 = por %p225, %p226
      %p228 = scmp.ne.s32.totalorder %s216, %s217
      %p229 = scmp.eq.s32.totalorder %s45, 1
      %p230 = por %p228, %p229
      %p232 = scmp.ne.s32.totalorder %s217, %s231
      %p233 = scmp.eq.s32.totalorder %s45, 0
      %p234 = por %p232, %p233
      %s236 = sadd.s32 %s235, 1
      %p239 = scmp.eq.s32.totalorder %s39, 1
      %p240 = scmp.ne.s32.totalorder %s235, %s237
      %p241 = scmp.eq.s32.totalorder %s39, 0
      %p242 = por %p240, %p241
      %p243 = scmp.ne.s32.totalorder %s235, %s237
      %p244 = scmp.eq.s32.totalorder %s44, 1
      %p245 = por %p243, %p244
      %p246 = scmp.ne.s32.totalorder %s237, %s238
      %p247 = scmp.eq.s32.totalorder %s44, 0
      %p248 = por %p246, %p247
      %p249 = scmp.ne.s32.totalorder %s237, %s238
      %p250 = scmp.eq.s32.totalorder %s45, 1
      %p251 = por %p249, %p250
      %p253 = scmp.ne.s32.totalorder %s238, %s252
      %p254 = scmp.eq.s32.totalorder %s45, 0
      %p255 = por %p253, %p254
      %s257 = sadd.s32 %s256, 1
      %p260 = scmp.eq.s32.totalorder %s39, 1
      %p261 = scmp.ne.s32.totalorder %s256, %s258
      %p262 = scmp.eq.s32.totalorder %s39, 0
      %p263 = por %p261, %p262
      %p264 = scmp.ne.s32.totalorder %s256, %s258
      %p265 = scmp.eq.s32.totalorder %s44, 1
      %p266 = por %p264, %p265
      %p267 = scmp.ne.s32.totalorder %s258, %s259
      %p268 = scmp.eq.s32.totalorder %s44, 0
      %p269 = por %p267, %p268
      %p270 = scmp.ne.s32.totalorder %s258, %s259
      %p271 = scmp.eq.s32.totalorder %s45, 1
      %p272 = por %p270, %p271
      %p274 = scmp.ne.s32.totalorder %s259, %s273
      %p275 = scmp.eq.s32.totalorder %s45, 0
      %p276 = por %p274, %p275
      %s278 = sadd.s32 %s277, 1
      %p281 = scmp.eq.s32.totalorder %s39, 1
      %p282 = scmp.ne.s32.totalorder %s277, %s279
      %p283 = scmp.eq.s32.totalorder %s39, 0
      %p284 = por %p282, %p283
      %p285 = scmp.ne.s32.totalorder %s277, %s279
      %p286 = scmp.eq.s32.totalorder %s44, 1
      %p287 = por %p285, %p286
      %p288 = scmp.ne.s32.totalorder %s279, %s280
      %p289 = scmp.eq.s32.totalorder %s44, 0
      %p290 = por %p288, %p289
      %p291 = scmp.ne.s32.totalorder %s279, %s280
      %p292 = scmp.eq.s32.totalorder %s45, 1
      %p293 = por %p291, %p292
      %p295 = scmp.ne.s32.totalorder %s280, %s294
      %p296 = scmp.eq.s32.totalorder %s45, 0
      %p297 = por %p295, %p296
      %s299 = sadd.s32 %s298, 1
      %p302 = scmp.eq.s32.totalorder %s39, 1
      %p303 = scmp.ne.s32.totalorder %s298, %s300
      %p304 = scmp.eq.s32.totalorder %s39, 0
      %p305 = por %p303, %p304
      %p306 = scmp.ne.s32.totalorder %s298, %s300
      %p307 = scmp.eq.s32.totalorder %s44, 1
      %p308 = por %p306, %p307
      %p309 = scmp.ne.s32.totalorder %s300, %s301
      %p310 = scmp.eq.s32.totalorder %s44, 0
      %p311 = por %p309, %p310
      %p312 = scmp.ne.s32.totalorder %s300, %s301
      %p313 = scmp.eq.s32.totalorder %s45, 1
      %p314 = por %p312, %p313
      %p316 = scmp.ne.s32.totalorder %s301, %s315
      %p317 = scmp.eq.s32.totalorder %s45, 0
      %p318 = por %p316, %p317
      %s320 = sadd.s32 %s319, 1
      %p323 = scmp.eq.s32.totalorder %s39, 1
      %p324 = scmp.ne.s32.totalorder %s319, %s321
      %p325 = scmp.eq.s32.totalorder %s39, 0
      %p326 = por %p324, %p325
      %p327 = scmp.ne.s32.totalorder %s319, %s321
      %p328 = scmp.eq.s32.totalorder %s44, 1
      %p329 = por %p327, %p328
      %p330 = scmp.ne.s32.totalorder %s321, %s322
      %p331 = scmp.eq.s32.totalorder %s44, 0
      %p332 = por %p330, %p331
      %p333 = scmp.ne.s32.totalorder %s321, %s322
      %p334 = scmp.eq.s32.totalorder %s45, 1
      %p335 = por %p333, %p334
      %p337 = scmp.ne.s32.totalorder %s322, %s336
      %p338 = scmp.eq.s32.totalorder %s45, 0
      %p339 = por %p337, %p338
      %s341 = sadd.s32 %s340, 1
      %p344 = scmp.eq.s32.totalorder %s39, 1
      %p345 = scmp.ne.s32.totalorder %s340, %s342
      %p346 = scmp.eq.s32.totalorder %s39, 0
      %p347 = por %p345, %p346
      %p348 = scmp.ne.s32.totalorder %s340, %s342
      %p349 = scmp.eq.s32.totalorder %s44, 1
      %p350 = por %p348, %p349
      %p351 = scmp.ne.s32.totalorder %s342, %s343
      %p352 = scmp.eq.s32.totalorder %s44, 0
      %p353 = por %p351, %p352
      %p354 = scmp.ne.s32.totalorder %s342, %s343
      %p355 = scmp.eq.s32.totalorder %s45, 1
      %p356 = por %p354, %p355
      %p358 = scmp.ne.s32.totalorder %s343, %s357
      %p359 = scmp.eq.s32.totalorder %s45, 0
      %p360 = por %p358, %p359
      %s362 = sadd.s32 %s361, 1
      %p365 = scmp.eq.s32.totalorder %s39, 1
      %p366 = scmp.ne.s32.totalorder %s361, %s363
      %p367 = scmp.eq.s32.totalorder %s39, 0
      %p368 = por %p366, %p367
      %p369 = scmp.ne.s32.totalorder %s361, %s363
      %p370 = scmp.eq.s32.totalorder %s44, 1
      %p371 = por %p369, %p370
      %p372 = scmp.ne.s32.totalorder %s363, %s364
      %p373 = scmp.eq.s32.totalorder %s44, 0
      %p374 = por %p372, %p373
      %p375 = scmp.ne.s32.totalorder %s363, %s364
      %p376 = scmp.eq.s32.totalorder %s45, 1
      %p377 = por %p375, %p376
      %p379 = scmp.ne.s32.totalorder %s364, %s378
      %p380 = scmp.eq.s32.totalorder %s45, 0
      %p381 = por %p379, %p380
      %s383 = sadd.s32 %s382, 1
      %p386 = scmp.eq.s32.totalorder %s39, 1
      %p387 = scmp.ne.s32.totalorder %s382, %s384
      %p388 = scmp.eq.s32.totalorder %s39, 0
      %p389 = por %p387, %p388
      %p390 = scmp.ne.s32.totalorder %s382, %s384
      %p391 = scmp.eq.s32.totalorder %s44, 1
      %p392 = por %p390, %p391
      %p393 = scmp.ne.s32.totalorder %s384, %s385
      %p394 = scmp.eq.s32.totalorder %s44, 0
      %p395 = por %p393, %p394
      %p396 = scmp.ne.s32.totalorder %s384, %s385
      %p397 = scmp.eq.s32.totalorder %s45, 1
      %p398 = por %p396, %p397
      %p400 = scmp.ne.s32.totalorder %s385, %s399
      %p401 = scmp.eq.s32.totalorder %s45, 0
      %p402 = por %p400, %p401
      %s403 = ssub.s32 %s39, %s46
      %p404 = scmp.eq.s32.totalorder %s403, 0
      %s406 = sadd.s32 %s405, 1
      %s407 = scalar_select %p404, %s405, %s406
      %p410 = pneg %p404
      %p411 = scmp.eq.s32.totalorder %s39, 1
      %p412 = por %p410, %p411
      %p413 = scmp.ne.s32.totalorder %s405, %s408
      %p414 = scmp.eq.s32.totalorder %s39, 0
      %p415 = por %p413, %p414
      %p416 = scmp.ne.s32.totalorder %s405, %s408
      %p417 = scmp.eq.s32.totalorder %s44, 1
      %p418 = por %p416, %p417
      %p419 = scmp.ne.s32.totalorder %s408, %s409
      %p420 = scmp.eq.s32.totalorder %s44, 0
      %p421 = por %p419, %p420
      %p422 = scmp.ne.s32.totalorder %s408, %s409
      %p423 = scmp.eq.s32.totalorder %s45, 1
      %p424 = por %p422, %p423
      %p426 = scmp.ne.s32.totalorder %s409, %s425
      %p427 = scmp.eq.s32.totalorder %s45, 0
      %p428 = por %p426, %p427
      %s429 = ssub.s32 %s39, %s46
      %p430 = scmp.eq.s32.totalorder %s429, 0
      %s432 = sadd.s32 %s431, 1
      %s433 = scalar_select %p430, %s431, %s432
      %p436 = pneg %p430
      %p437 = scmp.eq.s32.totalorder %s39, 1
      %p438 = por %p436, %p437
      %p439 = scmp.ne.s32.totalorder %s431, %s434
      %p440 = scmp.eq.s32.totalorder %s39, 0
      %p441 = por %p439, %p440
      %p442 = scmp.ne.s32.totalorder %s431, %s434
      %p443 = scmp.eq.s32.totalorder %s44, 1
      %p444 = por %p442, %p443
      %p445 = scmp.ne.s32.totalorder %s434, %s435
      %p446 = scmp.eq.s32.totalorder %s44, 0
      %p447 = por %p445, %p446
      %p448 = scmp.ne.s32.totalorder %s434, %s435
      %p449 = scmp.eq.s32.totalorder %s45, 1
      %p450 = por %p448, %p449
      %p452 = scmp.ne.s32.totalorder %s435, %s451
      %p453 = scmp.eq.s32.totalorder %s45, 0
      %p454 = por %p452, %p453
      %s455 = ssub.s32 %s39, %s46
      %p456 = scmp.eq.s32.totalorder %s455, 0
      %s458 = sadd.s32 %s457, 1
      %s459 = scalar_select %p456, %s457, %s458
      %p462 = pneg %p456
      %p463 = scmp.eq.s32.totalorder %s39, 1
      %p464 = por %p462, %p463
      %p465 = scmp.ne.s32.totalorder %s457, %s460
      %p466 = scmp.eq.s32.totalorder %s39, 0
      %p467 = por %p465, %p466
      %p468 = scmp.ne.s32.totalorder %s457, %s460
      %p469 = scmp.eq.s32.totalorder %s44, 1
      %p470 = por %p468, %p469
      %p471 = scmp.ne.s32.totalorder %s460, %s461
      %p472 = scmp.eq.s32.totalorder %s44, 0
      %p473 = por %p471, %p472
      %p474 = scmp.ne.s32.totalorder %s460, %s461
      %p475 = scmp.eq.s32.totalorder %s45, 1
      %p476 = por %p474, %p475
      %p478 = scmp.ne.s32.totalorder %s461, %s477
      %p479 = scmp.eq.s32.totalorder %s45, 0
      %p480 = por %p478, %p479
      %s481 = ssub.s32 %s39, %s46
      %p482 = scmp.eq.s32.totalorder %s481, 0
      %s484 = sadd.s32 %s483, 1
      %s485 = scalar_select %p482, %s483, %s484
      %p488 = pneg %p482
      %p489 = scmp.eq.s32.totalorder %s39, 1
      %p490 = por %p488, %p489
      %p491 = scmp.ne.s32.totalorder %s483, %s486
      %p492 = scmp.eq.s32.totalorder %s39, 0
      %p493 = por %p491, %p492
      %p494 = scmp.ne.s32.totalorder %s483, %s486
      %p495 = scmp.eq.s32.totalorder %s44, 1
      %p496 = por %p494, %p495
      %p497 = scmp.ne.s32.totalorder %s486, %s487
      %p498 = scmp.eq.s32.totalorder %s44, 0
      %p499 = por %p497, %p498
      %p500 = scmp.ne.s32.totalorder %s486, %s487
      %p501 = scmp.eq.s32.totalorder %s45, 1
      %p502 = por %p500, %p501
      %p504 = scmp.ne.s32.totalorder %s487, %s503
      %p505 = scmp.eq.s32.totalorder %s45, 0
      %p506 = por %p504, %p505
      %p507 = scmp.le.s32.totalorder 1, %s39
      %p508 = scmp.lt.s32.totalorder %s39, 3
      %p509 = pnand %p507, %p508
      %p510 = pneg %p509
      // Predicated region
      $region9: #{update_block_forward.1} parent=5 // pred_check
        _
      $region10: #{update_block_forward.1} parent=5 // pred_check_branch
        %512 = sbr.rel (%p509) target = $region12
      $region11: #{update_block_forward.1} parent=5 // pred_region
        %s513 = ssub.s32 %s39, 1
        // Predicated region
        $region13: #{update_block_forward.1} parent=11 // pred_check
          %p514 = pneg %p164
        $region14: #{update_block_forward.1} parent=11 // pred_check_branch
          %516 = sbr.rel (%p514) target = $region16
        $region15: #{update_block_forward.1} parent=11 // pred_region
          %518 = vsyncadd [#allocation8], 0
          %s519 = sshll.u32 %s4, 4
          %s520 = int_to_ptr.hbm [resolvable:$true] %s519
          %s521 = sshll.u32 [#allocation9], 4
          %s522 = int_to_ptr.vmem [resolvable:$true] %s521
          %527 = dma.hbm_to_vmem [thread:$0]  %s520, 1024, %s522, [#allocation8], 64, 64, 4
        $region16: #{update_block_forward.1} parent=11 // pred_fallthru
          _
        // Predicated region
        $region17: #{update_block_forward.1} parent=11 // pred_check
          %p528 = pneg %p185
        $region18: #{update_block_forward.1} parent=11 // pred_check_branch
          %530 = sbr.rel (%p528) target = $region20
        $region19: #{update_block_forward.1} parent=11 // pred_region
          %532 = vsyncadd [#allocation11], 0
          %s533 = sshll.u32 %s5, 4
          %s534 = int_to_ptr.hbm [resolvable:$true] %s533
          %s535 = sshll.u32 [#allocation10], 4
          %s536 = int_to_ptr.vmem [resolvable:$true] %s535
          %541 = dma.hbm_to_vmem [thread:$0]  %s534, 1280, %s536, [#allocation11], 64, 64, 4
        $region20: #{update_block_forward.1} parent=11 // pred_fallthru
          _
        // Predicated region
        $region21: #{update_block_forward.1} parent=11 // pred_check
          %p542 = pneg %p206
        $region22: #{update_block_forward.1} parent=11 // pred_check_branch
          %544 = sbr.rel (%p542) target = $region24
        $region23: #{update_block_forward.1} parent=11 // pred_region
          %546 = vsyncadd [#allocation11], 0
          %s547 = sshll.u32 %s6, 4
          %s548 = int_to_ptr.hbm [resolvable:$true] %s547
          %s549 = sshll.u32 [#allocation12], 4
          %s550 = int_to_ptr.vmem [resolvable:$true] %s549
          %555 = dma.hbm_to_vmem [thread:$0]  %s548, 256, %s550, [#allocation11], 64, 64, 4
        $region24: #{update_block_forward.1} parent=11 // pred_fallthru
          _
        // Predicated region
        $region25: #{update_block_forward.1} parent=11 // pred_check
          %p556 = pneg %p227
        $region26: #{update_block_forward.1} parent=11 // pred_check_branch
          %558 = sbr.rel (%p556) target = $region28
        $region27: #{update_block_forward.1} parent=11 // pred_region
          _
        $region28: #{update_block_forward.1} parent=11 // pred_fallthru
          _
        // Predicated region
        $region29: #{update_block_forward.1} parent=11 // pred_check
          %p559 = pneg %p248
        $region30: #{update_block_forward.1} parent=11 // pred_check_branch
          %561 = sbr.rel (%p559) target = $region32
        $region31: #{update_block_forward.1} parent=11 // pred_region
          _
        $region32: #{update_block_forward.1} parent=11 // pred_fallthru
          _
        // Predicated region
        $region33: #{update_block_forward.1} parent=11 // pred_check
          %p562 = pneg %p269
        $region34: #{update_block_forward.1} parent=11 // pred_check_branch
          %564 = sbr.rel (%p562) target = $region36
        $region35: #{update_block_forward.1} parent=11 // pred_region
          %566 = vsyncadd [#allocation14], 0
          %s567 = sshll.u32 %s9, 4
          %s568 = int_to_ptr.hbm [resolvable:$true] %s567
          %s569 = sshll.u32 [#allocation13], 4
          %s570 = int_to_ptr.vmem [resolvable:$true] %s569
          %575 = dma.hbm_to_vmem [thread:$0]  %s568, 1024, %s570, [#allocation14], 64, 64, 4
        $region36: #{update_block_forward.1} parent=11 // pred_fallthru
          _
        // Predicated region
        $region37: #{update_block_forward.1} parent=11 // pred_check
          %p576 = pneg %p290
        $region38: #{update_block_forward.1} parent=11 // pred_check_branch
          %578 = sbr.rel (%p576) target = $region40
        $region39: #{update_block_forward.1} parent=11 // pred_region
          %580 = vsyncadd [#allocation14], 0
          %s581 = sshll.u32 %s10, 4
          %s582 = int_to_ptr.hbm [resolvable:$true] %s581
          %s583 = sshll.u32 [#allocation15], 4
          %s584 = int_to_ptr.vmem [resolvable:$true] %s583
          %589 = dma.hbm_to_vmem [thread:$0]  %s582, 256, %s584, [#allocation14], 64, 64, 4
        $region40: #{update_block_forward.1} parent=11 // pred_fallthru
          _
        // Predicated region
        $region41: #{update_block_forward.1} parent=11 // pred_check
          %p590 = pneg %p311
        $region42: #{update_block_forward.1} parent=11 // pred_check_branch
          %592 = sbr.rel (%p590) target = $region44
        $region43: #{update_block_forward.1} parent=11 // pred_region
          %594 = vsyncadd [#allocation17], 0
          %s595 = sshll.u32 %s11, 4
          %s596 = int_to_ptr.hbm [resolvable:$true] %s595
          %s597 = sshll.u32 [#allocation16], 4
          %s598 = int_to_ptr.vmem [resolvable:$true] %s597
          %603 = dma.hbm_to_vmem [thread:$0]  %s596, 256, %s598, [#allocation17], 64, 64, 4
        $region44: #{update_block_forward.1} parent=11 // pred_fallthru
          _
        // Predicated region
        $region45: #{update_block_forward.1} parent=11 // pred_check
          %p604 = pneg %p332
        $region46: #{update_block_forward.1} parent=11 // pred_check_branch
          %606 = sbr.rel (%p604) target = $region48
        $region47: #{update_block_forward.1} parent=11 // pred_region
          %608 = vsyncadd [#allocation17], 0
          %s609 = sshll.u32 %s12, 4
          %s610 = int_to_ptr.hbm [resolvable:$true] %s609
          %s611 = sshll.u32 [#allocation18], 4
          %s612 = int_to_ptr.vmem [resolvable:$true] %s611
          %617 = dma.hbm_to_vmem [thread:$0]  %s610, 2304, %s612, [#allocation17], 64, 64, 4
        $region48: #{update_block_forward.1} parent=11 // pred_fallthru
          _
        // Predicated region
        $region49: #{update_block_forward.1} parent=11 // pred_check
          %p618 = pneg %p353
        $region50: #{update_block_forward.1} parent=11 // pred_check_branch
          %620 = sbr.rel (%p618) target = $region52
        $region51: #{update_block_forward.1} parent=11 // pred_region
          _
        $region52: #{update_block_forward.1} parent=11 // pred_fallthru
          _
        // Predicated region
        $region53: #{update_block_forward.1} parent=11 // pred_check
          %p621 = pneg %p374
        $region54: #{update_block_forward.1} parent=11 // pred_check_branch
          %623 = sbr.rel (%p621) target = $region56
        $region55: #{update_block_forward.1} parent=11 // pred_region
          _
        $region56: #{update_block_forward.1} parent=11 // pred_fallthru
          _
        // Predicated region
        $region57: #{update_block_forward.1} parent=11 // pred_check
          %p624 = pneg %p395
        $region58: #{update_block_forward.1} parent=11 // pred_check_branch
          %626 = sbr.rel (%p624) target = $region60
        $region59: #{update_block_forward.1} parent=11 // pred_region
          %628 = vsyncadd [#allocation20], 0
          %s630 = sshll.u32 %s15, 4
          %s631 = int_to_ptr.hbm [resolvable:$true] %s630
          %s632 = sshll.u32 [#allocation19], 4
          %s633 = int_to_ptr.vmem [resolvable:$true] %s632
          %635 = dma.hbm_to_vmem [thread:$0]  %s631, 128, %s633, [#allocation20]
        $region60: #{update_block_forward.1} parent=11 // pred_fallthru
          _
      $region12: #{update_block_forward.1} parent=5 // pred_fallthru
        _
      %p636 = scmp.lt.s32.totalorder %s39, 2
      // Predicated region
      $region61: #{update_block_forward.1} parent=5 // pred_check
        %p637 = pneg %p636
      $region62: #{update_block_forward.1} parent=5 // pred_check_branch
        %639 = sbr.rel (%p637) target = $region64
      $region63: #{update_block_forward.1} parent=5 // pred_region
        // Predicated region
        $region65: #{update_block_forward.1} parent=63 // pred_check
          %p640 = pneg %p59
        $region66: #{update_block_forward.1} parent=63 // pred_check_branch
          %642 = sbr.rel (%p640) target = $region68
        $region67: #{update_block_forward.1} parent=63 // pred_region
          %s643 = sand.u32 %s49, 1
          %s644 = scalar_lea.sflag [#allocation3], %s643
          %s645 = sand.u32 %s49, 1
          %s646 = smul.addr %s645, 16
          %s647 = scalar_lea.vmem [#allocation2], %s646
          %649 = vsyncadd %s644, 0
          %s650 = smul.addr %s39, 2
          %s651 = smul.addr %s650, 8
          %s652 = scalar_lea.hbm %s0, %s651
          %s653 = sshll.u32 %s652, 4
          %s654 = int_to_ptr.hbm [resolvable:$true] %s653
          %s655 = sshll.u32 %s647, 4
          %s656 = int_to_ptr.vmem [resolvable:$true] %s655
          %661 = dma.hbm_to_vmem [thread:$0]  %s654, 256, %s656, %s644, 128, 128, 8
        $region68: #{update_block_forward.1} parent=63 // pred_fallthru
          _
        // Predicated region
        $region69: #{update_block_forward.1} parent=63 // pred_check
          %p662 = pneg %p85
        $region70: #{update_block_forward.1} parent=63 // pred_check_branch
          %664 = sbr.rel (%p662) target = $region72
        $region71: #{update_block_forward.1} parent=63 // pred_region
          %s665 = sand.u32 %s39, 1
          %s666 = scalar_lea.sflag [#allocation5], %s665
          %s667 = sand.u32 %s75, 1
          %s668 = smul.addr %s667, 16
          %s669 = scalar_lea.vmem [#allocation4], %s668
          %671 = vsyncadd %s666, 0
          %s672 = smul.addr %s39, 2
          %s673 = smul.addr %s672, 8
          %s674 = scalar_lea.hbm %s1, %s673
          %s675 = sshll.u32 %s674, 4
          %s676 = int_to_ptr.hbm [resolvable:$true] %s675
          %s677 = sshll.u32 %s669, 4
          %s678 = int_to_ptr.vmem [resolvable:$true] %s677
          %683 = dma.hbm_to_vmem [thread:$0]  %s676, 256, %s678, %s666, 128, 128, 8
        $region72: #{update_block_forward.1} parent=63 // pred_fallthru
          _
        // Predicated region
        $region73: #{update_block_forward.1} parent=63 // pred_check
          %p684 = pneg %p111
        $region74: #{update_block_forward.1} parent=63 // pred_check_branch
          %686 = sbr.rel (%p684) target = $region76
        $region75: #{update_block_forward.1} parent=63 // pred_region
          %s687 = sand.u32 %s39, 1
          %s688 = scalar_lea.sflag [#allocation5], %s687
          %s689 = sand.u32 %s101, 1
          %s690 = smul.addr %s689, 8
          %s691 = scalar_lea.vmem [#allocation6], %s690
          %693 = vsyncadd %s688, 0
          %s694 = smul.addr %s39, 8
          %s695 = scalar_lea.hbm %s2, %s694
          %s697 = sshll.u32 %s695, 4
          %s698 = int_to_ptr.hbm [resolvable:$true] %s697
          %s699 = sshll.u32 %s691, 4
          %s700 = int_to_ptr.vmem [resolvable:$true] %s699
          %702 = dma.hbm_to_vmem [thread:$0]  %s698, 128, %s700, %s688
        $region76: #{update_block_forward.1} parent=63 // pred_fallthru
          _
        // Predicated region
        $region77: #{update_block_forward.1} parent=63 // pred_check
          %p703 = pneg %p137
        $region78: #{update_block_forward.1} parent=63 // pred_check_branch
          %705 = sbr.rel (%p703) target = $region80
        $region79: #{update_block_forward.1} parent=63 // pred_region
          %s706 = sand.u32 %s39, 1
          %s707 = scalar_lea.sflag [#allocation8], %s706
          %s708 = sand.u32 %s127, 1
          %s709 = smul.addr %s708, 8
          %s710 = scalar_lea.vmem [#allocation7], %s709
          %712 = vsyncadd %s707, 0
          %s713 = smul.addr %s39, 8
          %s714 = scalar_lea.hbm %s3, %s713
          %s716 = sshll.u32 %s714, 4
          %s717 = int_to_ptr.hbm [resolvable:$true] %s716
          %s718 = sshll.u32 %s710, 4
          %s719 = int_to_ptr.vmem [resolvable:$true] %s718
          %721 = dma.hbm_to_vmem [thread:$0]  %s717, 128, %s719, %s707
        $region80: #{update_block_forward.1} parent=63 // pred_fallthru
          _
      $region64: #{update_block_forward.1} parent=5 // pred_fallthru
        _
      %p722 = scmp.le.s32.totalorder 1, %s39
      %p723 = scmp.lt.s32.totalorder %s39, 3
      %p724 = pnand %p722, %p723
      %p725 = pneg %p724
      // Predicated region
      $region81: #{update_block_forward.1} parent=5 // pred_check
        _
      $region82: #{update_block_forward.1} parent=5 // pred_check_branch
        %727 = sbr.rel (%p724) target = $region84
      $region83: #{update_block_forward.1} parent=5 // pred_region
        %s728 = ssub.s32 %s39, 1
        %s729 = sand.u32 %s52, 1
        %s730 = scalar_lea.sflag [#allocation3], %s729
        %s731 = sand.u32 %s52, 1
        %s732 = smul.addr %s731, 16
        %s733 = scalar_lea.vmem [#allocation2], %s732
        // Predicated region
        $region85: #{update_block_forward.1} parent=83 // pred_check
          %p734 = pneg %p65
        $region86: #{update_block_forward.1} parent=83 // pred_check_branch
          %736 = sbr.rel (%p734) target = $region88
        $region87: #{update_block_forward.1} parent=83 // pred_region
          %738 = dma.done %s730, 256
        $region88: #{update_block_forward.1} parent=83 // pred_fallthru
          _
        %s739 = sand.u32 %s44, 1
        %s740 = scalar_lea.sflag [#allocation5], %s739
        %s741 = sand.u32 %s78, 1
        %s742 = smul.addr %s741, 16
        %s743 = scalar_lea.vmem [#allocation4], %s742
        // Predicated region
        $region89: #{update_block_forward.1} parent=83 // pred_check
          %p744 = pneg %p91
        $region90: #{update_block_forward.1} parent=83 // pred_check_branch
          %746 = sbr.rel (%p744) target = $region92
        $region91: #{update_block_forward.1} parent=83 // pred_region
          %748 = dma.done %s740, 256
        $region92: #{update_block_forward.1} parent=83 // pred_fallthru
          _
        %s749 = sand.u32 %s44, 1
        %s750 = scalar_lea.sflag [#allocation5], %s749
        %s751 = sand.u32 %s104, 1
        %s752 = smul.addr %s751, 8
        %s753 = scalar_lea.vmem [#allocation6], %s752
        // Predicated region
        $region93: #{update_block_forward.1} parent=83 // pred_check
          %p754 = pneg %p117
        $region94: #{update_block_forward.1} parent=83 // pred_check_branch
          %756 = sbr.rel (%p754) target = $region96
        $region95: #{update_block_forward.1} parent=83 // pred_region
          %758 = dma.done %s750, 128
        $region96: #{update_block_forward.1} parent=83 // pred_fallthru
          _
        %s759 = sand.u32 %s44, 1
        %s760 = scalar_lea.sflag [#allocation8], %s759
        %s761 = sand.u32 %s130, 1
        %s762 = smul.addr %s761, 8
        %s763 = scalar_lea.vmem [#allocation7], %s762
        // Predicated region
        $region97: #{update_block_forward.1} parent=83 // pred_check
          %p764 = pneg %p143
        $region98: #{update_block_forward.1} parent=83 // pred_check_branch
          %766 = sbr.rel (%p764) target = $region100
        $region99: #{update_block_forward.1} parent=83 // pred_region
          %768 = dma.done %s760, 128
        $region100: #{update_block_forward.1} parent=83 // pred_fallthru
          _
        // Predicated region
        $region101: #{update_block_forward.1} parent=83 // pred_check
          %p769 = pneg %p164
        $region102: #{update_block_forward.1} parent=83 // pred_check_branch
          %771 = sbr.rel (%p769) target = $region104
        $region103: #{update_block_forward.1} parent=83 // pred_region
          %773 = dma.done [#allocation8], 1024
        $region104: #{update_block_forward.1} parent=83 // pred_fallthru
          _
        // Predicated region
        $region105: #{update_block_forward.1} parent=83 // pred_check
          %p774 = pneg %p185
        $region106: #{update_block_forward.1} parent=83 // pred_check_branch
          %776 = sbr.rel (%p774) target = $region108
        $region107: #{update_block_forward.1} parent=83 // pred_region
          %778 = dma.done [#allocation11], 1280
        $region108: #{update_block_forward.1} parent=83 // pred_fallthru
          _
        // Predicated region
        $region109: #{update_block_forward.1} parent=83 // pred_check
          %p779 = pneg %p206
        $region110: #{update_block_forward.1} parent=83 // pred_check_branch
          %781 = sbr.rel (%p779) target = $region112
        $region111: #{update_block_forward.1} parent=83 // pred_region
          %783 = dma.done [#allocation11], 256
        $region112: #{update_block_forward.1} parent=83 // pred_fallthru
          _
        // Predicated region
        $region113: #{update_block_forward.1} parent=83 // pred_check
          %p784 = pneg %p269
        $region114: #{update_block_forward.1} parent=83 // pred_check_branch
          %786 = sbr.rel (%p784) target = $region116
        $region115: #{update_block_forward.1} parent=83 // pred_region
          %788 = dma.done [#allocation14], 1024
        $region116: #{update_block_forward.1} parent=83 // pred_fallthru
          _
        // Predicated region
        $region117: #{update_block_forward.1} parent=83 // pred_check
          %p789 = pneg %p290
        $region118: #{update_block_forward.1} parent=83 // pred_check_branch
          %791 = sbr.rel (%p789) target = $region120
        $region119: #{update_block_forward.1} parent=83 // pred_region
          %793 = dma.done [#allocation14], 256
        $region120: #{update_block_forward.1} parent=83 // pred_fallthru
          _
        // Predicated region
        $region121: #{update_block_forward.1} parent=83 // pred_check
          %p794 = pneg %p311
        $region122: #{update_block_forward.1} parent=83 // pred_check_branch
          %796 = sbr.rel (%p794) target = $region124
        $region123: #{update_block_forward.1} parent=83 // pred_region
          %798 = dma.done [#allocation17], 256
        $region124: #{update_block_forward.1} parent=83 // pred_fallthru
          _
        // Predicated region
        $region125: #{update_block_forward.1} parent=83 // pred_check
          %p799 = pneg %p332
        $region126: #{update_block_forward.1} parent=83 // pred_check_branch
          %801 = sbr.rel (%p799) target = $region128
        $region127: #{update_block_forward.1} parent=83 // pred_region
          %803 = dma.done [#allocation17], 2304
        $region128: #{update_block_forward.1} parent=83 // pred_fallthru
          _
        // Predicated region
        $region129: #{update_block_forward.1} parent=83 // pred_check
          %p804 = pneg %p395
        $region130: #{update_block_forward.1} parent=83 // pred_check_branch
          %806 = sbr.rel (%p804) target = $region132
        $region131: #{update_block_forward.1} parent=83 // pred_region
          %808 = dma.done [#allocation20], 128
        $region132: #{update_block_forward.1} parent=83 // pred_fallthru
          _
        %s809 = sand.u32 %s52, 1
        %s810 = scalar_lea.sflag [#allocation3], %s809
        %s811 = sand.u32 %s52, 1
        %s812 = smul.addr %s811, 16
        %s813 = scalar_lea.vmem [#allocation2], %s812
        %p814 = pneg %p65
        %p815 = pneg %p62
        %s816 = sand.u32 %s44, 1
        %s817 = scalar_lea.sflag [#allocation5], %s816
        %s818 = sand.u32 %s78, 1
        %s819 = smul.addr %s818, 16
        %s820 = scalar_lea.vmem [#allocation4], %s819
        %p821 = pneg %p91
        %p822 = pneg %p88
        %s823 = sand.u32 %s44, 1
        %s824 = scalar_lea.sflag [#allocation5], %s823
        %s825 = sand.u32 %s104, 1
        %s826 = smul.addr %s825, 8
        %s827 = scalar_lea.vmem [#allocation6], %s826
        %p828 = pneg %p117
        %p829 = pneg %p114
        %s830 = sand.u32 %s44, 1
        %s831 = scalar_lea.sflag [#allocation8], %s830
        %s832 = sand.u32 %s130, 1
        %s833 = smul.addr %s832, 8
        %s834 = scalar_lea.vmem [#allocation7], %s833
        %p835 = pneg %p143
        %p836 = pneg %p140
        %p837 = pneg %p164
        %p838 = pneg %p161
        %p839 = pneg %p185
        %p840 = pneg %p182
        %p841 = pneg %p206
        %p842 = pneg %p203
        %p843 = pneg %p227
        %p844 = pneg %p224
        %p845 = pneg %p248
        %p846 = pneg %p245
        %p847 = pneg %p269
        %p848 = pneg %p266
        %p849 = pneg %p290
        %p850 = pneg %p287
        %p851 = pneg %p311
        %p852 = pneg %p308
        %p853 = pneg %p332
        %p854 = pneg %p329
        %p855 = pneg %p353
        %p856 = pneg %p350
        %p857 = pneg %p374
        %p858 = pneg %p371
        %p859 = pneg %p395
        %p860 = pneg %p392
        %p861 = pneg %p421
        %p862 = pneg %p418
        %p863 = scmp.lt.s32.totalorder %s44, 1
        %s864 = scalar_select %p863, %s44, 1
        %s865 = smul.addr %s864, 8
        %s866 = scalar_lea.vmem %s16, %s865
        %p867 = pneg %p447
        %p868 = pneg %p444
        %p869 = scmp.lt.s32.totalorder %s44, 1
        %s870 = scalar_select %p869, %s44, 1
        %s871 = smul.addr %s870, 2
        %s872 = smul.addr %s871, 8
        %s873 = scalar_lea.vmem %s17, %s872
        %p874 = pneg %p473
        %p875 = pneg %p470
        %p876 = scmp.lt.s32.totalorder %s44, 1
        %s877 = scalar_select %p876, %s44, 1
        %s878 = smul.addr %s877, 8
        %s879 = scalar_lea.vmem %s18, %s878
        %p880 = pneg %p499
        %p881 = pneg %p496
        %p882 = scmp.lt.s32.totalorder %s44, 1
        %s883 = scalar_select %p882, %s44, 1
        %s884 = smul.addr %s883, 2
        %s885 = smul.addr %s884, 8
        %s886 = scalar_lea.vmem %s19, %s885
        %p887 = scmp.lt.s32.totalorder %s44, 1
        %s888 = scalar_select %p887, %s44, 1
        %s889 = smul.addr %s888, 8
        %s890 = scalar_lea.vmem %s16, %s889
        %p891 = scmp.lt.s32.totalorder %s44, 1
        %s892 = scalar_select %p891, %s44, 1
        %s893 = smul.addr %s892, 2
        %s894 = smul.addr %s893, 8
        %s895 = scalar_lea.vmem %s17, %s894
        %p896 = scmp.lt.s32.totalorder %s44, 1
        %s897 = scalar_select %p896, %s44, 1
        %s898 = smul.addr %s897, 8
        %s899 = scalar_lea.vmem %s18, %s898
        %p900 = scmp.lt.s32.totalorder %s44, 1
        %s901 = scalar_select %p900, %s44, 1
        %s902 = smul.addr %s901, 2
        %s903 = smul.addr %s902, 8
        %s904 = scalar_lea.vmem %s19, %s903
        %v906 = vld [vmem:[%s733] sm:$0xff]
        %v907 = vld [vmem:[%s733 + $0x8] sm:$0xff]
        %v908 = vld [vmem:[%s743] sm:$0xff]
        %v909 = vld [vmem:[%s743 + $0x8] sm:$0xff]
        %v910 = vld [vmem:[%s753] sm:$0xff]
        %v911 = vld [vmem:[%s763] sm:$0xff]
        %v912 = vld [vmem:[%s14] sm:$0xff]
        %v913 = vld [vmem:[#allocation19] sm:$0x7f]
        %v914 = vadd.f32 %v910, %v911
        %v915 = vld [vmem:[#allocation9] sm:$0xf]
        %v916 = vld [vmem:[#allocation9 + $0x4] sm:$0xf]
        %v917 = vld [vmem:[#allocation9 + $0x8] sm:$0xf]
        %v918 = vld [vmem:[#allocation9 + $0xc] sm:$0xf]
        %v919 = vpack.c.bf16 %v914, %v914
        %v924 = vunpack.c.l.b16 %v915
        %v925 = vunpack.c.l.b16 %v916
        %v926 = vunpack.c.l.b16 %v917
        %v927 = vunpack.c.l.b16 %v918
        %v928 = vpack.c.b16 %v925, %v924
        %v929 = vpack.c.b16 %v927, %v926
        %vm932 = vcmask 261120
        %v934 = vsel %vm932, %v919, 0
        %936 = vmatpush.bf16.msra.mxu0 0
        %937 = vmatpush.bf16.msra.mxu0 0
        %938 = vmatpush.bf16.msra.mxu0 0
        %939 = vmatpush.bf16.msra.mxu0 0
        %940 = vmatpush.bf16.msra.mxu0 0
        %941 = vmatpush.bf16.msra.mxu0 0
        %942 = vmatpush.bf16.msra.mxu0 %v929
        %943 = vmatpush.bf16.msra.mxu0 %v928
        %944 = vmatmul.bf16.gmra.mxu0 %v934
        %v945 = vpop.f32.mrf.mxu0
        %v946 = vadd.f32 0.0, %v945
        %v947 = vpop.f32.mrf.mxu0
        %948 = vdwg.mxu0
        %v949 = vmul.f32 %v946, 0.17677669
        %v950 = vadd.f32 %v906, %v908
        %v951 = vadd.f32 %v907, %v909
        %s952 = scalar_lea.vmem [#allocation9], 16
        %v953 = vld [vmem:[%s952] sm:$0xf]
        %v954 = vld [vmem:[%s952 + $0x4] sm:$0xf]
        %v955 = vld [vmem:[%s952 + $0x8] sm:$0xf]
        %v956 = vld [vmem:[%s952 + $0xc] sm:$0xf]
        %v957 = vpack.c.bf16 %v951, %v950
        %v962 = vunpack.c.l.b16 %v953
        %v963 = vunpack.c.l.b16 %v954
        %v964 = vunpack.c.l.b16 %v955
        %v965 = vunpack.c.l.b16 %v956
        %v966 = vpack.c.b16 %v963, %v962
        %v967 = vpack.c.b16 %v965, %v964
        %v971 = vsel %vm932, %v957, 0
        %973 = vmatpush.bf16.msra.mxu0 0
        %974 = vmatpush.bf16.msra.mxu0 0
        %975 = vmatpush.bf16.msra.mxu0 0
        %976 = vmatpush.bf16.msra.mxu0 0
        %977 = vmatpush.bf16.msra.mxu0 0
        %978 = vmatpush.bf16.msra.mxu0 0
        %979 = vmatpush.bf16.msra.mxu0 %v967
        %980 = vmatpush.bf16.msra.mxu0 %v966
        %981 = vmatmul.bf16.gmra.mxu0 %v971
        %v982 = vpop.f32.mrf.mxu0
        %v983 = vadd.f32 0.0, %v982
        %v984 = vpop.f32.mrf.mxu0
        %v985 = vadd.f32 0.0, %v984
        %986 = vdwg.mxu0
        %s987 = scalar_lea.vmem [#allocation9], 32
        %v988 = vld [vmem:[%s987] sm:$0xf]
        %v989 = vld [vmem:[%s987 + $0x4] sm:$0xf]
        %v990 = vld [vmem:[%s987 + $0x8] sm:$0xf]
        %v991 = vld [vmem:[%s987 + $0xc] sm:$0xf]
        %v992 = vpack.c.bf16 %v907, %v906
        %v997 = vunpack.c.l.b16 %v988
        %v998 = vunpack.c.l.b16 %v989
        %v999 = vunpack.c.l.b16 %v990
        %v1000 = vunpack.c.l.b16 %v991
        %v1001 = vpack.c.b16 %v998, %v997
        %v1002 = vpack.c.b16 %v1000, %v999
        %v1006 = vsel %vm932, %v992, 0
        %1008 = vmatpush.bf16.msra.mxu0 0
        %1009 = vmatpush.bf16.msra.mxu0 0
        %1010 = vmatpush.bf16.msra.mxu0 0
        %1011 = vmatpush.bf16.msra.mxu0 0
        %1012 = vmatpush.bf16.msra.mxu0 0
        %1013 = vmatpush.bf16.msra.mxu0 0
        %1014 = vmatpush.bf16.msra.mxu0 %v1002
        %1015 = vmatpush.bf16.msra.mxu0 %v1001
        %1016 = vmatmul.bf16.gmra.mxu0 %v1006
        %v1017 = vpop.f32.mrf.mxu0
        %v1018 = vadd.f32 0.0, %v1017
        %v1019 = vpop.f32.mrf.mxu0
        %v1020 = vadd.f32 0.0, %v1019
        %1021 = vdwg.mxu0
        %v1022 = vpack.c.bf16 %v949, %v949
        %v1023 = vpack.c.bf16 %v985, %v983
        %v1025 = vsel %vm932, %v1022, 0
        %v1028 = vsel %vm932, %v1023, 0
        %1030 = vmatpush.bf16.xpose.msra.mxu0 0
        %1031 = vmatpush.bf16.xpose.msra.mxu0 0
        %1032 = vmatpush.bf16.xpose.msra.mxu0 0
        %1033 = vmatpush.bf16.xpose.msra.mxu0 0
        %1034 = vmatpush.bf16.xpose.msra.mxu0 0
        %1035 = vmatpush.bf16.xpose.msra.mxu0 0
        %1036 = vmatpush.bf16.xpose.msra.mxu0 0
        %1037 = vmatpush.bf16.xpose.msra.mxu0 %v1028
        %1038 = vmatmul.bf16.gmra.mxu0 %v1025
        %v1039 = vpop.f32.mrf.mxu0
        %v1040 = vadd.f32 0.0, %v1039
        %v1041 = vpop.f32.mrf.mxu0
        %1042 = vdwg.mxu0
        %vm1043 = vcmask 130048
        %v1044 = vsel %vm1043, %v1040, -inf
        %1045 = vmax.xlane.f32.xlu0 %v1044
        %v1046 = vpop.xlane.xlu0 %1045
        %v1047 = vsub.f32 %v1040, %v1046
        %v1048 = vmul.f32 %v1047, 1.442695
        %v1049 = vpow.pop %v1048
        %v1050 = vsel %vm1043, %v1049, 0.0
        %1051 = vadd.xlane.f32.xlu0 %v1050
        %v1052 = vpop.xlane.xlu0 %1051
        %v1053 = vrcp.pop %v1052
        %v1054 = vmul.f32 %v1049, %v1053
        %v1055 = vpack.c.bf16 %v1054, %v1054
        %v1056 = vpack.c.bf16 %v1020, %v1018
        %v1058 = vsel %vm1043, %v1055, 0
        %1060 = vmatpush.bf16.msra.mxu0 0
        %1061 = vmatpush.bf16.msra.mxu0 0
        %1062 = vmatpush.bf16.msra.mxu0 0
        %1063 = vmatpush.bf16.msra.mxu0 0
        %1064 = vmatpush.bf16.msra.mxu0 0
        %1065 = vmatpush.bf16.msra.mxu0 0
        %1066 = vmatpush.bf16.msra.mxu0 0
        %1067 = vmatpush.bf16.msra.mxu0 %v1056
        %1068 = vmatmul.bf16.gmra.mxu0 %v1058
        %v1069 = vpop.f32.mrf.mxu0
        %v1070 = vadd.f32 0.0, %v1069
        %v1071 = vpop.f32.mrf.mxu0
        %1072 = vdwg.mxu0
        %s1073 = scalar_lea.vmem [#allocation9], 48
        %v1074 = vld [vmem:[%s1073] sm:$0xf]
        %v1075 = vld [vmem:[%s1073 + $0x4] sm:$0xf]
        %v1076 = vld [vmem:[%s1073 + $0x8] sm:$0xf]
        %v1077 = vld [vmem:[%s1073 + $0xc] sm:$0xf]
        %v1078 = vpack.c.bf16 %v1070, %v1070
        %v1083 = vunpack.c.l.b16 %v1074
        %v1084 = vunpack.c.l.b16 %v1075
        %v1085 = vunpack.c.l.b16 %v1076
        %v1086 = vunpack.c.l.b16 %v1077
        %v1087 = vpack.c.b16 %v1084, %v1083
        %v1088 = vpack.c.b16 %v1086, %v1085
        %v1092 = vsel %vm932, %v1078, 0
        %1094 = vmatpush.bf16.msra.mxu0 0
        %1095 = vmatpush.bf16.msra.mxu0 0
        %1096 = vmatpush.bf16.msra.mxu0 0
        %1097 = vmatpush.bf16.msra.mxu0 0
        %1098 = vmatpush.bf16.msra.mxu0 0
        %1099 = vmatpush.bf16.msra.mxu0 0
        %1100 = vmatpush.bf16.msra.mxu0 %v1088
        %1101 = vmatpush.bf16.msra.mxu0 %v1087
        %1102 = vmatmul.bf16.gmra.mxu0 %v1092
        %v1103 = vpop.f32.mrf.mxu0
        %v1104 = vadd.f32 0.0, %v1103
        %v1105 = vpop.f32.mrf.mxu0
        %1106 = vdwg.mxu0
        %1107 = vst.msk [vmem:[%s899] sm:$0xff] %vm1043, %v1040
        %v1108 = vadd.f32 %v1104, %v911
        %v1109 = vld [vmem:[#allocation10] sm:$0xf]
        %v1110 = vld [vmem:[#allocation10 + $0x4] sm:$0xf]
        %v1111 = vld [vmem:[#allocation10 + $0x8] sm:$0xf]
        %v1112 = vld [vmem:[#allocation10 + $0xc] sm:$0xf]
        %v1113 = vpack.c.bf16 %v1108, %v1108
        %v1118 = vunpack.c.l.b16 %v1109
        %v1119 = vunpack.c.l.b16 %v1110
        %v1120 = vunpack.c.l.b16 %v1111
        %v1121 = vunpack.c.l.b16 %v1112
        %v1122 = vpack.c.b16 %v1119, %v1118
        %v1123 = vpack.c.b16 %v1121, %v1120
        %v1127 = vsel %vm932, %v1113, 0
        %1129 = vmatpush.bf16.msra.mxu0 0
        %1130 = vmatpush.bf16.msra.mxu0 0
        %1131 = vmatpush.bf16.msra.mxu0 0
        %1132 = vmatpush.bf16.msra.mxu0 0
        %1133 = vmatpush.bf16.msra.mxu0 0
        %1134 = vmatpush.bf16.msra.mxu0 0
        %1135 = vmatpush.bf16.msra.mxu0 %v1123
        %1136 = vmatpush.bf16.msra.mxu0 %v1122
        %1137 = vmatmul.bf16.gmra.mxu0 %v1127
        %v1138 = vpop.f32.mrf.mxu0
        %v1139 = vadd.f32 0.0, %v1138
        %v1140 = vpop.f32.mrf.mxu0
        %1141 = vdwg.mxu0
        %v1142 = vmul.f32 %v1139, 0.17677669
        %s1143 = scalar_lea.vmem [#allocation10], 16
        %v1144 = vld [vmem:[%s1143] sm:$0xf]
        %v1145 = vld [vmem:[%s1143 + $0x4] sm:$0xf]
        %v1146 = vld [vmem:[%s1143 + $0x8] sm:$0xf]
        %v1147 = vld [vmem:[%s1143 + $0xc] sm:$0xf]
        %v1152 = vunpack.c.l.b16 %v1144
        %v1153 = vunpack.c.l.b16 %v1145
        %v1154 = vunpack.c.l.b16 %v1146
        %v1155 = vunpack.c.l.b16 %v1147
        %v1156 = vpack.c.b16 %v1153, %v1152
        %v1157 = vpack.c.b16 %v1155, %v1154
        %1160 = vmatpush.bf16.msra.mxu0 0
        %1161 = vmatpush.bf16.msra.mxu0 0
        %1162 = vmatpush.bf16.msra.mxu0 0
        %1163 = vmatpush.bf16.msra.mxu0 0
        %1164 = vmatpush.bf16.msra.mxu0 0
        %1165 = vmatpush.bf16.msra.mxu0 0
        %1166 = vmatpush.bf16.msra.mxu0 %v1157
        %1167 = vmatpush.bf16.msra.mxu0 %v1156
        %1168 = vmatmul.bf16.gmra.mxu0 %v1127
        %v1169 = vpop.f32.mrf.mxu0
        %v1170 = vadd.f32 0.0, %v1169
        %v1171 = vpop.f32.mrf.mxu0
        %1172 = vdwg.mxu0
        %s1173 = scalar_lea.vmem [#allocation10], 32
        %v1174 = vld [vmem:[%s1173] sm:$0xf]
        %v1175 = vld [vmem:[%s1173 + $0x4] sm:$0xf]
        %v1176 = vld [vmem:[%s1173 + $0x8] sm:$0xf]
        %v1177 = vld [vmem:[%s1173 + $0xc] sm:$0xf]
        %v1178 = vpack.c.bf16 %v1104, %v1104
        %v1183 = vunpack.c.l.b16 %v1174
        %v1184 = vunpack.c.l.b16 %v1175
        %v1185 = vunpack.c.l.b16 %v1176
        %v1186 = vunpack.c.l.b16 %v1177
        %v1187 = vpack.c.b16 %v1184, %v1183
        %v1188 = vpack.c.b16 %v1186, %v1185
        %v1192 = vsel %vm932, %v1178, 0
        %1194 = vmatpush.bf16.msra.mxu0 0
        %1195 = vmatpush.bf16.msra.mxu0 0
        %1196 = vmatpush.bf16.msra.mxu0 0
        %1197 = vmatpush.bf16.msra.mxu0 0
        %1198 = vmatpush.bf16.msra.mxu0 0
        %1199 = vmatpush.bf16.msra.mxu0 0
        %1200 = vmatpush.bf16.msra.mxu0 %v1188
        %1201 = vmatpush.bf16.msra.mxu0 %v1187
        %1202 = vmatmul.bf16.gmra.mxu0 %v1192
        %v1203 = vpop.f32.mrf.mxu0
        %v1204 = vadd.f32 0.0, %v1203
        %v1205 = vpop.f32.mrf.mxu0
        %1206 = vdwg.mxu0
        %v1207 = vpack.c.bf16 %v1142, %v1142
        %v1208 = vpack.c.bf16 %v1170, %v1170
        %v1210 = vsel %vm932, %v1207, 0
        %v1213 = vsel %vm932, %v1208, 0
        %1215 = vmatpush.bf16.xpose.msra.mxu0 0
        %1216 = vmatpush.bf16.xpose.msra.mxu0 0
        %1217 = vmatpush.bf16.xpose.msra.mxu0 0
        %1218 = vmatpush.bf16.xpose.msra.mxu0 0
        %1219 = vmatpush.bf16.xpose.msra.mxu0 0
        %1220 = vmatpush.bf16.xpose.msra.mxu0 0
        %1221 = vmatpush.bf16.xpose.msra.mxu0 0
        %1222 = vmatpush.bf16.xpose.msra.mxu0 %v1213
        %1223 = vmatmul.bf16.gmra.mxu0 %v1210
        %v1224 = vpop.f32.mrf.mxu0
        %v1225 = vadd.f32 0.0, %v1224
        %v1226 = vpop.f32.mrf.mxu0
        %1227 = vdwg.mxu0
        %vm1228 = vcmask 64512
        %v1229 = vsel %vm1228, %v1225, -inf
        %1230 = vmax.xlane.f32.xlu0 %v1229
        %v1231 = vpop.xlane.xlu0 %1230
        %v1232 = vsub.f32 %v1225, %v1231
        %v1233 = vmul.f32 %v1232, 1.442695
        %v1234 = vpow.pop %v1233
        %v1235 = vsel %vm1228, %v1234, 0.0
        %1236 = vadd.xlane.f32.xlu0 %v1235
        %v1237 = vpop.xlane.xlu0 %1236
        %v1238 = vrcp.pop %v1237
        %v1239 = vmul.f32 %v1234, %v1238
        %v1240 = vpack.c.bf16 %v1239, %v1239
        %v1241 = vpack.c.bf16 %v1204, %v1204
        %v1243 = vsel %vm1228, %v1240, 0
        %vm1245 = vcmask 1043456
        %v1247 = vsel %vm1245, %v1241, 0
        %1249 = vmatpush.bf16.msra.mxu0 0
        %1250 = vmatpush.bf16.msra.mxu0 0
        %1251 = vmatpush.bf16.msra.mxu0 0
        %1252 = vmatpush.bf16.msra.mxu0 0
        %1253 = vmatpush.bf16.msra.mxu0 0
        %1254 = vmatpush.bf16.msra.mxu0 0
        %1255 = vmatpush.bf16.msra.mxu0 0
        %1256 = vmatpush.bf16.msra.mxu0 %v1247
        %1257 = vmatmul.bf16.gmra.mxu0 %v1243
        %v1258 = vpop.f32.mrf.mxu0
        %v1259 = vadd.f32 0.0, %v1258
        %v1260 = vpop.f32.mrf.mxu0
        %1261 = vdwg.mxu0
        %s1262 = scalar_lea.vmem [#allocation10], 48
        %v1263 = vld [vmem:[%s1262] sm:$0xf]
        %v1264 = vld [vmem:[%s1262 + $0x4] sm:$0xf]
        %v1265 = vld [vmem:[%s1262 + $0x8] sm:$0xf]
        %v1266 = vld [vmem:[%s1262 + $0xc] sm:$0xf]
        %v1267 = vpack.c.bf16 %v1259, %v1259
        %v1272 = vunpack.c.l.b16 %v1263
        %v1273 = vunpack.c.l.b16 %v1264
        %v1274 = vunpack.c.l.b16 %v1265
        %v1275 = vunpack.c.l.b16 %v1266
        %v1276 = vpack.c.b16 %v1273, %v1272
        %v1277 = vpack.c.b16 %v1275, %v1274
        %v1281 = vsel %vm932, %v1267, 0
        %1283 = vmatpush.bf16.msra.mxu0 0
        %1284 = vmatpush.bf16.msra.mxu0 0
        %1285 = vmatpush.bf16.msra.mxu0 0
        %1286 = vmatpush.bf16.msra.mxu0 0
        %1287 = vmatpush.bf16.msra.mxu0 0
        %1288 = vmatpush.bf16.msra.mxu0 0
        %1289 = vmatpush.bf16.msra.mxu0 %v1277
        %1290 = vmatpush.bf16.msra.mxu0 %v1276
        %1291 = vmatmul.bf16.gmra.mxu0 %v1281
        %v1292 = vpop.f32.mrf.mxu0
        %v1293 = vadd.f32 0.0, %v1292
        %v1294 = vpop.f32.mrf.mxu0
        %1295 = vdwg.mxu0
        %v1296 = vadd.f32 %v1104, %v1293
        %v1297 = vsel %vm932, %v1296, 0.0
        %1298 = vadd.xlane.f32.xlu0 %v1297
        %v1299 = vpop.xlane.xlu0 %1298
        %v1300 = vrcp.pop 32.0
        %v1301 = vmul.f32 32.0, %v1300
        %v1302 = vsub.f32 1.0, %v1301
        %v1303 = vmul.f32 %v1300, %v1302
        %v1304 = vadd.f32 %v1300, %v1303
        %vm1305 = vweird.f32 %v1300
        %v1306 = vsel %vm1305, %v1300, %v1304
        %v1307 = vmul.f32 %v1299, %v1306
        %v1308 = vsub.f32 %v1296, %v1307
        %v1309 = vmul.f32 %v1308, %v1308
        %v1310 = vsel %vm932, %v1309, 0.0
        %1311 = vadd.xlane.f32.xlu0 %v1310
        %v1312 = vpop.xlane.xlu0 %1311
        %v1313 = vmul.f32 %v1312, %v1306
        %v1314 = vadd.f32 %v1313, 1e-05
        %v1315 = vrsqrt.pop %v1314
        %v1316 = vmul.f32 %v1315, %v1314
        %v1317 = vmul.f32 %v1316, %v1315
        %v1318 = vmul.f32 0.5, %v1317
        %v1319 = vsub.f32 1.5, %v1318
        %v1320 = vmul.f32 %v1315, %v1319
        %vm1321 = vweird.f32 %v1314
        %vm1322 = vweird.f32 %v1315
        %vm1323 = vmor %vm1321, %vm1322
        %v1324 = vsel %vm1323, %v1315, %v1320
        %v1325 = vmul.f32 %v1308, %v1324
        %v1326 = vperm.slane %v912, 0
        %v1327 = vmul.f32 %v1325, %v1326
        %v1328 = vperm.slane %v912, 1
        %v1329 = vadd.f32 %v1327, %v1328
        %v1330 = vld [vmem:[#allocation12] sm:$0xf]
        %v1331 = vld [vmem:[#allocation12 + $0x4] sm:$0xf]
        %v1332 = vld [vmem:[#allocation12 + $0x8] sm:$0xf]
        %v1333 = vld [vmem:[#allocation12 + $0xc] sm:$0xf]
        %v1334 = vpack.c.bf16 %v1329, %v1329
        %v1335 = vld [vmem:[%s8] sm:$0x1]
        %v1337 = vperm.slane %v1335, 0
        %v1343 = vunpack.c.l.b16 %v1330
        %v1344 = vunpack.c.l.b16 %v1331
        %v1345 = vunpack.c.l.b16 %v1332
        %v1346 = vunpack.c.l.b16 %v1333
        %v1347 = vpack.c.b16 %v1344, %v1343
        %v1348 = vpack.c.b16 %v1346, %v1345
        %v1352 = vsel %vm932, %v1334, 0
        %1354 = vmatpush.bf16.msra.mxu0 0
        %1355 = vmatpush.bf16.msra.mxu0 0
        %1356 = vmatpush.bf16.msra.mxu0 0
        %1357 = vmatpush.bf16.msra.mxu0 0
        %1358 = vmatpush.bf16.msra.mxu0 0
        %1359 = vmatpush.bf16.msra.mxu0 0
        %1360 = vmatpush.bf16.msra.mxu0 %v1348
        %1361 = vmatpush.bf16.msra.mxu0 %v1347
        %1362 = vmatmul.bf16.gmra.mxu0 %v1352
        %v1363 = vpop.f32.mrf.mxu0
        %v1364 = vadd.f32 %v1337, %v1363
        %v1365 = vpop.f32.mrf.mxu0
        %1366 = vdwg.mxu0
        %v1367 = vmax.f32 %v1364, 0.0
        %v1368 = vld [vmem:[%s7] sm:$0xf]
        %v1369 = vld [vmem:[%s7 + $0x4] sm:$0xf]
        %v1370 = vld [vmem:[%s7 + $0x8] sm:$0xf]
        %v1371 = vld [vmem:[%s7 + $0xc] sm:$0xf]
        %v1372 = vld [vmem:[%s7 + $0x10] sm:$0xf]
        %v1373 = vld [vmem:[%s7 + $0x14] sm:$0xf]
        %v1374 = vld [vmem:[%s7 + $0x18] sm:$0xf]
        %v1375 = vld [vmem:[%s7 + $0x1c] sm:$0xf]
        %v1376 = vpack.c.bf16 %v1367, %v1367
        %v1377 = vperm.slane %v912, 4
        %v1386 = vunpack.c.l.b16 %v1368
        %v1387 = vunpack.c.l.b16 %v1369
        %v1388 = vunpack.c.l.b16 %v1370
        %v1389 = vunpack.c.l.b16 %v1371
        %v1390 = vunpack.c.l.b16 %v1372
        %v1391 = vunpack.c.l.b16 %v1373
        %v1392 = vunpack.c.l.b16 %v1374
        %v1393 = vunpack.c.l.b16 %v1375
        %v1394 = vpack.c.b16 %v1387, %v1386
        %v1395 = vpack.c.b16 %v1389, %v1388
        %v1396 = vpack.c.b16 %v1391, %v1390
        %v1397 = vpack.c.b16 %v1393, %v1392
        %vm1402 = vcmask 523264
        %v1404 = vsel %vm1402, %v1376, 0
        %1406 = vmatpush.bf16.msra.mxu0 0
        %1407 = vmatpush.bf16.msra.mxu0 0
        %1408 = vmatpush.bf16.msra.mxu0 0
        %1409 = vmatpush.bf16.msra.mxu0 0
        %1410 = vmatpush.bf16.msra.mxu0 %v1397
        %1411 = vmatpush.bf16.msra.mxu0 %v1396
        %1412 = vmatpush.bf16.msra.mxu0 %v1395
        %1413 = vmatpush.bf16.msra.mxu0 %v1394
        %1414 = vmatmul.bf16.gmra.mxu0 %v1404
        %v1415 = vpop.f32.mrf.mxu0
        %v1416 = vadd.f32 %v1377, %v1415
        %v1417 = vpop.f32.mrf.mxu0
        %1418 = vdwg.mxu0
        %v1419 = vadd.f32 %v1329, %v1416
        %v1420 = vsel %vm932, %v1419, 0.0
        %1421 = vadd.xlane.f32.xlu0 %v1420
        %v1422 = vpop.xlane.xlu0 %1421
        %v1423 = vmul.f32 %v1422, %v1306
        %v1424 = vsub.f32 %v1419, %v1423
        %v1425 = vmul.f32 %v1424, %v1424
        %v1426 = vsel %vm932, %v1425, 0.0
        %1427 = vadd.xlane.f32.xlu0 %v1426
        %v1428 = vpop.xlane.xlu0 %1427
        %v1429 = vmul.f32 %v1428, %v1306
        %v1430 = vadd.f32 %v1429, 1e-05
        %v1431 = vrsqrt.pop %v1430
        %v1432 = vmul.f32 %v1431, %v1430
        %v1433 = vmul.f32 %v1432, %v1431
        %v1434 = vmul.f32 0.5, %v1433
        %v1435 = vsub.f32 1.5, %v1434
        %v1436 = vmul.f32 %v1431, %v1435
        %vm1437 = vweird.f32 %v1430
        %vm1438 = vweird.f32 %v1431
        %vm1439 = vmor %vm1437, %vm1438
        %v1440 = vsel %vm1439, %v1431, %v1436
        %v1441 = vmul.f32 %v1424, %v1440
        %v1442 = vperm.slane %v912, 2
        %v1443 = vmul.f32 %v1441, %v1442
        %v1444 = vperm.slane %v912, 3
        %v1445 = vadd.f32 %v1443, %v1444
        %s1446 = scalar_lea.vmem [#allocation10], 64
        %v1447 = vld [vmem:[%s1446] sm:$0xf]
        %v1448 = vld [vmem:[%s1446 + $0x4] sm:$0xf]
        %v1449 = vld [vmem:[%s1446 + $0x8] sm:$0xf]
        %v1450 = vld [vmem:[%s1446 + $0xc] sm:$0xf]
        %v1451 = vpack.c.bf16 %v1445, %v1445
        %v1452 = vperm.slane %v912, 5
        %v1457 = vunpack.c.l.b16 %v1447
        %v1458 = vunpack.c.l.b16 %v1448
        %v1459 = vunpack.c.l.b16 %v1449
        %v1460 = vunpack.c.l.b16 %v1450
        %v1461 = vpack.c.b16 %v1458, %v1457
        %v1462 = vpack.c.b16 %v1460, %v1459
        %v1466 = vsel %vm932, %v1451, 0
        %1468 = vmatpush.bf16.msra.mxu0 0
        %1469 = vmatpush.bf16.msra.mxu0 0
        %1470 = vmatpush.bf16.msra.mxu0 0
        %1471 = vmatpush.bf16.msra.mxu0 0
        %1472 = vmatpush.bf16.msra.mxu0 0
        %1473 = vmatpush.bf16.msra.mxu0 0
        %1474 = vmatpush.bf16.msra.mxu0 %v1462
        %1475 = vmatpush.bf16.msra.mxu0 %v1461
        %1476 = vmatmul.bf16.gmra.mxu0 %v1466
        %v1477 = vpop.f32.mrf.mxu0
        %v1478 = vadd.f32 %v1452, %v1477
        %v1479 = vpop.f32.mrf.mxu0
        %1480 = vdwg.mxu0
        %1481 = vst.msk [vmem:[%s890] sm:$0xff] %vm932, %v1478
        %v1482 = vlaneseq
        %v1483 = vand.u32 %v1482, 127
        %vm1484 = vcmp.ge.s32.totalorder %v1483, 26
        %v1485 = vsel %vm1484, %v1478, -inf
        %v1486 = vsel %vm932, %v1485, -inf
        %1487 = vmax.xlane.f32.xlu0 %v1486
        %v1488 = vpop.xlane.xlu0 %1487
        %v1489 = vsub.f32 %v1478, %v1488
        %v1490 = vsel %vm1484, %v1489, 0.0
        %v1491 = vmul.f32 %v1490, 1.442695
        %v1492 = vpow.pop %v1491
        %v1493 = vsel %vm1484, %v1492, 0.0
        %v1494 = vsel %vm932, %v1493, 0.0
        %1495 = vadd.xlane.f32.xlu0 %v1494
        %v1496 = vpop.xlane.xlu0 %1495
        %v1497 = vrcp.pop %v1496
        %v1498 = vmul.f32 %v1492, %v1497
        %v1499 = vsel %vm1484, %v1498, %v1478
        %v1500 = vld [vmem:[#allocation13] sm:$0xf]
        %v1501 = vld [vmem:[#allocation13 + $0x4] sm:$0xf]
        %v1502 = vld [vmem:[#allocation13 + $0x8] sm:$0xf]
        %v1503 = vld [vmem:[#allocation13 + $0xc] sm:$0xf]
        %v1508 = vunpack.c.l.b16 %v1500
        %v1509 = vunpack.c.l.b16 %v1501
        %v1510 = vunpack.c.l.b16 %v1502
        %v1511 = vunpack.c.l.b16 %v1503
        %v1512 = vpack.c.b16 %v1509, %v1508
        %v1513 = vpack.c.b16 %v1511, %v1510
        %1516 = vmatpush.bf16.msra.mxu0 0
        %1517 = vmatpush.bf16.msra.mxu0 0
        %1518 = vmatpush.bf16.msra.mxu0 0
        %1519 = vmatpush.bf16.msra.mxu0 0
        %1520 = vmatpush.bf16.msra.mxu0 0
        %1521 = vmatpush.bf16.msra.mxu0 0
        %1522 = vmatpush.bf16.msra.mxu0 %v1513
        %1523 = vmatpush.bf16.msra.mxu0 %v1512
        %1524 = vmatmul.bf16.gmra.mxu0 %v971
        %v1525 = vpop.f32.mrf.mxu0
        %v1526 = vadd.f32 0.0, %v1525
        %v1527 = vpop.f32.mrf.mxu0
        %v1528 = vadd.f32 0.0, %v1527
        %1529 = vdwg.mxu0
        %v1530 = vmul.f32 %v1526, 0.17677669
        %v1531 = vmul.f32 %v1528, 0.17677669
        %v1532 = vadd.f32 %v1499, %v911
        %s1533 = scalar_lea.vmem [#allocation13], 16
        %v1534 = vld [vmem:[%s1533] sm:$0xf]
        %v1535 = vld [vmem:[%s1533 + $0x4] sm:$0xf]
        %v1536 = vld [vmem:[%s1533 + $0x8] sm:$0xf]
        %v1537 = vld [vmem:[%s1533 + $0xc] sm:$0xf]
        %v1538 = vpack.c.bf16 %v1532, %v1532
        %v1543 = vunpack.c.l.b16 %v1534
        %v1544 = vunpack.c.l.b16 %v1535
        %v1545 = vunpack.c.l.b16 %v1536
        %v1546 = vunpack.c.l.b16 %v1537
        %v1547 = vpack.c.b16 %v1544, %v1543
        %v1548 = vpack.c.b16 %v1546, %v1545
        %v1552 = vsel %vm932, %v1538, 0
        %1554 = vmatpush.bf16.msra.mxu0 0
        %1555 = vmatpush.bf16.msra.mxu0 0
        %1556 = vmatpush.bf16.msra.mxu0 0
        %1557 = vmatpush.bf16.msra.mxu0 0
        %1558 = vmatpush.bf16.msra.mxu0 0
        %1559 = vmatpush.bf16.msra.mxu0 0
        %1560 = vmatpush.bf16.msra.mxu0 %v1548
        %1561 = vmatpush.bf16.msra.mxu0 %v1547
        %1562 = vmatmul.bf16.gmra.mxu0 %v1552
        %v1563 = vpop.f32.mrf.mxu0
        %v1564 = vadd.f32 0.0, %v1563
        %v1565 = vpop.f32.mrf.mxu0
        %1566 = vdwg.mxu0
        %s1567 = scalar_lea.vmem [#allocation13], 32
        %v1568 = vld [vmem:[%s1567] sm:$0xf]
        %v1569 = vld [vmem:[%s1567 + $0x4] sm:$0xf]
        %v1570 = vld [vmem:[%s1567 + $0x8] sm:$0xf]
        %v1571 = vld [vmem:[%s1567 + $0xc] sm:$0xf]
        %v1572 = vpack.c.bf16 %v1499, %v1499
        %v1577 = vunpack.c.l.b16 %v1568
        %v1578 = vunpack.c.l.b16 %v1569
        %v1579 = vunpack.c.l.b16 %v1570
        %v1580 = vunpack.c.l.b16 %v1571
        %v1581 = vpack.c.b16 %v1578, %v1577
        %v1582 = vpack.c.b16 %v1580, %v1579
        %v1586 = vsel %vm932, %v1572, 0
        %1588 = vmatpush.bf16.msra.mxu0 0
        %1589 = vmatpush.bf16.msra.mxu0 0
        %1590 = vmatpush.bf16.msra.mxu0 0
        %1591 = vmatpush.bf16.msra.mxu0 0
        %1592 = vmatpush.bf16.msra.mxu0 0
        %1593 = vmatpush.bf16.msra.mxu0 0
        %1594 = vmatpush.bf16.msra.mxu0 %v1582
        %1595 = vmatpush.bf16.msra.mxu0 %v1581
        %1596 = vmatmul.bf16.gmra.mxu0 %v1586
        %v1597 = vpop.f32.mrf.mxu0
        %v1598 = vadd.f32 0.0, %v1597
        %v1599 = vpop.f32.mrf.mxu0
        %1600 = vdwg.mxu0
        %v1601 = vpack.c.bf16 %v1531, %v1530
        %v1602 = vpack.c.bf16 %v1564, %v1564
        %v1604 = vsel %vm932, %v1601, 0
        %v1607 = vsel %vm932, %v1602, 0
        %1609 = vmatpush.bf16.xpose.msra.mxu0 0
        %1610 = vmatpush.bf16.xpose.msra.mxu0 0
        %1611 = vmatpush.bf16.xpose.msra.mxu0 0
        %1612 = vmatpush.bf16.xpose.msra.mxu0 0
        %1613 = vmatpush.bf16.xpose.msra.mxu0 0
        %1614 = vmatpush.bf16.xpose.msra.mxu0 0
        %1615 = vmatpush.bf16.xpose.msra.mxu0 0
        %1616 = vmatpush.bf16.xpose.msra.mxu0 %v1607
        %1617 = vmatmul.bf16.gmra.mxu0 %v1604
        %v1618 = vpop.f32.mrf.mxu0
        %v1619 = vadd.f32 0.0, %v1618
        %v1620 = vpop.f32.mrf.mxu0
        %v1621 = vadd.f32 0.0, %v1620
        %1622 = vdwg.mxu0
        %v1623 = vsel %vm1228, %v1619, -inf
        %1624 = vmax.xlane.f32.xlu0 %v1623
        %v1625 = vpop.xlane.xlu0 %1624
        %v1626 = vsel %vm1228, %v1621, -inf
        %1627 = vmax.xlane.f32.xlu0 %v1626
        %v1628 = vpop.xlane.xlu0 %1627
        %v1629 = vsub.f32 %v1619, %v1625
        %v1630 = vsub.f32 %v1621, %v1628
        %v1631 = vmul.f32 %v1629, 1.442695
        %v1632 = vpow.pop %v1631
        %v1633 = vmul.f32 %v1630, 1.442695
        %v1634 = vpow.pop %v1633
        %v1635 = vsel %vm1228, %v1632, 0.0
        %1636 = vadd.xlane.f32.xlu0 %v1635
        %v1637 = vpop.xlane.xlu0 %1636
        %v1638 = vsel %vm1228, %v1634, 0.0
        %1639 = vadd.xlane.f32.xlu0 %v1638
        %v1640 = vpop.xlane.xlu0 %1639
        %v1641 = vrcp.pop %v1637
        %v1642 = vrcp.pop %v1640
        %v1643 = vmul.f32 %v1632, %v1641
        %v1644 = vmul.f32 %v1634, %v1642
        %v1645 = vpack.c.bf16 %v1644, %v1643
        %v1646 = vpack.c.bf16 %v1598, %v1598
        %v1648 = vsel %vm1228, %v1645, 0
        %v1651 = vsel %vm1245, %v1646, 0
        %1653 = vmatpush.bf16.msra.mxu0 0
        %1654 = vmatpush.bf16.msra.mxu0 0
        %1655 = vmatpush.bf16.msra.mxu0 0
        %1656 = vmatpush.bf16.msra.mxu0 0
        %1657 = vmatpush.bf16.msra.mxu0 0
        %1658 = vmatpush.bf16.msra.mxu0 0
        %1659 = vmatpush.bf16.msra.mxu0 0
        %1660 = vmatpush.bf16.msra.mxu0 %v1651
        %1661 = vmatmul.bf16.gmra.mxu0 %v1648
        %v1662 = vpop.f32.mrf.mxu0
        %v1663 = vadd.f32 0.0, %v1662
        %v1664 = vpop.f32.mrf.mxu0
        %v1665 = vadd.f32 0.0, %v1664
        %1666 = vdwg.mxu0
        %s1667 = scalar_lea.vmem [#allocation13], 48
        %v1668 = vld [vmem:[%s1667] sm:$0xf]
        %v1669 = vld [vmem:[%s1667 + $0x4] sm:$0xf]
        %v1670 = vld [vmem:[%s1667 + $0x8] sm:$0xf]
        %v1671 = vld [vmem:[%s1667 + $0xc] sm:$0xf]
        %v1672 = vpack.c.bf16 %v1665, %v1663
        %v1677 = vunpack.c.l.b16 %v1668
        %v1678 = vunpack.c.l.b16 %v1669
        %v1679 = vunpack.c.l.b16 %v1670
        %v1680 = vunpack.c.l.b16 %v1671
        %v1681 = vpack.c.b16 %v1678, %v1677
        %v1682 = vpack.c.b16 %v1680, %v1679
        %v1686 = vsel %vm932, %v1672, 0
        %1688 = vmatpush.bf16.msra.mxu0 0
        %1689 = vmatpush.bf16.msra.mxu0 0
        %1690 = vmatpush.bf16.msra.mxu0 0
        %1691 = vmatpush.bf16.msra.mxu0 0
        %1692 = vmatpush.bf16.msra.mxu0 0
        %1693 = vmatpush.bf16.msra.mxu0 0
        %1694 = vmatpush.bf16.msra.mxu0 %v1682
        %1695 = vmatpush.bf16.msra.mxu0 %v1681
        %1696 = vmatmul.bf16.gmra.mxu0 %v1686
        %v1697 = vpop.f32.mrf.mxu0
        %v1698 = vadd.f32 0.0, %v1697
        %v1699 = vpop.f32.mrf.mxu0
        %v1700 = vadd.f32 0.0, %v1699
        %1701 = vdwg.mxu0
        %1702 = vst.msk [vmem:[%s904] sm:$0xff] %vm1228, %v1619
        %1703 = vst.msk [vmem:[%s904 + $0x8] sm:$0xff] %vm1228, %v1621
        %v1704 = vld [vmem:[#allocation15] sm:$0xf]
        %v1705 = vld [vmem:[#allocation15 + $0x4] sm:$0xf]
        %v1706 = vld [vmem:[#allocation15 + $0x8] sm:$0xf]
        %v1707 = vld [vmem:[#allocation15 + $0xc] sm:$0xf]
        %v1708 = vpack.c.bf16 %v1700, %v1698
        %v1709 = vperm.slane %v913, 0
        %v1714 = vunpack.c.l.b16 %v1704
        %v1715 = vunpack.c.l.b16 %v1705
        %v1716 = vunpack.c.l.b16 %v1706
        %v1717 = vunpack.c.l.b16 %v1707
        %v1718 = vpack.c.b16 %v1715, %v1714
        %v1719 = vpack.c.b16 %v1717, %v1716
        %v1723 = vsel %vm932, %v1708, 0
        %1725 = vmatpush.bf16.msra.mxu0 0
        %1726 = vmatpush.bf16.msra.mxu0 0
        %1727 = vmatpush.bf16.msra.mxu0 0
        %1728 = vmatpush.bf16.msra.mxu0 0
        %1729 = vmatpush.bf16.msra.mxu0 0
        %1730 = vmatpush.bf16.msra.mxu0 0
        %1731 = vmatpush.bf16.msra.mxu0 %v1719
        %1732 = vmatpush.bf16.msra.mxu0 %v1718
        %1733 = vmatmul.bf16.gmra.mxu0 %v1723
        %v1734 = vpop.f32.mrf.mxu0
        %v1735 = vadd.f32 %v1709, %v1734
        %v1736 = vpop.f32.mrf.mxu0
        %v1737 = vadd.f32 %v1709, %v1736
        %1738 = vdwg.mxu0
        %v1739 = vlaneseq
        %v1740 = vshrl.u32 %v1739, 7
        %v1741 = vadd.s32 %v1740, 8
        %vm1742 = vcmp.ge.s32.totalorder %v1740, 1
        %vm1743 = vcmp.ge.s32.totalorder %v1741, 1
        %v1744 = vrot.slane %v1735, 7
        %v1745 = vrot.slane %v1737, 7
        %vm1746 = vcmp.lt.s32.totalorder %v1740, 1
        %v1747 = vsel %vm1746, %v1744, %v1745
        %v1748 = vsel %vm1746, %v1745, %v1744
        %v1749 = vsel %vm1742, %v1748, 0.0
        %v1750 = vsel %vm1743, %v1747, 0.0
        %vm1751 = vcmp.lt.s32.totalorder %v1740, 15
        %vm1752 = vcmp.lt.s32.totalorder %v1741, 15
        %v1753 = vrot.slane %v1735, 1
        %v1754 = vrot.slane %v1737, 1
        %vm1755 = vcmp.lt.s32.totalorder %v1740, 7
        %v1756 = vsel %vm1755, %v1753, %v1754
        %v1757 = vsel %vm1755, %v1754, %v1753
        %v1758 = vsel %vm1751, %v1756, 0.0
        %v1759 = vsel %vm1752, %v1757, 0.0
        %v1760 = vld [vmem:[#allocation18] sm:$0xf]
        %v1761 = vld [vmem:[#allocation18 + $0x4] sm:$0xf]
        %v1762 = vld [vmem:[#allocation18 + $0x8] sm:$0xf]
        %v1763 = vld [vmem:[#allocation18 + $0xc] sm:$0xf]
        %v1764 = vpack.c.bf16 %v1750, %v1749
        %s1765 = scalar_lea.vmem [#allocation18], 16
        %v1766 = vld [vmem:[%s1765] sm:$0xf]
        %v1767 = vld [vmem:[%s1765 + $0x4] sm:$0xf]
        %v1768 = vld [vmem:[%s1765 + $0x8] sm:$0xf]
        %v1769 = vld [vmem:[%s1765 + $0xc] sm:$0xf]
        %v1770 = vpack.c.bf16 %v1737, %v1735
        %v1775 = vunpack.c.l.b16 %v1766
        %v1776 = vunpack.c.l.b16 %v1767
        %v1777 = vunpack.c.l.b16 %v1768
        %v1778 = vunpack.c.l.b16 %v1769
        %v1779 = vpack.c.b16 %v1776, %v1775
        %v1780 = vpack.c.b16 %v1778, %v1777
        %v1784 = vsel %vm932, %v1770, 0
        %1786 = vmatpush.bf16.msra.mxu0 0
        %1787 = vmatpush.bf16.msra.mxu0 0
        %1788 = vmatpush.bf16.msra.mxu0 0
        %1789 = vmatpush.bf16.msra.mxu0 0
        %1790 = vmatpush.bf16.msra.mxu0 0
        %1791 = vmatpush.bf16.msra.mxu0 0
        %1792 = vmatpush.bf16.msra.mxu0 %v1780
        %1793 = vmatpush.bf16.msra.mxu0 %v1779
        %1794 = vmatmul.bf16.gmra.mxu0 %v1784
        %v1795 = vpop.f32.mrf.mxu0
        %v1796 = vadd.f32 0.0, %v1795
        %v1797 = vpop.f32.mrf.mxu0
        %v1798 = vadd.f32 0.0, %v1797
        %1799 = vdwg.mxu0
        %v1804 = vunpack.c.l.b16 %v1760
        %v1805 = vunpack.c.l.b16 %v1761
        %v1806 = vunpack.c.l.b16 %v1762
        %v1807 = vunpack.c.l.b16 %v1763
        %v1808 = vpack.c.b16 %v1805, %v1804
        %v1809 = vpack.c.b16 %v1807, %v1806
        %v1813 = vsel %vm932, %v1764, 0
        %1815 = vmatpush.bf16.msra.mxu0 0
        %1816 = vmatpush.bf16.msra.mxu0 0
        %1817 = vmatpush.bf16.msra.mxu0 0
        %1818 = vmatpush.bf16.msra.mxu0 0
        %1819 = vmatpush.bf16.msra.mxu0 0
        %1820 = vmatpush.bf16.msra.mxu0 0
        %1821 = vmatpush.bf16.msra.mxu0 %v1809
        %1822 = vmatpush.bf16.msra.mxu0 %v1808
        %1823 = vmatmul.bf16.gmra.mxu0 %v1813
        %v1824 = vpop.f32.mrf.mxu0
        %v1825 = vadd.f32 %v1796, %v1824
        %v1826 = vpop.f32.mrf.mxu0
        %v1827 = vadd.f32 %v1798, %v1826
        %1828 = vdwg.mxu0
        %s1829 = scalar_lea.vmem [#allocation18], 32
        %v1830 = vld [vmem:[%s1829] sm:$0xf]
        %v1831 = vld [vmem:[%s1829 + $0x4] sm:$0xf]
        %v1832 = vld [vmem:[%s1829 + $0x8] sm:$0xf]
        %v1833 = vld [vmem:[%s1829 + $0xc] sm:$0xf]
        %v1834 = vpack.c.bf16 %v1759, %v1758
        %v1839 = vunpack.c.l.b16 %v1830
        %v1840 = vunpack.c.l.b16 %v1831
        %v1841 = vunpack.c.l.b16 %v1832
        %v1842 = vunpack.c.l.b16 %v1833
        %v1843 = vpack.c.b16 %v1840, %v1839
        %v1844 = vpack.c.b16 %v1842, %v1841
        %v1848 = vsel %vm932, %v1834, 0
        %1850 = vmatpush.bf16.msra.mxu0 0
        %1851 = vmatpush.bf16.msra.mxu0 0
        %1852 = vmatpush.bf16.msra.mxu0 0
        %1853 = vmatpush.bf16.msra.mxu0 0
        %1854 = vmatpush.bf16.msra.mxu0 0
        %1855 = vmatpush.bf16.msra.mxu0 0
        %1856 = vmatpush.bf16.msra.mxu0 %v1844
        %1857 = vmatpush.bf16.msra.mxu0 %v1843
        %1858 = vmatmul.bf16.gmra.mxu0 %v1848
        %v1859 = vpop.f32.mrf.mxu0
        %v1860 = vadd.f32 0.0, %v1859
        %v1861 = vpop.f32.mrf.mxu0
        %v1862 = vadd.f32 0.0, %v1861
        %1863 = vdwg.mxu0
        %v1864 = vadd.f32 %v1825, %v1860
        %v1865 = vadd.f32 %v1827, %v1862
        %v1866 = vperm.slane %v913, 1
        %v1867 = vadd.f32 %v1864, %v1866
        %v1868 = vadd.f32 %v1865, %v1866
        %v1869 = vmax.f32 %v1867, 0.0
        %v1870 = vmax.f32 %v1868, 0.0
        %v1871 = vld [vmem:[%s13] sm:$0xf]
        %v1872 = vld [vmem:[%s13 + $0x4] sm:$0xf]
        %v1873 = vld [vmem:[%s13 + $0x8] sm:$0xf]
        %v1874 = vld [vmem:[%s13 + $0xc] sm:$0xf]
        %v1875 = vpack.c.bf16 %v1870, %v1869
        %v1876 = vperm.slane %v913, 4
        %v1881 = vunpack.c.l.b16 %v1871
        %v1882 = vunpack.c.l.b16 %v1872
        %v1883 = vunpack.c.l.b16 %v1873
        %v1884 = vunpack.c.l.b16 %v1874
        %v1885 = vpack.c.b16 %v1882, %v1881
        %v1886 = vpack.c.b16 %v1884, %v1883
        %v1890 = vsel %vm932, %v1875, 0
        %1892 = vmatpush.bf16.msra.mxu0 0
        %1893 = vmatpush.bf16.msra.mxu0 0
        %1894 = vmatpush.bf16.msra.mxu0 0
        %1895 = vmatpush.bf16.msra.mxu0 0
        %1896 = vmatpush.bf16.msra.mxu0 0
        %1897 = vmatpush.bf16.msra.mxu0 0
        %1898 = vmatpush.bf16.msra.mxu0 %v1886
        %1899 = vmatpush.bf16.msra.mxu0 %v1885
        %1900 = vmatmul.bf16.gmra.mxu0 %v1890
        %v1901 = vpop.f32.mrf.mxu0
        %v1902 = vadd.f32 %v1876, %v1901
        %v1903 = vpop.f32.mrf.mxu0
        %v1904 = vadd.f32 %v1876, %v1903
        %1905 = vdwg.mxu0
        %v1906 = vadd.f32 %v1735, %v1902
        %v1907 = vadd.f32 %v1737, %v1904
        %vm1908 = vcmp.ge.s32.totalorder %v1740, 2
        %vm1909 = vcmp.ge.s32.totalorder %v1741, 2
        %v1910 = vrot.slane %v1906, 6
        %v1911 = vrot.slane %v1907, 6
        %vm1912 = vcmp.lt.s32.totalorder %v1740, 2
        %v1913 = vsel %vm1912, %v1910, %v1911
        %v1914 = vsel %vm1912, %v1911, %v1910
        %v1915 = vsel %vm1908, %v1914, 0.0
        %v1916 = vsel %vm1909, %v1913, 0.0
        %vm1917 = vcmp.lt.s32.totalorder %v1740, 14
        %vm1918 = vcmp.lt.s32.totalorder %v1741, 14
        %v1919 = vrot.slane %v1906, 2
        %v1920 = vrot.slane %v1907, 2
        %vm1921 = vcmp.lt.s32.totalorder %v1740, 6
        %v1922 = vsel %vm1921, %v1919, %v1920
        %v1923 = vsel %vm1921, %v1920, %v1919
        %v1924 = vsel %vm1917, %v1922, 0.0
        %v1925 = vsel %vm1918, %v1923, 0.0
        %s1926 = scalar_lea.vmem [#allocation18], 48
        %v1927 = vld [vmem:[%s1926] sm:$0xf]
        %v1928 = vld [vmem:[%s1926 + $0x4] sm:$0xf]
        %v1929 = vld [vmem:[%s1926 + $0x8] sm:$0xf]
        %v1930 = vld [vmem:[%s1926 + $0xc] sm:$0xf]
        %v1931 = vpack.c.bf16 %v1916, %v1915
        %s1932 = scalar_lea.vmem [#allocation18], 64
        %v1933 = vld [vmem:[%s1932] sm:$0xf]
        %v1934 = vld [vmem:[%s1932 + $0x4] sm:$0xf]
        %v1935 = vld [vmem:[%s1932 + $0x8] sm:$0xf]
        %v1936 = vld [vmem:[%s1932 + $0xc] sm:$0xf]
        %v1937 = vpack.c.bf16 %v1907, %v1906
        %v1942 = vunpack.c.l.b16 %v1933
        %v1943 = vunpack.c.l.b16 %v1934
        %v1944 = vunpack.c.l.b16 %v1935
        %v1945 = vunpack.c.l.b16 %v1936
        %v1946 = vpack.c.b16 %v1943, %v1942
        %v1947 = vpack.c.b16 %v1945, %v1944
        %v1951 = vsel %vm932, %v1937, 0
        %1953 = vmatpush.bf16.msra.mxu0 0
        %1954 = vmatpush.bf16.msra.mxu0 0
        %1955 = vmatpush.bf16.msra.mxu0 0
        %1956 = vmatpush.bf16.msra.mxu0 0
        %1957 = vmatpush.bf16.msra.mxu0 0
        %1958 = vmatpush.bf16.msra.mxu0 0
        %1959 = vmatpush.bf16.msra.mxu0 %v1947
        %1960 = vmatpush.bf16.msra.mxu0 %v1946
        %1961 = vmatmul.bf16.gmra.mxu0 %v1951
        %v1962 = vpop.f32.mrf.mxu0
        %v1963 = vadd.f32 0.0, %v1962
        %v1964 = vpop.f32.mrf.mxu0
        %v1965 = vadd.f32 0.0, %v1964
        %1966 = vdwg.mxu0
        %v1971 = vunpack.c.l.b16 %v1927
        %v1972 = vunpack.c.l.b16 %v1928
        %v1973 = vunpack.c.l.b16 %v1929
        %v1974 = vunpack.c.l.b16 %v1930
        %v1975 = vpack.c.b16 %v1972, %v1971
        %v1976 = vpack.c.b16 %v1974, %v1973
        %v1980 = vsel %vm932, %v1931, 0
        %1982 = vmatpush.bf16.msra.mxu0 0
        %1983 = vmatpush.bf16.msra.mxu0 0
        %1984 = vmatpush.bf16.msra.mxu0 0
        %1985 = vmatpush.bf16.msra.mxu0 0
        %1986 = vmatpush.bf16.msra.mxu0 0
        %1987 = vmatpush.bf16.msra.mxu0 0
        %1988 = vmatpush.bf16.msra.mxu0 %v1976
        %1989 = vmatpush.bf16.msra.mxu0 %v1975
        %1990 = vmatmul.bf16.gmra.mxu0 %v1980
        %v1991 = vpop.f32.mrf.mxu0
        %v1992 = vadd.f32 %v1963, %v1991
        %v1993 = vpop.f32.mrf.mxu0
        %v1994 = vadd.f32 %v1965, %v1993
        %1995 = vdwg.mxu0
        %s1996 = scalar_lea.vmem [#allocation18], 80
        %v1997 = vld [vmem:[%s1996] sm:$0xf]
        %v1998 = vld [vmem:[%s1996 + $0x4] sm:$0xf]
        %v1999 = vld [vmem:[%s1996 + $0x8] sm:$0xf]
        %v2000 = vld [vmem:[%s1996 + $0xc] sm:$0xf]
        %v2001 = vpack.c.bf16 %v1925, %v1924
        %v2006 = vunpack.c.l.b16 %v1997
        %v2007 = vunpack.c.l.b16 %v1998
        %v2008 = vunpack.c.l.b16 %v1999
        %v2009 = vunpack.c.l.b16 %v2000
        %v2010 = vpack.c.b16 %v2007, %v2006
        %v2011 = vpack.c.b16 %v2009, %v2008
        %v2015 = vsel %vm932, %v2001, 0
        %2017 = vmatpush.bf16.msra.mxu0 0
        %2018 = vmatpush.bf16.msra.mxu0 0
        %2019 = vmatpush.bf16.msra.mxu0 0
        %2020 = vmatpush.bf16.msra.mxu0 0
        %2021 = vmatpush.bf16.msra.mxu0 0
        %2022 = vmatpush.bf16.msra.mxu0 0
        %2023 = vmatpush.bf16.msra.mxu0 %v2011
        %2024 = vmatpush.bf16.msra.mxu0 %v2010
        %2025 = vmatmul.bf16.gmra.mxu0 %v2015
        %v2026 = vpop.f32.mrf.mxu0
        %v2027 = vadd.f32 0.0, %v2026
        %v2028 = vpop.f32.mrf.mxu0
        %v2029 = vadd.f32 0.0, %v2028
        %2030 = vdwg.mxu0
        %v2031 = vadd.f32 %v1992, %v2027
        %v2032 = vadd.f32 %v1994, %v2029
        %v2033 = vperm.slane %v913, 2
        %v2034 = vadd.f32 %v2031, %v2033
        %v2035 = vadd.f32 %v2032, %v2033
        %v2036 = vmax.f32 %v2034, 0.0
        %v2037 = vmax.f32 %v2035, 0.0
        %s2038 = scalar_lea.vmem %s13, 16
        %v2039 = vld [vmem:[%s2038] sm:$0xf]
        %v2040 = vld [vmem:[%s2038 + $0x4] sm:$0xf]
        %v2041 = vld [vmem:[%s2038 + $0x8] sm:$0xf]
        %v2042 = vld [vmem:[%s2038 + $0xc] sm:$0xf]
        %v2043 = vpack.c.bf16 %v2037, %v2036
        %v2044 = vperm.slane %v913, 5
        %v2049 = vunpack.c.l.b16 %v2039
        %v2050 = vunpack.c.l.b16 %v2040
        %v2051 = vunpack.c.l.b16 %v2041
        %v2052 = vunpack.c.l.b16 %v2042
        %v2053 = vpack.c.b16 %v2050, %v2049
        %v2054 = vpack.c.b16 %v2052, %v2051
        %v2058 = vsel %vm932, %v2043, 0
        %2060 = vmatpush.bf16.msra.mxu0 0
        %2061 = vmatpush.bf16.msra.mxu0 0
        %2062 = vmatpush.bf16.msra.mxu0 0
        %2063 = vmatpush.bf16.msra.mxu0 0
        %2064 = vmatpush.bf16.msra.mxu0 0
        %2065 = vmatpush.bf16.msra.mxu0 0
        %2066 = vmatpush.bf16.msra.mxu0 %v2054
        %2067 = vmatpush.bf16.msra.mxu0 %v2053
        %2068 = vmatmul.bf16.gmra.mxu0 %v2058
        %v2069 = vpop.f32.mrf.mxu0
        %v2070 = vadd.f32 %v2044, %v2069
        %v2071 = vpop.f32.mrf.mxu0
        %v2072 = vadd.f32 %v2044, %v2071
        %2073 = vdwg.mxu0
        %v2074 = vadd.f32 %v1906, %v2070
        %v2075 = vadd.f32 %v1907, %v2072
        %vm2076 = vcmp.ge.s32.totalorder %v1740, 4
        %vm2077 = vcmp.ge.s32.totalorder %v1741, 4
        %v2078 = vrot.slane %v2074, 4
        %v2079 = vrot.slane %v2075, 4
        %vm2080 = vcmp.lt.s32.totalorder %v1740, 4
        %v2081 = vsel %vm2080, %v2078, %v2079
        %v2082 = vsel %vm2080, %v2079, %v2078
        %v2083 = vsel %vm2076, %v2082, 0.0
        %v2084 = vsel %vm2077, %v2081, 0.0
        %vm2085 = vcmp.lt.s32.totalorder %v1740, 12
        %vm2086 = vcmp.lt.s32.totalorder %v1741, 12
        %v2087 = vsel %vm2085, %v2081, 0.0
        %v2088 = vsel %vm2086, %v2082, 0.0
        %s2089 = scalar_lea.vmem [#allocation18], 96
        %v2090 = vld [vmem:[%s2089] sm:$0xf]
        %v2091 = vld [vmem:[%s2089 + $0x4] sm:$0xf]
        %v2092 = vld [vmem:[%s2089 + $0x8] sm:$0xf]
        %v2093 = vld [vmem:[%s2089 + $0xc] sm:$0xf]
        %v2094 = vpack.c.bf16 %v2084, %v2083
        %s2095 = scalar_lea.vmem [#allocation18], 112
        %v2096 = vld [vmem:[%s2095] sm:$0xf]
        %v2097 = vld [vmem:[%s2095 + $0x4] sm:$0xf]
        %v2098 = vld [vmem:[%s2095 + $0x8] sm:$0xf]
        %v2099 = vld [vmem:[%s2095 + $0xc] sm:$0xf]
        %v2100 = vpack.c.bf16 %v2075, %v2074
        %v2105 = vunpack.c.l.b16 %v2096
        %v2106 = vunpack.c.l.b16 %v2097
        %v2107 = vunpack.c.l.b16 %v2098
        %v2108 = vunpack.c.l.b16 %v2099
        %v2109 = vpack.c.b16 %v2106, %v2105
        %v2110 = vpack.c.b16 %v2108, %v2107
        %v2114 = vsel %vm932, %v2100, 0
        %2116 = vmatpush.bf16.msra.mxu0 0
        %2117 = vmatpush.bf16.msra.mxu0 0
        %2118 = vmatpush.bf16.msra.mxu0 0
        %2119 = vmatpush.bf16.msra.mxu0 0
        %2120 = vmatpush.bf16.msra.mxu0 0
        %2121 = vmatpush.bf16.msra.mxu0 0
        %2122 = vmatpush.bf16.msra.mxu0 %v2110
        %2123 = vmatpush.bf16.msra.mxu0 %v2109
        %2124 = vmatmul.bf16.gmra.mxu0 %v2114
        %v2125 = vpop.f32.mrf.mxu0
        %v2126 = vadd.f32 0.0, %v2125
        %v2127 = vpop.f32.mrf.mxu0
        %v2128 = vadd.f32 0.0, %v2127
        %2129 = vdwg.mxu0
        %v2134 = vunpack.c.l.b16 %v2090
        %v2135 = vunpack.c.l.b16 %v2091
        %v2136 = vunpack.c.l.b16 %v2092
        %v2137 = vunpack.c.l.b16 %v2093
        %v2138 = vpack.c.b16 %v2135, %v2134
        %v2139 = vpack.c.b16 %v2137, %v2136
        %v2143 = vsel %vm932, %v2094, 0
        %2145 = vmatpush.bf16.msra.mxu0 0
        %2146 = vmatpush.bf16.msra.mxu0 0
        %2147 = vmatpush.bf16.msra.mxu0 0
        %2148 = vmatpush.bf16.msra.mxu0 0
        %2149 = vmatpush.bf16.msra.mxu0 0
        %2150 = vmatpush.bf16.msra.mxu0 0
        %2151 = vmatpush.bf16.msra.mxu0 %v2139
        %2152 = vmatpush.bf16.msra.mxu0 %v2138
        %2153 = vmatmul.bf16.gmra.mxu0 %v2143
        %v2154 = vpop.f32.mrf.mxu0
        %v2155 = vadd.f32 %v2126, %v2154
        %v2156 = vpop.f32.mrf.mxu0
        %v2157 = vadd.f32 %v2128, %v2156
        %2158 = vdwg.mxu0
        %s2159 = scalar_lea.vmem [#allocation18], 128
        %v2160 = vld [vmem:[%s2159] sm:$0xf]
        %v2161 = vld [vmem:[%s2159 + $0x4] sm:$0xf]
        %v2162 = vld [vmem:[%s2159 + $0x8] sm:$0xf]
        %v2163 = vld [vmem:[%s2159 + $0xc] sm:$0xf]
        %v2164 = vpack.c.bf16 %v2088, %v2087
        %v2169 = vunpack.c.l.b16 %v2160
        %v2170 = vunpack.c.l.b16 %v2161
        %v2171 = vunpack.c.l.b16 %v2162
        %v2172 = vunpack.c.l.b16 %v2163
        %v2173 = vpack.c.b16 %v2170, %v2169
        %v2174 = vpack.c.b16 %v2172, %v2171
        %v2178 = vsel %vm932, %v2164, 0
        %2180 = vmatpush.bf16.msra.mxu0 0
        %2181 = vmatpush.bf16.msra.mxu0 0
        %2182 = vmatpush.bf16.msra.mxu0 0
        %2183 = vmatpush.bf16.msra.mxu0 0
        %2184 = vmatpush.bf16.msra.mxu0 0
        %2185 = vmatpush.bf16.msra.mxu0 0
        %2186 = vmatpush.bf16.msra.mxu0 %v2174
        %2187 = vmatpush.bf16.msra.mxu0 %v2173
        %2188 = vmatmul.bf16.gmra.mxu0 %v2178
        %v2189 = vpop.f32.mrf.mxu0
        %v2190 = vadd.f32 0.0, %v2189
        %v2191 = vpop.f32.mrf.mxu0
        %v2192 = vadd.f32 0.0, %v2191
        %2193 = vdwg.mxu0
        %v2194 = vadd.f32 %v2155, %v2190
        %v2195 = vadd.f32 %v2157, %v2192
        %v2196 = vperm.slane %v913, 3
        %v2197 = vadd.f32 %v2194, %v2196
        %v2198 = vadd.f32 %v2195, %v2196
        %v2199 = vmax.f32 %v2197, 0.0
        %v2200 = vmax.f32 %v2198, 0.0
        %s2201 = scalar_lea.vmem %s13, 32
        %v2202 = vld [vmem:[%s2201] sm:$0xf]
        %v2203 = vld [vmem:[%s2201 + $0x4] sm:$0xf]
        %v2204 = vld [vmem:[%s2201 + $0x8] sm:$0xf]
        %v2205 = vld [vmem:[%s2201 + $0xc] sm:$0xf]
        %v2206 = vpack.c.bf16 %v2200, %v2199
        %v2207 = vperm.slane %v913, 6
        %v2212 = vunpack.c.l.b16 %v2202
        %v2213 = vunpack.c.l.b16 %v2203
        %v2214 = vunpack.c.l.b16 %v2204
        %v2215 = vunpack.c.l.b16 %v2205
        %v2216 = vpack.c.b16 %v2213, %v2212
        %v2217 = vpack.c.b16 %v2215, %v2214
        %v2221 = vsel %vm932, %v2206, 0
        %2223 = vmatpush.bf16.msra.mxu0 0
        %2224 = vmatpush.bf16.msra.mxu0 0
        %2225 = vmatpush.bf16.msra.mxu0 0
        %2226 = vmatpush.bf16.msra.mxu0 0
        %2227 = vmatpush.bf16.msra.mxu0 0
        %2228 = vmatpush.bf16.msra.mxu0 0
        %2229 = vmatpush.bf16.msra.mxu0 %v2217
        %2230 = vmatpush.bf16.msra.mxu0 %v2216
        %2231 = vmatmul.bf16.gmra.mxu0 %v2221
        %v2232 = vpop.f32.mrf.mxu0
        %v2233 = vadd.f32 %v2207, %v2232
        %v2234 = vpop.f32.mrf.mxu0
        %v2235 = vadd.f32 %v2207, %v2234
        %2236 = vdwg.mxu0
        %v2237 = vadd.f32 %v2074, %v2233
        %v2238 = vadd.f32 %v2075, %v2235
        %v2239 = vld [vmem:[#allocation16] sm:$0xf]
        %v2240 = vld [vmem:[#allocation16 + $0x4] sm:$0xf]
        %v2241 = vld [vmem:[#allocation16 + $0x8] sm:$0xf]
        %v2242 = vld [vmem:[#allocation16 + $0xc] sm:$0xf]
        %v2243 = vpack.c.bf16 %v2238, %v2237
        %v2244 = vperm.slane %v912, 6
        %v2249 = vunpack.c.l.b16 %v2239
        %v2250 = vunpack.c.l.b16 %v2240
        %v2251 = vunpack.c.l.b16 %v2241
        %v2252 = vunpack.c.l.b16 %v2242
        %v2253 = vpack.c.b16 %v2250, %v2249
        %v2254 = vpack.c.b16 %v2252, %v2251
        %v2258 = vsel %vm932, %v2243, 0
        %2260 = vmatpush.bf16.msra.mxu0 0
        %2261 = vmatpush.bf16.msra.mxu0 0
        %2262 = vmatpush.bf16.msra.mxu0 0
        %2263 = vmatpush.bf16.msra.mxu0 0
        %2264 = vmatpush.bf16.msra.mxu0 0
        %2265 = vmatpush.bf16.msra.mxu0 0
        %2266 = vmatpush.bf16.msra.mxu0 %v2254
        %2267 = vmatpush.bf16.msra.mxu0 %v2253
        %2268 = vmatmul.bf16.gmra.mxu0 %v2258
        %v2269 = vpop.f32.mrf.mxu0
        %v2270 = vadd.f32 %v2244, %v2269
        %v2271 = vpop.f32.mrf.mxu0
        %v2272 = vadd.f32 %v2244, %v2271
        %2273 = vdwg.mxu0
        %2274 = vst.msk [vmem:[%s895] sm:$0xff] %vm932, %v2270
        %2275 = vst.msk [vmem:[%s895 + $0x8] sm:$0xff] %vm932, %v2272
        %p2276 = scmp.lt.s32.totalorder %s44, 1
        %s2277 = scalar_select %p2276, %s44, 1
        %s2278 = smul.addr %s2277, 8
        %s2279 = scalar_lea.vmem %s16, %s2278
        %p2280 = scmp.lt.s32.totalorder %s44, 1
        %s2281 = scalar_select %p2280, %s44, 1
        %s2282 = smul.addr %s2281, 2
        %s2283 = smul.addr %s2282, 8
        %s2284 = scalar_lea.vmem %s17, %s2283
        %p2285 = scmp.lt.s32.totalorder %s44, 1
        %s2286 = scalar_select %p2285, %s44, 1
        %s2287 = smul.addr %s2286, 8
        %s2288 = scalar_lea.vmem %s18, %s2287
        %p2289 = scmp.lt.s32.totalorder %s44, 1
        %s2290 = scalar_select %p2289, %s44, 1
        %s2291 = smul.addr %s2290, 2
        %s2292 = smul.addr %s2291, 8
        %s2293 = scalar_lea.vmem %s19, %s2292
        // Predicated region
        $region133: #{update_block_forward.1} parent=83 // pred_check
          %p2294 = pneg %p418
        $region134: #{update_block_forward.1} parent=83 // pred_check_branch
          %2296 = sbr.rel (%p2294) target = $region136
        $region135: #{update_block_forward.1} parent=83 // pred_region
          _
        $region136: #{update_block_forward.1} parent=83 // pred_fallthru
          _
        // Predicated region
        $region137: #{update_block_forward.1} parent=83 // pred_check
          %p2297 = pneg %p444
        $region138: #{update_block_forward.1} parent=83 // pred_check_branch
          %2299 = sbr.rel (%p2297) target = $region140
        $region139: #{update_block_forward.1} parent=83 // pred_region
          _
        $region140: #{update_block_forward.1} parent=83 // pred_fallthru
          _
        // Predicated region
        $region141: #{update_block_forward.1} parent=83 // pred_check
          %p2300 = pneg %p470
        $region142: #{update_block_forward.1} parent=83 // pred_check_branch
          %2302 = sbr.rel (%p2300) target = $region144
        $region143: #{update_block_forward.1} parent=83 // pred_region
          _
        $region144: #{update_block_forward.1} parent=83 // pred_fallthru
          _
        // Predicated region
        $region145: #{update_block_forward.1} parent=83 // pred_check
          %p2303 = pneg %p496
        $region146: #{update_block_forward.1} parent=83 // pred_check_branch
          %2305 = sbr.rel (%p2303) target = $region148
        $region147: #{update_block_forward.1} parent=83 // pred_region
          _
        $region148: #{update_block_forward.1} parent=83 // pred_fallthru
          _
      $region84: #{update_block_forward.1} parent=5 // pred_fallthru
        _
      %p2306 = scmp.le.s32.totalorder 2, %s39
      // Predicated region
      $region149: #{update_block_forward.1} parent=5 // pred_check
        %p2307 = pneg %p2306
      $region150: #{update_block_forward.1} parent=5 // pred_check_branch
        %2309 = sbr.rel (%p2307) target = $region152
      $region151: #{update_block_forward.1} parent=5 // pred_region
        %s2310 = ssub.s32 %s39, 2
        // Predicated region
        $region153: #{update_block_forward.1} parent=151 // pred_check
          %p2311 = pneg %p424
        $region154: #{update_block_forward.1} parent=151 // pred_check_branch
          %2313 = sbr.rel (%p2311) target = $region156
        $region155: #{update_block_forward.1} parent=151 // pred_region
          %p2314 = scmp.lt.s32.totalorder %s45, 1
          %s2315 = scalar_select %p2314, %s45, 1
          %s2316 = smul.addr %s2315, 8
          %s2317 = scalar_lea.vmem %s16, %s2316
        $region156: #{update_block_forward.1} parent=151 // pred_fallthru
          _
        // Predicated region
        $region157: #{update_block_forward.1} parent=151 // pred_check
          %p2318 = pneg %p450
        $region158: #{update_block_forward.1} parent=151 // pred_check_branch
          %2320 = sbr.rel (%p2318) target = $region160
        $region159: #{update_block_forward.1} parent=151 // pred_region
          %p2321 = scmp.lt.s32.totalorder %s45, 1
          %s2322 = scalar_select %p2321, %s45, 1
          %s2323 = smul.addr %s2322, 2
          %s2324 = smul.addr %s2323, 8
          %s2325 = scalar_lea.vmem %s17, %s2324
        $region160: #{update_block_forward.1} parent=151 // pred_fallthru
          _
        // Predicated region
        $region161: #{update_block_forward.1} parent=151 // pred_check
          %p2326 = pneg %p476
        $region162: #{update_block_forward.1} parent=151 // pred_check_branch
          %2328 = sbr.rel (%p2326) target = $region164
        $region163: #{update_block_forward.1} parent=151 // pred_region
          %p2329 = scmp.lt.s32.totalorder %s45, 1
          %s2330 = scalar_select %p2329, %s45, 1
          %s2331 = smul.addr %s2330, 8
          %s2332 = scalar_lea.vmem %s18, %s2331
        $region164: #{update_block_forward.1} parent=151 // pred_fallthru
          _
        // Predicated region
        $region165: #{update_block_forward.1} parent=151 // pred_check
          %p2333 = pneg %p502
        $region166: #{update_block_forward.1} parent=151 // pred_check_branch
          %2335 = sbr.rel (%p2333) target = $region168
        $region167: #{update_block_forward.1} parent=151 // pred_region
          %p2336 = scmp.lt.s32.totalorder %s45, 1
          %s2337 = scalar_select %p2336, %s45, 1
          %s2338 = smul.addr %s2337, 2
          %s2339 = smul.addr %s2338, 8
          %s2340 = scalar_lea.vmem %s19, %s2339
        $region168: #{update_block_forward.1} parent=151 // pred_fallthru
          _
      $region152: #{update_block_forward.1} parent=5 // pred_fallthru
        _
    $region6: #{update_block_forward.1} parent=1 // loop_footer
      %s43 = sadd.s32 1, %s39
    $region7: #{update_block_forward.1} parent=1 // loop_footer_branch
      %38 = sbr.rel target = $region3
    $region8: #{update_block_forward.1} parent=1 // loop_exit
      _
    %2341 = vsyncpa [#allocation3], 1
    %s2342 = scalar_lea.sflag [#allocation3], 1
    %2343 = vsyncpa %s2342, 1
    %2344 = vsyncpa [#allocation5], 1
    %s2345 = scalar_lea.sflag [#allocation5], 1
    %2346 = vsyncpa %s2345, 1
    %2347 = vsyncpa [#allocation8], 1
    %s2348 = scalar_lea.sflag [#allocation8], 1
    %2349 = vsyncpa %s2348, 1
    %2350 = vsyncpa [#allocation11], 1
    %2351 = vsyncpa [#allocation14], 1
    %2352 = vsyncpa [#allocation17], 1
    %2353 = vsyncpa [#allocation20], 1

</llo_original>
